<compile_context>
chip_gen: v6e
topology: v6e:2x2x1
jax: 0.10.0
libtpu: 0.0.40
codegen_flags: <defaults>
</compile_context>

<pallas_src>
import jax
import jax.numpy as jnp
from jax.experimental import pallas as pl
from jax.experimental.pallas import tpu as pltpu


_HI = jax.lax.Precision.HIGHEST


# ----------------------------------------------------------------------------
# MXU helpers
# ----------------------------------------------------------------------------
def _mm(a, b):
    """bf16-operand MXU matmul with f32 accumulation (encoder/decoder MLPs)."""
    return jnp.dot(a.astype(jnp.bfloat16), b.astype(jnp.bfloat16),
                   preferred_element_type=jnp.float32)


def _dot32(a, b):
    """Full-f32 matmul (small Kalman glue matrices / references)."""
    return jnp.dot(a, b, precision=_HI)


# ----------------------------------------------------------------------------
# Kalman folding (JAX glue, outside the kernel)
# ----------------------------------------------------------------------------
def _fold_kalman(A, Q, Hm, R):
    """Fold the (data-independent) predict/update into
         z_t = z_{t-1} @ M1 + [z_enc_t | x_t] @ M23,
    with G = I - (K H)^T, M1 = A^T G, M23 = [G ; K^T].
    TODO(synk): torch.inverse stays here (no in-kernel Pallas equivalent)."""
    L = A.shape[0]
    z_pred_cov = _dot32(A, Q)
    innovation_cov = _dot32(Hm, z_pred_cov) + R
    K = _dot32(z_pred_cov, jnp.linalg.inv(innovation_cov))
    G = jnp.eye(L, dtype=jnp.float32) - _dot32(K, Hm).T
    M1 = _dot32(A.T, G)
    M23 = jnp.concatenate([G, K.T], axis=0)            # (2L, L)
    return M1.astype(jnp.float32), M23.astype(jnp.float32)


def _toeplitz_and_carry(M1, t_tile):
    """Lower-block-Toeplitz T (Tt*L, Tt*L) of M1 powers and carry propagator
    P (L, Tt*L), so that within a time tile: z_wide = cw @ T + z_carry @ P."""
    L = M1.shape[0]
    powers = [jnp.eye(L, dtype=jnp.float32)]
    for _ in range(t_tile):
        powers.append(_dot32(powers[-1], M1))
    zero = jnp.zeros((L, L), jnp.float32)
    T = jnp.concatenate(
        [jnp.concatenate([powers[t - s] if t >= s else zero
                          for t in range(t_tile)], axis=1)
         for s in range(t_tile)], axis=0)
    P = jnp.concatenate([powers[t + 1] for t in range(t_tile)], axis=1)
    return T, P


# ----------------------------------------------------------------------------
# Pallas kernel factory: one invocation = one (batch chunk, time tile) block.
# ----------------------------------------------------------------------------
def _make_kvae_kernel(t_tile, b_chunk, input_dim, latent_dim, out_width):
    rows = t_tile * b_chunk                       # row = tau*b_chunk + b (time-major)
    L = latent_dim
    pad = out_width - (input_dim + 2 * L)

    def kernel(x_ref, eps_ref,
               w1_ref, b1_ref, w2_ref, b2_ref,        # encoder (fused mean|logvar head)
               m23_ref, tplz_ref, carry_mat_ref,      # folded Kalman: [G;K^T], Toeplitz, carry prop
               wd1_ref, bd1_ref, wd2_ref, bd2_ref,    # decoder
               out_ref,                               # (1, rows, out_width) packed slab
               zprev_ref):                            # VMEM scratch (b_chunk, L): Kalman carry
        tile = pl.program_id(1)

        # Reset the carry at the first time tile of every batch chunk.
        @pl.when(tile == 0)
        def _():
            zprev_ref[...] = jnp.zeros_like(zprev_ref)

        x = x_ref[0]        # (rows, Din) f32
        eps = eps_ref[0]    # (rows, L)   f32

        # ---- encoder MLP, batched over all rows of this tile (bf16 MXU) ----
        h = jnp.maximum(_mm(x, w1_ref[...]) + b1_ref[...], 0.0)
        enc = _mm(h, w2_ref[...]) + b2_ref[...]         # (rows, 2L) = [mean | logvar]
        # logvar starts at lane L (<128): accepted sub-128 lane slice (XLU shift).
        mean = enc[:, :L]
        logvar = enc[:, L:]

        # ---- reparameterize (f32 VPU/EUP math) ----
        z = mean + eps * jnp.exp(0.5 * logvar)

        # ---- fused Kalman input: c_t = [z_t | x_t] @ M23  (f32 MXU, K=2L) ----
        c = jnp.dot(jnp.concatenate([z, x], axis=-1), m23_ref[...],
                    preferred_element_type=jnp.float32)             # (rows, L)

        # ---- strength-reduced recurrence: one block-Toeplitz matmul (f32) ----
        # cw[:, tau*L:(tau+1)*L] = c_tau; Bc % 8 == 0 keeps these slices
        # sublane-aligned (no relayout copies).
        cw = jnp.concatenate(
            [c[t * b_chunk:(t + 1) * b_chunk, :] for t in range(t_tile)], axis=-1)
        z_wide = (jnp.dot(cw, tplz_ref[...], preferred_element_type=jnp.float32)
                  + jnp.dot(zprev_ref[...], carry_mat_ref[...],
                            preferred_element_type=jnp.float32))    # (Bc, Tt*L)

        # Carry the last step's state into the next time tile.
        zprev_ref[...] = z_wide[:, (t_tile - 1) * L:]

        # Back to time-major rows for the decoder.
        z_all = jnp.concatenate(
            [z_wide[:, t * L:(t + 1) * L] for t in range(t_tile)], axis=0)  # (rows, L)

        # ---- decoder MLP (bf16 MXU) ----
        hd = jnp.maximum(_mm(z_all, wd1_ref[...]) + bd1_ref[...], 0.0)
        x_recon = _mm(hd, wd2_ref[...]) + bd2_ref[...]              # (rows, Din)

        # ---- lane-dense packed store: one unmasked 128-lane-multiple write ----
        # TODO(synk): a bf16 output slab would halve writeback bytes if the
        # downstream loss math tolerates it.
        pieces = [x_recon, enc]
        if pad:
            pieces.append(jnp.zeros((rows, pad), jnp.float32))
        out_ref[0] = jnp.concatenate(pieces, axis=-1).astype(out_ref.dtype)

    return kernel


# ----------------------------------------------------------------------------
# Wrapper: Kalman glue, layout plumbing, pallas_call
# ----------------------------------------------------------------------------
def kalman_vae_forward(x, eps, params, *, num_batch_chunks=1, num_time_tiles=1):
    """Sizing guidance (per perf review):
      * rows per invocation = (S/num_time_tiles) * (B/num_batch_chunks); keep it
        >=256 on v6e/v7x (>=128 on v5e) and a multiple of 8.
      * num_batch_chunks >= 2 only on v7x (2 TensorCores); keep 1 on v5e/v6e.
      * num_time_tiles > 1 at realistic B*S: restores DMA/compute overlap and
        caps VMEM (intermediates ~= 3-4 KiB/row) for v7x's 64 MiB budget; the
        Toeplitz cost per tile is O(Tt^2 * L^2) per batch row, so pick Tt to
        balance against the serial-chain removal (fine for Tt up to a few dozen).
    """
    (w1, b1, w2, b2, A, Q, Hm, R, wd1, bd1, wd2, bd2) = params
    B, S, Din = x.shape
    L = A.shape[0]
    HID = w1.shape[1]
    assert Din == L, "reference broadcasting requires input_dim == latent_dim"
    nc, nt = num_batch_chunks, num_time_tiles
    assert B % nc == 0 and S % nt == 0
    Bc, Tt = B // nc, S // nt
    assert Bc % 8 == 0, "batch chunk must be a multiple of 8 (sublane alignment)"
    rows_chunk = S * Bc            # per chunk, time-major: row = t*Bc + b_local
    rows_tile = Tt * Bc            # rows per (chunk, time-tile) invocation

    # Fold the data-independent Kalman predict/update; f32 throughout.
    M1, M23 = _fold_kalman(A, Q, Hm, R)
    T, P = _toeplitz_and_carry(M1, Tt)

    # bf16 weights for the heavy MLP matmuls (operands only; biases stay f32).
    w1b, w2b, wd1b, wd2b = (w.astype(jnp.bfloat16) for w in (w1, w2, wd1, wd2))
    b1f, b2f, bd1f, bd2f = (b.astype(jnp.float32) for b in (b1, b2, bd1, bd2))

    def to_chunks(a, feat):
        return (a.astype(jnp.float32)
                 .reshape(nc, Bc, S, feat)
                 .transpose(0, 2, 1, 3)
                 .reshape(nc, rows_chunk, feat))

    x_ck = to_chunks(x, Din)
    eps_ck = to_chunks(eps, L)

    # Packed output width: next multiple of 128 lanes (unmasked stores).
    W = ((Din + 2 * L + 127) // 128) * 128
    kernel = _make_kvae_kernel(Tt, Bc, Din, L, W)

    def const_spec(shape):
        return pl.BlockSpec(shape, lambda i, j: (0, 0))

    out = pl.pallas_call(
        kernel,
        out_shape=jax.ShapeDtypeStruct((nc, rows_chunk, W), jnp.float32),
        grid=(nc, nt),
        in_specs=[
            pl.BlockSpec((1, rows_tile, Din), lambda i, j: (i, j, 0)),   # x tile
            pl.BlockSpec((1, rows_tile, L), lambda i, j: (i, j, 0)),     # eps tile
            const_spec((Din, HID)), const_spec((1, HID)),        # encoder L1
            const_spec((HID, 2 * L)), const_spec((1, 2 * L)),    # encoder L2 (fused head)
            const_spec((2 * L, L)),                              # M23 = [G ; K^T]
            const_spec((Tt * L, Tt * L)),                        # block-Toeplitz T
            const_spec((L, Tt * L)),                             # carry propagator P
            const_spec((L, HID)), const_spec((1, HID)),          # decoder L1
            const_spec((HID, Din)), const_spec((1, Din)),        # decoder L2
        ],
        out_specs=pl.BlockSpec((1, rows_tile, W), lambda i, j: (i, j, 0)),
        scratch_shapes=[pltpu.VMEM((Bc, L), jnp.float32)],       # Kalman carry
        compiler_params=pltpu.CompilerParams(
            # Batch chunks are independent ("parallel", feeds v7x's 2nd core);
            # time tiles carry state through scratch ("arbitrary", sequential).
            dimension_semantics=("parallel", "arbitrary"),
        ),
    )(x_ck, eps_ck, w1b, b1f, w2b, b2f, M23, T, P, wd1b, bd1f, wd2b, bd2f)

    # Unpack the lane-dense slab back to (B, S, *).
    out = out.reshape(nc, S, Bc, W).transpose(0, 2, 1, 3).reshape(B, S, W)
    x_recon = out[..., :Din]
    mean = out[..., Din:Din + L]
    logvar = out[..., Din + L:Din + 2 * L]
    return x_recon, mean, logvar


# ----------------------------------------------------------------------------
# Deterministic parameter init (shapes per the module's __init__)
# ----------------------------------------------------------------------------
def init_params(key, input_dim, latent_dim, hidden=256):
    ks = jax.random.split(key, 6)

    def linear(k, fan_in, fan_out):
        kw, kb = jax.random.split(k)
        bound = 1.0 / (fan_in ** 0.5)
        w = jax.random.uniform(kw, (fan_in, fan_out), jnp.float32, -bound, bound)
        b = jax.random.uniform(kb, (1, fan_out), jnp.float32, -bound, bound)
        return w, b

    w1, b1 = linear(ks[0], input_dim, hidden)
    w2, b2 = linear(ks[1], hidden, 2 * latent_dim)   # fused [mean | logvar] head
    wd1, bd1 = linear(ks[2], latent_dim, hidden)
    wd2, bd2 = linear(ks[3], hidden, input_dim)

    eye = jnp.eye(latent_dim, dtype=jnp.float32)
    # The module initializes these to identity; perturb A and H slightly so the
    # folded M1/M23/Toeplitz algebra is exercised with non-diagonal matrices
    # (as after training), while staying well-conditioned and stable.
    A = eye + 0.05 * jax.random.normal(ks[4], (latent_dim, latent_dim), jnp.float32)
    Hm = eye + 0.05 * jax.random.normal(ks[5], (latent_dim, latent_dim), jnp.float32)
    Q = eye          # process_covariance
    R = eye          # measurement_covariance
    return (w1, b1, w2, b2, A, Q, Hm, R, wd1, bd1, wd2, bd2)


# ----------------------------------------------------------------------------
# Reference 1: module-faithful (per-step encoder, unfolded Kalman update),
# full f32 with HIGHEST matmul precision -> "gold" semantics check.
# ----------------------------------------------------------------------------
def reference_forward(x, eps, params):
    (w1, b1, w2, b2, A, Q, Hm, R, wd1, bd1, wd2, bd2) = params
    B, S, Din = x.shape
    L = A.shape[0]

    z_pred_cov = _dot32(A, Q)
    innovation_cov = _dot32(Hm, z_pred_cov) + R
    K = _dot32(z_pred_cov, jnp.linalg.inv(innovation_cov))

    z_prev = jnp.zeros((B, L), jnp.float32)
    means, logvars, zs = [], [], []
    for t in range(S):
        xt = x[:, t, :]
        h = jax.nn.relu(_dot32(xt, w1) + b1)
        enc = _dot32(h, w2) + b2
        m, lv = enc[:, :L], enc[:, L:]
        z_t = m + eps[:, t, :] * jnp.exp(0.5 * lv)
        z_pred = _dot32(z_prev, A.T) + z_t
        innovation = xt - _dot32(z_pred, Hm.T)
        z_upd = z_pred + _dot32(innovation, K.T)
        z_prev = z_upd
        means.append(m)
        logvars.append(lv)
        zs.append(z_upd)
    z = jnp.stack(zs, axis=1).reshape(-1, L)
    hd = jax.nn.relu(_dot32(z, wd1) + bd1)
    xr = (_dot32(hd, wd2) + bd2).reshape(B, S, Din)
    return xr, jnp.stack(means, axis=1), jnp.stack(logvars, axis=1)


# ----------------------------------------------------------------------------
# Reference 2: plain-JAX mirror of the kernel arithmetic (bf16 MXU MLP operands,
# batched MLPs, fused M23, f32 recurrence) -> check of the Pallas plumbing.
# ----------------------------------------------------------------------------
def reference_forward_mxu(x, eps, params):
    (w1, b1, w2, b2, A, Q, Hm, R, wd1, bd1, wd2, bd2) = params
    B, S, Din = x.shape
    L = A.shape[0]
    M1, M23 = _fold_kalman(A, Q, Hm, R)

    xf = jnp.transpose(x, (1, 0, 2)).reshape(S * B, Din)   # time-major rows
    ef = jnp.transpose(eps, (1, 0, 2)).reshape(S * B, L)

    h = jax.nn.relu(_mm(xf, w1) + b1)
    enc = _mm(h, w2) + b2
    mean, logvar = enc[:, :L], enc[:, L:]
    z = mean + ef * jnp.exp(0.5 * logvar)
    c = _dot32(jnp.concatenate([z, xf], axis=-1), M23)

    z_prev = jnp.zeros((B, L), jnp.float32)
    zs = []
    for t in range(S):
        z_prev = _dot32(z_prev, M1) + c[t * B:(t + 1) * B]
        zs.append(z_prev)
    z_all = jnp.concatenate(zs, axis=0)

    hd = jax.nn.relu(_mm(z_all, wd1) + bd1)
    xr = _mm(hd, wd2) + bd2

    def unflat(a):
        return jnp.transpose(a.reshape(S, B, -1), (1, 0, 2))

    return unflat(xr), unflat(mean), unflat(logvar)


if __name__ == "__main__":
    key = jax.random.PRNGKey(0)
    k_param, k_x, k_eps = jax.random.split(key, 3)

    # input_dim must equal latent_dim (inherited from the reference broadcasting).
    # B*S = 256 rows keeps the MXU M-dimension filled at nc=1 (review item).
    B, S, Din, L = 16, 16, 32, 32
    params = init_params(k_param, Din, L)
    x = jax.random.normal(k_x, (B, S, Din), jnp.float32)
    # TODO(synk): torch.randn_like is replaced by an explicit deterministic eps.
    eps = jax.random.normal(k_eps, (B, S, L), jnp.float32)

    xr_gold, mean_gold, logvar_gold = reference_forward(x, eps, params)
    xr_mxu, mean_mxu, logvar_mxu = reference_forward_mxu(x, eps, params)

    fwd = jax.jit(kalman_vae_forward,
                  static_argnames=("num_batch_chunks", "num_time_tiles"))

    # (1,1): single invocation (v5e/v6e sweet spot at this size).
    # (1,2): time-tiled -> pipelined DMA with the carry held in VMEM scratch.
    # (2,2): parallel batch chunks (feeds v7x's second TensorCore) + time tiles.
    for nc, nt in ((1, 1), (1, 2), (2, 2)):
        xr, mean, logvar = fwd(x, eps, params,
                               num_batch_chunks=nc, num_time_tiles=nt)
        jax.block_until_ready((xr, mean, logvar))
        assert xr.shape == (B, S, Din)
        assert mean.shape == (B, S, L) and logvar.shape == (B, S, L)

        # Plumbing check vs. the JAX transcription of the kernel arithmetic
        # (same bf16 MXU MLP operands, same folded f32 recurrence).
        assert jnp.allclose(xr, xr_mxu, atol=1e-2, rtol=1e-2)
        assert jnp.allclose(mean, mean_mxu, atol=1e-2, rtol=1e-2)
        assert jnp.allclose(logvar, logvar_mxu, atol=1e-2, rtol=1e-2)

        # Fidelity check vs. the module-faithful full-f32 reference; bound set
        # by the bf16-MXU-operand error budget of the MLPs (documented deviation).
        assert jnp.allclose(xr, xr_gold, atol=5e-2, rtol=5e-2)
        assert jnp.allclose(mean, mean_gold, atol=5e-2, rtol=5e-2)
        assert jnp.allclose(logvar, logvar_gold, atol=5e-2, rtol=5e-2)

    print("KERNEL_OK")
</pallas_src>

<mosaic_0001>
module attributes {stable_mosaic.version = 11 : i64} {
  func.func @kernel(%arg0: i32, %arg1: i32, %arg2: memref<1x256x32xf32, #tpu.memory_space<vmem>>, %arg3: memref<1x256x32xf32, #tpu.memory_space<vmem>>, %arg4: memref<32x256xbf16, #tpu.memory_space<vmem>>, %arg5: memref<1x256xf32, #tpu.memory_space<vmem>>, %arg6: memref<256x64xbf16, #tpu.memory_space<vmem>>, %arg7: memref<1x64xf32, #tpu.memory_space<vmem>>, %arg8: memref<64x32xf32, #tpu.memory_space<vmem>>, %arg9: memref<512x512xf32, #tpu.memory_space<vmem>>, %arg10: memref<32x512xf32, #tpu.memory_space<vmem>>, %arg11: memref<32x256xbf16, #tpu.memory_space<vmem>>, %arg12: memref<1x256xf32, #tpu.memory_space<vmem>>, %arg13: memref<256x32xbf16, #tpu.memory_space<vmem>>, %arg14: memref<1x32xf32, #tpu.memory_space<vmem>>, %arg15: memref<1x256x128xf32, #tpu.memory_space<vmem>>, %arg16: memref<16x32xf32, #tpu.memory_space<vmem>>) attributes {dimension_semantics = [#tpu.dimension_semantics<parallel>, #tpu.dimension_semantics<arbitrary>], iteration_bounds = array<i64: 1, 1>, scalar_prefetch = 0 : i64, scratch_operands = 1 : i64, tpu.core_type = #tpu.core_type<tc>, window_params = [{transform_indices = @transform_0, window_bounds = array<i64: 1, 256, 32>}, {transform_indices = @transform_1, window_bounds = array<i64: 1, 256, 32>}, {pipeline_mode = #tpu.pipeline_mode<synchronous>, transform_indices = @transform_2, window_bounds = array<i64: 32, 256>}, {pipeline_mode = #tpu.pipeline_mode<synchronous>, transform_indices = @transform_3, window_bounds = array<i64: 1, 256>}, {pipeline_mode = #tpu.pipeline_mode<synchronous>, transform_indices = @transform_4, window_bounds = array<i64: 256, 64>}, {pipeline_mode = #tpu.pipeline_mode<synchronous>, transform_indices = @transform_5, window_bounds = array<i64: 1, 64>}, {pipeline_mode = #tpu.pipeline_mode<synchronous>, transform_indices = @transform_6, window_bounds = array<i64: 64, 32>}, {pipeline_mode = #tpu.pipeline_mode<synchronous>, transform_indices = @transform_7, window_bounds = array<i64: 512, 512>}, {pipeline_mode = #tpu.pipeline_mode<synchronous>, transform_indices = @transform_8, window_bounds = array<i64: 32, 512>}, {pipeline_mode = #tpu.pipeline_mode<synchronous>, transform_indices = @transform_9, window_bounds = array<i64: 32, 256>}, {pipeline_mode = #tpu.pipeline_mode<synchronous>, transform_indices = @transform_10, window_bounds = array<i64: 1, 256>}, {pipeline_mode = #tpu.pipeline_mode<synchronous>, transform_indices = @transform_11, window_bounds = array<i64: 256, 32>}, {pipeline_mode = #tpu.pipeline_mode<synchronous>, transform_indices = @transform_12, window_bounds = array<i64: 1, 32>}, {transform_indices = @transform_13, window_bounds = array<i64: 1, 256, 128>}]} {
    %c0_i32 = arith.constant 0 : i32
    %0 = arith.cmpi eq, %arg1, %c0_i32 : i32
    %1 = arith.extui %0 : i1 to i32
    %c0_i32_0 = arith.constant 0 : i32
    %2 = arith.cmpi ne, %1, %c0_i32_0 : i32
    scf.if %2 {
      %cst_45 = arith.constant 0.000000e+00 : f32
      %92 = vector.broadcast %cst_45 : f32 to vector<16x32xf32>
      %c0_46 = arith.constant 0 : index
      %c0_47 = arith.constant 0 : index
      %93 = vector.load %arg16[%c0_46, %c0_47] : memref<16x32xf32, #tpu.memory_space<vmem>>, vector<16x32xf32>
      tpu.vector_store %arg16[%c0_46, %c0_47], %92 {strides = array<i32>} : memref<16x32xf32, #tpu.memory_space<vmem>>, vector<16x32xf32>,
    } else {
    }
    %c0 = arith.constant 0 : index
    %c0_1 = arith.constant 0 : index
    %c0_2 = arith.constant 0 : index
    %3 = vector.load %arg2[%c0, %c0_1, %c0_2] : memref<1x256x32xf32, #tpu.memory_space<vmem>>, vector<1x256x32xf32>
    %4 = vector.shape_cast %3 : vector<1x256x32xf32> to vector<256x32xf32>
    %c0_3 = arith.constant 0 : index
    %c0_4 = arith.constant 0 : index
    %c0_5 = arith.constant 0 : index
    %5 = vector.load %arg3[%c0_3, %c0_4, %c0_5] : memref<1x256x32xf32, #tpu.memory_space<vmem>>, vector<1x256x32xf32>
    %6 = vector.shape_cast %5 : vector<1x256x32xf32> to vector<256x32xf32>
    %c0_6 = arith.constant 0 : index
    %c0_7 = arith.constant 0 : index
    %7 = vector.load %arg4[%c0_6, %c0_7] : memref<32x256xbf16, #tpu.memory_space<vmem>>, vector<32x256xbf16>
    %8 = arith.truncf %4 : vector<256x32xf32> to vector<256x32xbf16>
    %cst = arith.constant dense<0.000000e+00> : vector<256x256xf32>
    %9 = tpu.matmul %8, %7, %cst {dimension_numbers = #tpu.dot_dimension_numbers<[1], [0], [0], [1], [0, 0, 1, 1], [], []>} : vector<256x32xbf16>, vector<32x256xbf16>, vector<256x256xf32> -> vector<256x256xf32>
    %c0_8 = arith.constant 0 : index
    %c0_9 = arith.constant 0 : index
    %10 = vector.load %arg5[%c0_8, %c0_9] : memref<1x256xf32, #tpu.memory_space<vmem>>, vector<1x256xf32>
    %11 = vector.broadcast %10 : vector<1x256xf32> to vector<256x256xf32>
    %12 = arith.addf %9, %11 : vector<256x256xf32>
    %cst_10 = arith.constant 0.000000e+00 : f32
    %13 = vector.broadcast %cst_10 : f32 to vector<256x256xf32>
    %14 = arith.maximumf %12, %13 : vector<256x256xf32>
    %c0_11 = arith.constant 0 : index
    %c0_12 = arith.constant 0 : index
    %15 = vector.load %arg6[%c0_11, %c0_12] : memref<256x64xbf16, #tpu.memory_space<vmem>>, vector<256x64xbf16>
    %16 = arith.truncf %14 : vector<256x256xf32> to vector<256x256xbf16>
    %cst_13 = arith.constant dense<0.000000e+00> : vector<256x64xf32>
    %17 = tpu.matmul %16, %15, %cst_13 {dimension_numbers = #tpu.dot_dimension_numbers<[1], [0], [0], [1], [0, 0, 1, 1], [], []>} : vector<256x256xbf16>, vector<256x64xbf16>, vector<256x64xf32> -> vector<256x64xf32>
    %c0_14 = arith.constant 0 : index
    %c0_15 = arith.constant 0 : index
    %18 = vector.load %arg7[%c0_14, %c0_15] : memref<1x64xf32, #tpu.memory_space<vmem>>, vector<1x64xf32>
    %19 = vector.broadcast %18 : vector<1x64xf32> to vector<256x64xf32>
    %20 = arith.addf %17, %19 : vector<256x64xf32>
    %21 = vector.extract_strided_slice %20 {offsets = [0, 0], sizes = [256, 32], strides = [1, 1]} : vector<256x64xf32> to vector<256x32xf32>
    %22 = vector.extract_strided_slice %20 {offsets = [0, 32], sizes = [256, 32], strides = [1, 1]} : vector<256x64xf32> to vector<256x32xf32>
    %cst_16 = arith.constant 5.000000e-01 : f32
    %23 = vector.broadcast %cst_16 : f32 to vector<256x32xf32>
    %24 = arith.mulf %23, %22 : vector<256x32xf32>
    %25 = math.exp %24 : vector<256x32xf32>
    %26 = arith.mulf %6, %25 : vector<256x32xf32>
    %27 = arith.addf %21, %26 : vector<256x32xf32>
    %28 = tpu.concatenate %27, %4 in 1 : vector<256x32xf32>, vector<256x32xf32> -> vector<256x64xf32>
    %c0_17 = arith.constant 0 : index
    %c0_18 = arith.constant 0 : index
    %29 = vector.load %arg8[%c0_17, %c0_18] : memref<64x32xf32, #tpu.memory_space<vmem>>, vector<64x32xf32>
    %cst_19 = arith.constant dense<0.000000e+00> : vector<256x32xf32>
    %30 = tpu.matmul %28, %29, %cst_19 {dimension_numbers = #tpu.dot_dimension_numbers<[1], [0], [0], [1], [0, 0, 1, 1], [], []>} : vector<256x64xf32>, vector<64x32xf32>, vector<256x32xf32> -> vector<256x32xf32>
    %31 = vector.extract_strided_slice %30 {offsets = [0, 0], sizes = [16, 32], strides = [1, 1]} : vector<256x32xf32> to vector<16x32xf32>
    %32 = vector.extract_strided_slice %30 {offsets = [16, 0], sizes = [16, 32], strides = [1, 1]} : vector<256x32xf32> to vector<16x32xf32>
    %33 = vector.extract_strided_slice %30 {offsets = [32, 0], sizes = [16, 32], strides = [1, 1]} : vector<256x32xf32> to vector<16x32xf32>
    %34 = vector.extract_strided_slice %30 {offsets = [48, 0], sizes = [16, 32], strides = [1, 1]} : vector<256x32xf32> to vector<16x32xf32>
    %35 = vector.extract_strided_slice %30 {offsets = [64, 0], sizes = [16, 32], strides = [1, 1]} : vector<256x32xf32> to vector<16x32xf32>
    %36 = vector.extract_strided_slice %30 {offsets = [80, 0], sizes = [16, 32], strides = [1, 1]} : vector<256x32xf32> to vector<16x32xf32>
    %37 = vector.extract_strided_slice %30 {offsets = [96, 0], sizes = [16, 32], strides = [1, 1]} : vector<256x32xf32> to vector<16x32xf32>
    %38 = vector.extract_strided_slice %30 {offsets = [112, 0], sizes = [16, 32], strides = [1, 1]} : vector<256x32xf32> to vector<16x32xf32>
    %39 = vector.extract_strided_slice %30 {offsets = [128, 0], sizes = [16, 32], strides = [1, 1]} : vector<256x32xf32> to vector<16x32xf32>
    %40 = vector.extract_strided_slice %30 {offsets = [144, 0], sizes = [16, 32], strides = [1, 1]} : vector<256x32xf32> to vector<16x32xf32>
    %41 = vector.extract_strided_slice %30 {offsets = [160, 0], sizes = [16, 32], strides = [1, 1]} : vector<256x32xf32> to vector<16x32xf32>
    %42 = vector.extract_strided_slice %30 {offsets = [176, 0], sizes = [16, 32], strides = [1, 1]} : vector<256x32xf32> to vector<16x32xf32>
    %43 = vector.extract_strided_slice %30 {offsets = [192, 0], sizes = [16, 32], strides = [1, 1]} : vector<256x32xf32> to vector<16x32xf32>
    %44 = vector.extract_strided_slice %30 {offsets = [208, 0], sizes = [16, 32], strides = [1, 1]} : vector<256x32xf32> to vector<16x32xf32>
    %45 = vector.extract_strided_slice %30 {offsets = [224, 0], sizes = [16, 32], strides = [1, 1]} : vector<256x32xf32> to vector<16x32xf32>
    %46 = vector.extract_strided_slice %30 {offsets = [240, 0], sizes = [16, 32], strides = [1, 1]} : vector<256x32xf32> to vector<16x32xf32>
    %47 = tpu.concatenate %31, %32, %33, %34, %35, %36, %37, %38, %39, %40, %41, %42, %43, %44, %45, %46 in 1 : vector<16x32xf32>, vector<16x32xf32>, vector<16x32xf32>, vector<16x32xf32>, vector<16x32xf32>, vector<16x32xf32>, vector<16x32xf32>, vector<16x32xf32>, vector<16x32xf32>, vector<16x32xf32>, vector<16x32xf32>, vector<16x32xf32>, vector<16x32xf32>, vector<16x32xf32>, vector<16x32xf32>, vector<16x32xf32> -> vector<16x512xf32>
    %c0_20 = arith.constant 0 : index
    %c0_21 = arith.constant 0 : index
    %48 = vector.load %arg9[%c0_20, %c0_21] : memref<512x512xf32, #tpu.memory_space<vmem>>, vector<512x512xf32>
    %cst_22 = arith.constant dense<0.000000e+00> : vector<16x512xf32>
    %49 = tpu.matmul %47, %48, %cst_22 {dimension_numbers = #tpu.dot_dimension_numbers<[1], [0], [0], [1], [0, 0, 1, 1], [], []>} : vector<16x512xf32>, vector<512x512xf32>, vector<16x512xf32> -> vector<16x512xf32>
    %c0_23 = arith.constant 0 : index
    %c0_24 = arith.constant 0 : index
    %50 = vector.load %arg16[%c0_23, %c0_24] : memref<16x32xf32, #tpu.memory_space<vmem>>, vector<16x32xf32>
    %c0_25 = arith.constant 0 : index
    %c0_26 = arith.constant 0 : index
    %51 = vector.load %arg10[%c0_25, %c0_26] : memref<32x512xf32, #tpu.memory_space<vmem>>, vector<32x512xf32>
    %cst_27 = arith.constant dense<0.000000e+00> : vector<16x512xf32>
    %52 = tpu.matmul %50, %51, %cst_27 {dimension_numbers = #tpu.dot_dimension_numbers<[1], [0], [0], [1], [0, 0, 1, 1], [], []>} : vector<16x32xf32>, vector<32x512xf32>, vector<16x512xf32> -> vector<16x512xf32>
    %53 = arith.addf %49, %52 : vector<16x512xf32>
    %54 = vector.extract_strided_slice %53 {offsets = [0, 480], sizes = [16, 32], strides = [1, 1]} : vector<16x512xf32> to vector<16x32xf32>
    %c0_28 = arith.constant 0 : index
    %c0_29 = arith.constant 0 : index
    %55 = vector.load %arg16[%c0_28, %c0_29] : memref<16x32xf32, #tpu.memory_space<vmem>>, vector<16x32xf32>
    tpu.vector_store %arg16[%c0_28, %c0_29], %54 {strides = array<i32>} : memref<16x32xf32, #tpu.memory_space<vmem>>, vector<16x32xf32>,
    %56 = vector.extract_strided_slice %53 {offsets = [0, 0], sizes = [16, 32], strides = [1, 1]} : vector<16x512xf32> to vector<16x32xf32>
    %57 = vector.extract_strided_slice %53 {offsets = [0, 32], sizes = [16, 32], strides = [1, 1]} : vector<16x512xf32> to vector<16x32xf32>
    %58 = vector.extract_strided_slice %53 {offsets = [0, 64], sizes = [16, 32], strides = [1, 1]} : vector<16x512xf32> to vector<16x32xf32>
    %59 = vector.extract_strided_slice %53 {offsets = [0, 96], sizes = [16, 32], strides = [1, 1]} : vector<16x512xf32> to vector<16x32xf32>
    %60 = vector.extract_strided_slice %53 {offsets = [0, 128], sizes = [16, 32], strides = [1, 1]} : vector<16x512xf32> to vector<16x32xf32>
    %61 = vector.extract_strided_slice %53 {offsets = [0, 160], sizes = [16, 32], strides = [1, 1]} : vector<16x512xf32> to vector<16x32xf32>
    %62 = vector.extract_strided_slice %53 {offsets = [0, 192], sizes = [16, 32], strides = [1, 1]} : vector<16x512xf32> to vector<16x32xf32>
    %63 = vector.extract_strided_slice %53 {offsets = [0, 224], sizes = [16, 32], strides = [1, 1]} : vector<16x512xf32> to vector<16x32xf32>
    %64 = vector.extract_strided_slice %53 {offsets = [0, 256], sizes = [16, 32], strides = [1, 1]} : vector<16x512xf32> to vector<16x32xf32>
    %65 = vector.extract_strided_slice %53 {offsets = [0, 288], sizes = [16, 32], strides = [1, 1]} : vector<16x512xf32> to vector<16x32xf32>
    %66 = vector.extract_strided_slice %53 {offsets = [0, 320], sizes = [16, 32], strides = [1, 1]} : vector<16x512xf32> to vector<16x32xf32>
    %67 = vector.extract_strided_slice %53 {offsets = [0, 352], sizes = [16, 32], strides = [1, 1]} : vector<16x512xf32> to vector<16x32xf32>
    %68 = vector.extract_strided_slice %53 {offsets = [0, 384], sizes = [16, 32], strides = [1, 1]} : vector<16x512xf32> to vector<16x32xf32>
    %69 = vector.extract_strided_slice %53 {offsets = [0, 416], sizes = [16, 32], strides = [1, 1]} : vector<16x512xf32> to vector<16x32xf32>
    %70 = vector.extract_strided_slice %53 {offsets = [0, 448], sizes = [16, 32], strides = [1, 1]} : vector<16x512xf32> to vector<16x32xf32>
    %71 = vector.extract_strided_slice %53 {offsets = [0, 480], sizes = [16, 32], strides = [1, 1]} : vector<16x512xf32> to vector<16x32xf32>
    %72 = tpu.concatenate %56, %57, %58, %59, %60, %61, %62, %63, %64, %65, %66, %67, %68, %69, %70, %71 in 0 : vector<16x32xf32>, vector<16x32xf32>, vector<16x32xf32>, vector<16x32xf32>, vector<16x32xf32>, vector<16x32xf32>, vector<16x32xf32>, vector<16x32xf32>, vector<16x32xf32>, vector<16x32xf32>, vector<16x32xf32>, vector<16x32xf32>, vector<16x32xf32>, vector<16x32xf32>, vector<16x32xf32>, vector<16x32xf32> -> vector<256x32xf32>
    %c0_30 = arith.constant 0 : index
    %c0_31 = arith.constant 0 : index
    %73 = vector.load %arg11[%c0_30, %c0_31] : memref<32x256xbf16, #tpu.memory_space<vmem>>, vector<32x256xbf16>
    %74 = arith.truncf %72 : vector<256x32xf32> to vector<256x32xbf16>
    %cst_32 = arith.constant dense<0.000000e+00> : vector<256x256xf32>
    %75 = tpu.matmul %74, %73, %cst_32 {dimension_numbers = #tpu.dot_dimension_numbers<[1], [0], [0], [1], [0, 0, 1, 1], [], []>} : vector<256x32xbf16>, vector<32x256xbf16>, vector<256x256xf32> -> vector<256x256xf32>
    %c0_33 = arith.constant 0 : index
    %c0_34 = arith.constant 0 : index
    %76 = vector.load %arg12[%c0_33, %c0_34] : memref<1x256xf32, #tpu.memory_space<vmem>>, vector<1x256xf32>
    %77 = vector.broadcast %76 : vector<1x256xf32> to vector<256x256xf32>
    %78 = arith.addf %75, %77 : vector<256x256xf32>
    %cst_35 = arith.constant 0.000000e+00 : f32
    %79 = vector.broadcast %cst_35 : f32 to vector<256x256xf32>
    %80 = arith.maximumf %78, %79 : vector<256x256xf32>
    %c0_36 = arith.constant 0 : index
    %c0_37 = arith.constant 0 : index
    %81 = vector.load %arg13[%c0_36, %c0_37] : memref<256x32xbf16, #tpu.memory_space<vmem>>, vector<256x32xbf16>
    %82 = arith.truncf %80 : vector<256x256xf32> to vector<256x256xbf16>
    %cst_38 = arith.constant dense<0.000000e+00> : vector<256x32xf32>
    %83 = tpu.matmul %82, %81, %cst_38 {dimension_numbers = #tpu.dot_dimension_numbers<[1], [0], [0], [1], [0, 0, 1, 1], [], []>} : vector<256x256xbf16>, vector<256x32xbf16>, vector<256x32xf32> -> vector<256x32xf32>
    %c0_39 = arith.constant 0 : index
    %c0_40 = arith.constant 0 : index
    %84 = vector.load %arg14[%c0_39, %c0_40] : memref<1x32xf32, #tpu.memory_space<vmem>>, vector<1x32xf32>
    %85 = vector.broadcast %84 : vector<1x32xf32> to vector<256x32xf32>
    %86 = arith.addf %83, %85 : vector<256x32xf32>
    %cst_41 = arith.constant 0.000000e+00 : f32
    %87 = vector.broadcast %cst_41 : f32 to vector<256x32xf32>
    %88 = tpu.concatenate %86, %20, %87 in 1 : vector<256x32xf32>, vector<256x64xf32>, vector<256x32xf32> -> vector<256x128xf32>
    %c0_42 = arith.constant 0 : index
    %c0_43 = arith.constant 0 : index
    %c0_44 = arith.constant 0 : index
    %89 = vector.load %arg15[%c0_42, %c0_43, %c0_44] : memref<1x256x128xf32, #tpu.memory_space<vmem>>, vector<1x256x128xf32>
    %90 = vector.shape_cast %89 : vector<1x256x128xf32> to vector<256x128xf32>
    %91 = vector.shape_cast %88 : vector<256x128xf32> to vector<1x256x128xf32>
    tpu.vector_store %arg15[%c0_42, %c0_43, %c0_44], %91 {strides = array<i32>} : memref<1x256x128xf32, #tpu.memory_space<vmem>>, vector<1x256x128xf32>,
    return
  }
  func.func @transform_0(%arg0: i32, %arg1: i32) -> (i32, i32, i32) {
    %c0_i32 = arith.constant 0 : i32
    %c0_i32_0 = arith.constant 0 : i32
    return %arg0, %arg1, %c0_i32 : i32, i32, i32
  }
  func.func @transform_1(%arg0: i32, %arg1: i32) -> (i32, i32, i32) {
    %c0_i32 = arith.constant 0 : i32
    %c0_i32_0 = arith.constant 0 : i32
    return %arg0, %arg1, %c0_i32 : i32, i32, i32
  }
  func.func @transform_2(%arg0: i32, %arg1: i32) -> (i32, i32) {
    %c0_i32 = arith.constant 0 : i32
    %c0_i32_0 = arith.constant 0 : i32
    %c0_i32_1 = arith.constant 0 : i32
    return %c0_i32, %c0_i32_0 : i32, i32
  }
  func.func @transform_3(%arg0: i32, %arg1: i32) -> (i32, i32) {
    %c0_i32 = arith.constant 0 : i32
    %c0_i32_0 = arith.constant 0 : i32
    %c0_i32_1 = arith.constant 0 : i32
    return %c0_i32, %c0_i32_0 : i32, i32
  }
  func.func @transform_4(%arg0: i32, %arg1: i32) -> (i32, i32) {
    %c0_i32 = arith.constant 0 : i32
    %c0_i32_0 = arith.constant 0 : i32
    %c0_i32_1 = arith.constant 0 : i32
    return %c0_i32, %c0_i32_0 : i32, i32
  }
  func.func @transform_5(%arg0: i32, %arg1: i32) -> (i32, i32) {
    %c0_i32 = arith.constant 0 : i32
    %c0_i32_0 = arith.constant 0 : i32
    %c0_i32_1 = arith.constant 0 : i32
    return %c0_i32, %c0_i32_0 : i32, i32
  }
  func.func @transform_6(%arg0: i32, %arg1: i32) -> (i32, i32) {
    %c0_i32 = arith.constant 0 : i32
    %c0_i32_0 = arith.constant 0 : i32
    %c0_i32_1 = arith.constant 0 : i32
    return %c0_i32, %c0_i32_0 : i32, i32
  }
  func.func @transform_7(%arg0: i32, %arg1: i32) -> (i32, i32) {
    %c0_i32 = arith.constant 0 : i32
    %c0_i32_0 = arith.constant 0 : i32
    %c0_i32_1 = arith.constant 0 : i32
    return %c0_i32, %c0_i32_0 : i32, i32
  }
  func.func @transform_8(%arg0: i32, %arg1: i32) -> (i32, i32) {
    %c0_i32 = arith.constant 0 : i32
    %c0_i32_0 = arith.constant 0 : i32
    %c0_i32_1 = arith.constant 0 : i32
    return %c0_i32, %c0_i32_0 : i32, i32
  }
  func.func @transform_9(%arg0: i32, %arg1: i32) -> (i32, i32) {
    %c0_i32 = arith.constant 0 : i32
    %c0_i32_0 = arith.constant 0 : i32
    %c0_i32_1 = arith.constant 0 : i32
    return %c0_i32, %c0_i32_0 : i32, i32
  }
  func.func @transform_10(%arg0: i32, %arg1: i32) -> (i32, i32) {
    %c0_i32 = arith.constant 0 : i32
    %c0_i32_0 = arith.constant 0 : i32
    %c0_i32_1 = arith.constant 0 : i32
    return %c0_i32, %c0_i32_0 : i32, i32
  }
  func.func @transform_11(%arg0: i32, %arg1: i32) -> (i32, i32) {
    %c0_i32 = arith.constant 0 : i32
    %c0_i32_0 = arith.constant 0 : i32
    %c0_i32_1 = arith.constant 0 : i32
    return %c0_i32, %c0_i32_0 : i32, i32
  }
  func.func @transform_12(%arg0: i32, %arg1: i32) -> (i32, i32) {
    %c0_i32 = arith.constant 0 : i32
    %c0_i32_0 = arith.constant 0 : i32
    %c0_i32_1 = arith.constant 0 : i32
    return %c0_i32, %c0_i32_0 : i32, i32
  }
  func.func @transform_13(%arg0: i32, %arg1: i32) -> (i32, i32, i32) {
    %c0_i32 = arith.constant 0 : i32
    %c0_i32_0 = arith.constant 0 : i32
    return %arg0, %arg1, %c0_i32 : i32, i32, i32
  }
}

</mosaic_0001>

<llo_original>
// kernel: custom-call.11
$region0: #{custom-call.11}
  %s0 = inlined_call_operand.vmem [shape: f32[32,32], index: 0, kind: input, shape index: {}]
  %s1 = inlined_call_operand.vmem [shape: f32[32,32], index: 1, kind: output, shape index: {0}]
  %s2 = inlined_call_operand.hbm [shape: s32[32], index: 2, kind: output, shape index: {1}]
  %s3 = inlined_call_operand.vmem [shape: s32[32], index: 3, kind: output, shape index: {2}]
  %4 = xla_tuple %s1, %s2, %s3
  $region1: #{custom-call.11} parent=0
    #allocation0 [shape = 'u8[16384]{0}', space=vmem, size = 0x4000, scoped, tag = 'operand span for operand 0']
    #allocation1 [shape = 'u8[16384]{0}', space=vmem, size = 0x4000, scoped, tag = 'operand span for operand 1']
    #allocation2 [shape = 'u8[4096]{0}', space=vmem, size = 0x1000, scoped, tag = 'operand span for operand 2']
    #allocation3 [shape = 'u8[512]{0}', space=vmem, size = 0x400, scoped, tag = 'packed  for operand 2']
    #allocation4 [shape = 's32[1]{0}', space=sflag, size = 0x4, scoped, tag = 'scoped memory for custom-call.11']
    #allocation5 [shape = 'u8[4096]{0}', space=vmem, size = 0x1000, scoped, tag = 'operand span for operand 3']
    #allocation6 [shape = 'u8[512]{0}', space=vmem, size = 0x400, scoped, tag = 'packed  for operand 3']
    #allocation7 [shape = 's32[32,128]{1,0}', space=vmem, size = 0x4000, scoped, tag = 'scratch for permutations']
    %5 = vsyncpa [#allocation4], 0
    %p7 = scmp.gt.s32.totalorder 32, 0
    // Predicated region
    $region2: #{custom-call.11} parent=1 // pred_check
      %p8 = pneg %p7
    $region3: #{custom-call.11} parent=1 // pred_check_branch
      %10 = sbr.rel (%p8) target = $region5
    $region4: #{custom-call.11} parent=1 // pred_region
      %s11 = sshra.s32 32, 3
      %p12 = scmp.gt.s32.totalorder %s11, 0
      // Predicated region
      $region6: #{custom-call.11} parent=4 // pred_check
        %p13 = pneg %p12
      $region7: #{custom-call.11} parent=4 // pred_check_branch
        %15 = sbr.rel (%p13) target = $region9
      $region8: #{custom-call.11} parent=4 // pred_region
        %s16 = ssub.s32 %s11, 1
        %s17 = smul.u32 %s16, 128
        %s18 = sshra.s32 %s17, 4
        %s19 = scalar_lea.vmem %s0, %s18
        %v20 = vld [vmem:[%s0] sm:$0xff]
        // While loop
        $region10: #{custom-call.11} parent=8 // loop_pre_header
          _
        $region11: #{custom-call.11} parent=8 // loop_header
          %s21 = sphi %s0, %s43
          %s22 = sphi [#allocation0], %s44
          %v23 = vphi %v20, %v45
          %s24 = ssub.s32 %s19, 64
          %p25 = scmp.gt.s32.totalorder %s21, %s24
        $region12: #{custom-call.11} parent=8 // loop_header_branch
          %27 = sbr.rel (%p25) target = $region16
        $region13: #{custom-call.11} parent=8 // loop_body
          %28 = vst [vmem:[%s22] sm:$0xff] %v23
          %v29 = vld [vmem:[%s21 + $0x8] sm:$0xff]
          %30 = vst [vmem:[%s22 + $0x8] sm:$0xff] %v29
          %v31 = vld [vmem:[%s21 + $0x10] sm:$0xff]
          %32 = vst [vmem:[%s22 + $0x10] sm:$0xff] %v31
          %v33 = vld [vmem:[%s21 + $0x18] sm:$0xff]
          %34 = vst [vmem:[%s22 + $0x18] sm:$0xff] %v33
          %v35 = vld [vmem:[%s21 + $0x20] sm:$0xff]
          %36 = vst [vmem:[%s22 + $0x20] sm:$0xff] %v35
          %v37 = vld [vmem:[%s21 + $0x28] sm:$0xff]
          %38 = vst [vmem:[%s22 + $0x28] sm:$0xff] %v37
          %v39 = vld [vmem:[%s21 + $0x30] sm:$0xff]
          %40 = vst [vmem:[%s22 + $0x30] sm:$0xff] %v39
          %v41 = vld [vmem:[%s21 + $0x38] sm:$0xff]
          %42 = vst [vmem:[%s22 + $0x38] sm:$0xff] %v41
        $region14: #{custom-call.11} parent=8 // loop_footer
          %s43 = scalar_lea.vmem %s21, 64
          %s44 = scalar_lea.vmem %s22, 64
          %v45 = vld [vmem:[%s21 + $0x40] sm:$0xff]
        $region15: #{custom-call.11} parent=8 // loop_footer_branch
          %46 = sbr.rel target = $region11
        $region16: #{custom-call.11} parent=8 // loop_exit
          _
        // While loop
        $region17: #{custom-call.11} parent=8 // loop_pre_header
          _
        $region18: #{custom-call.11} parent=8 // loop_header
          %s47 = sphi %s21, %s55
          %s48 = sphi %s22, %s56
          %v49 = vphi %v23, %v49
          %p50 = scmp.gt.s32.totalorder %s47, %s19
        $region19: #{custom-call.11} parent=8 // loop_header_branch
          %52 = sbr.rel (%p50) target = $region23
        $region20: #{custom-call.11} parent=8 // loop_body
          %v53 = vld [vmem:[%s47] sm:$0xff]
          %54 = vst [vmem:[%s48] sm:$0xff] %v53
        $region21: #{custom-call.11} parent=8 // loop_footer
          %s55 = scalar_lea.vmem %s47, 8
          %s56 = scalar_lea.vmem %s48, 8
        $region22: #{custom-call.11} parent=8 // loop_footer_branch
          %57 = sbr.rel target = $region18
        $region23: #{custom-call.11} parent=8 // loop_exit
          _
      $region9: #{custom-call.11} parent=4 // pred_fallthru
        _
      %s58 = sand.u32 32, 7
      %s59 = sshll.u32 1, %s58
      %s60 = ssub.s32 %s59, 1
      %s61 = smul.u32 %s11, 128
      %s62 = sshra.s32 %s61, 4
      %s63 = scalar_lea.vmem [#allocation0], %s62
      %s64 = smul.u32 %s11, 128
      %s65 = sshra.s32 %s64, 4
      %s66 = scalar_lea.vmem %s0, %s65
      %v67 = vld [vmem:[%s66] sm:%s60]
      %68 = vst [vmem:[%s63] sm:%s60] %v67
    $region5: #{custom-call.11} parent=1 // pred_fallthru
      _
    %v69 = vld [vmem:[#allocation0] sm:$0xff]
    %70 = vst [vmem:[#allocation1] sm:$0xff] %v69
    %s71 = scalar_lea.vmem [#allocation1], 8
    %s72 = scalar_lea.vmem [#allocation0], 8
    %v73 = vld [vmem:[%s72] sm:$0xff]
    %74 = vst [vmem:[%s71] sm:$0xff] %v73
    %s75 = scalar_lea.vmem [#allocation1], 16
    %s76 = scalar_lea.vmem [#allocation0], 16
    %v77 = vld [vmem:[%s76] sm:$0xff]
    %78 = vst [vmem:[%s75] sm:$0xff] %v77
    %s79 = scalar_lea.vmem [#allocation1], 24
    %s80 = scalar_lea.vmem [#allocation0], 24
    %v81 = vld [vmem:[%s80] sm:$0xff]
    %82 = vst [vmem:[%s79] sm:$0xff] %v81
    %83 = vst [vmem:[#allocation2] sm:$0x1] 0
    %v84 = vlaneseq
    %v85 = vshrl.u32 %v84, 7
    %v86 = vmov %v85
    loop: start=0, step=1, limit=4
    $region24: #{custom-call.11} parent=1 // loop_pre_header
      _
    $region25: #{custom-call.11} parent=1 // loop_header
      %s88 = sphi 0, %s92
      %p89 = scmp.ge.s32.totalorder %s88, 4
    $region26: #{custom-call.11} parent=1 // loop_header_branch
      %91 = sbr.rel (%p89) target = $region30
    $region27: #{custom-call.11} parent=1 // loop_body
      %s93 = smul.addr %s88, 8
      %s94 = scalar_lea.vmem [#allocation7], %s93
      %s95 = smul.u32 %s88, 8
      %v96 = vstv %s95
      %v97 = vadd.s32 %v86, %v96
      %98 = vst [vmem:[%s94] sm:$0xff] %v97
    $region28: #{custom-call.11} parent=1 // loop_footer
      %s92 = sadd.s32 1, %s88
    $region29: #{custom-call.11} parent=1 // loop_footer_branch
      %87 = sbr.rel target = $region25
    $region30: #{custom-call.11} parent=1 // loop_exit
      _
    loop: start=0, step=1, limit=32
    $region31: #{custom-call.11} parent=1 // loop_pre_header
      _
    $region32: #{custom-call.11} parent=1 // loop_header
      %s100 = sphi 0, %s104
      %p101 = scmp.ge.s32.totalorder %s100, 32
    $region33: #{custom-call.11} parent=1 // loop_header_branch
      %103 = sbr.rel (%p101) target = $region37
    $region34: #{custom-call.11} parent=1 // loop_body
      %v105 = vstv %s100
      %v106 = vlaneseq
      %v107 = vshrl.u32 %v106, 7
      %v108 = vmov %v107
      %v109 = vld [vmem:[#allocation1] sm:$0xff]
      %v110 = vand.u32 2147483647, %v109
      %v112 = vstv %s100
      %vm113 = vcmp.ge.s32.totalorder %v108, %v112
      %vm114 = vcmp.lt.s32.totalorder %v108, 32
      %vm115 = vmand %vm113, %vm114
      %vm116 = vcmp.lt.f32.partialorder -inf, %v110
      %vm117 = vmand %vm115, %vm116
      %v118 = vsel %vm117, %v108, %v105
      %v119 = vsel %vm117, %v110, -inf
      %s120 = scalar_lea.vmem [#allocation1], 8
      %v121 = vld [vmem:[%s120] sm:$0xff]
      %v122 = vand.u32 2147483647, %v121
      %v123 = vadd.s32 %v108, 8
      %v124 = vstv %s100
      %vm125 = vcmp.ge.s32.totalorder %v123, %v124
      %vm126 = vcmp.lt.s32.totalorder %v123, 32
      %vm127 = vmand %vm125, %vm126
      %vm128 = vcmp.lt.f32.partialorder %v119, %v122
      %vm129 = vmand %vm127, %vm128
      %v130 = vsel %vm129, %v123, %v118
      %v131 = vsel %vm129, %v122, %v119
      %s132 = scalar_lea.vmem [#allocation1], 16
      %v133 = vld [vmem:[%s132] sm:$0xff]
      %v134 = vand.u32 2147483647, %v133
      %v135 = vadd.s32 %v108, 16
      %v136 = vstv %s100
      %vm137 = vcmp.ge.s32.totalorder %v135, %v136
      %vm138 = vcmp.lt.s32.totalorder %v135, 32
      %vm139 = vmand %vm137, %vm138
      %vm140 = vcmp.lt.f32.partialorder %v131, %v134
      %vm141 = vmand %vm139, %vm140
      %v142 = vsel %vm141, %v135, %v130
      %v143 = vsel %vm141, %v134, %v131
      %s144 = scalar_lea.vmem [#allocation1], 24
      %v145 = vld [vmem:[%s144] sm:$0xff]
      %v146 = vand.u32 2147483647, %v145
      %v147 = vadd.s32 %v108, 24
      %v148 = vstv %s100
      %vm149 = vcmp.ge.s32.totalorder %v147, %v148
      %vm150 = vcmp.lt.s32.totalorder %v147, 32
      %vm151 = vmand %vm149, %vm150
      %vm152 = vcmp.lt.f32.partialorder %v143, %v146
      %vm153 = vmand %vm151, %vm152
      %v154 = vsel %vm153, %v147, %v142
      %v155 = vsel %vm153, %v146, %v143
      %v156 = vrot.slane %v155, 1
      %v157 = vrot.slane %v154, 1
      %vm158 = vcmp.ge.f32.partialorder %v156, %v155
      %v159 = vsel %vm158, %v156, %v155
      %v160 = vsel %vm158, %v157, %v154
      %v161 = vrot.slane %v156, 1
      %v162 = vrot.slane %v157, 1
      %vm163 = vcmp.ge.f32.partialorder %v161, %v159
      %v164 = vsel %vm163, %v161, %v159
      %v165 = vsel %vm163, %v162, %v160
      %v166 = vrot.slane %v161, 1
      %v167 = vrot.slane %v162, 1
      %vm168 = vcmp.ge.f32.partialorder %v166, %v164
      %v169 = vsel %vm168, %v166, %v164
      %v170 = vsel %vm168, %v167, %v165
      %v171 = vrot.slane %v166, 1
      %v172 = vrot.slane %v167, 1
      %vm173 = vcmp.ge.f32.partialorder %v171, %v169
      %v174 = vsel %vm173, %v171, %v169
      %v175 = vsel %vm173, %v172, %v170
      %v176 = vrot.slane %v171, 1
      %v177 = vrot.slane %v172, 1
      %vm178 = vcmp.ge.f32.partialorder %v176, %v174
      %v179 = vsel %vm178, %v176, %v174
      %v180 = vsel %vm178, %v177, %v175
      %v181 = vrot.slane %v176, 1
      %v182 = vrot.slane %v177, 1
      %vm183 = vcmp.ge.f32.partialorder %v181, %v179
      %v184 = vsel %vm183, %v181, %v179
      %v185 = vsel %vm183, %v182, %v180
      %v186 = vrot.slane %v181, 1
      %v187 = vrot.slane %v182, 1
      %vm188 = vcmp.ge.f32.partialorder %v186, %v184
      %v189 = vsel %vm188, %v186, %v184
      %v190 = vsel %vm188, %v187, %v185
      %s191 = ssub.s32 128, %s100
      %192 = vrot.lane.b32.xlu0 %v190, %s191
      %v193 = vpop.permute.xlu0 %192
      %s194 = vtos %v193
      %v195 = vstv %s100
      %v196 = vlaneseq
      %v197 = vand.u32 %v196, 127
      %vm198 = vcmp.eq.s32.totalorder %v197, %v195
      %v199 = vstv %s194
      %v200 = vld [vmem:[#allocation2] ss:$0 sm:$0xff]
      %v201 = vsel %vm198, %v199, %v200
      %202 = vst [vmem:[#allocation2] sm:$0x1] %v201
      %s203 = scalar_lea.vmem [#allocation1], %s100
      %s204 = scalar_lea.vmem [#allocation1], %s194
      %v205 = vld [vmem:[%s203] ss:$0 sm:$0xff]
      %v206 = vld [vmem:[%s204] ss:$0 sm:$0xff]
      %207 = vst [vmem:[%s204] sm:$0x1] %v205
      %208 = vst [vmem:[%s203] sm:$0x1] %v206
      %s209 = scalar_lea.vmem [#allocation7], %s100
      %s210 = scalar_lea.vmem [#allocation7], %s194
      %v211 = vld [vmem:[%s209] ss:$0 sm:$0xff]
      %v212 = vld [vmem:[%s210] ss:$0 sm:$0xff]
      %213 = vst [vmem:[%s210] sm:$0x1] %v211
      %214 = vst [vmem:[%s209] sm:$0x1] %v212
      %vm215 = vcmp.ne.f32.partialorder %v206, 0.0
      %vm216 = vmand %vm198, %vm215
      %v217 = vsel %vm216, %v206, 1.0
      %v218 = vlaneseq
      %v219 = vand.u32 %v218, 127
      %v220 = vstv %s100
      %vm221 = vcmp.gt.s32.totalorder %v219, %v220
      %v222 = vsel %vm221, %v206, 0.0
      %v223 = vlaneseq
      %v224 = vshrl.u32 %v223, 7
      %v225 = vmov %v224
      %v226 = vld [vmem:[#allocation1] sm:$0xff]
      %v228 = vstv %s100
      %vm229 = vcmp.gt.s32.totalorder %v225, %v228
      %v230 = vsel %vm229, %v217, 1.0
      %v231 = vrcp.pop %v230
      %v232 = vmul.f32 %v226, %v231
      %vm233 = vmand %vm229, %vm198
      %v234 = vsel %vm233, %v232, 0.0
      %235 = vadd.xlane.f32.xlu0 %v234
      %v236 = vpop.xlane.xlu0 %235
      %v237 = vmul.f32 %v236, %v222
      %v238 = vsub.f32 %v232, %v237
      %239 = vst [vmem:[#allocation1] sm:$0xff] %v238
      %s240 = scalar_lea.vmem [#allocation1], 8
      %v241 = vld [vmem:[%s240] sm:$0xff]
      %v242 = vadd.s32 %v225, 8
      %v243 = vstv %s100
      %vm244 = vcmp.gt.s32.totalorder %v242, %v243
      %v245 = vsel %vm244, %v217, 1.0
      %v246 = vrcp.pop %v245
      %v247 = vmul.f32 %v241, %v246
      %vm248 = vmand %vm244, %vm198
      %v249 = vsel %vm248, %v247, 0.0
      %250 = vadd.xlane.f32.xlu0 %v249
      %v251 = vpop.xlane.xlu0 %250
      %v252 = vmul.f32 %v251, %v222
      %v253 = vsub.f32 %v247, %v252
      %254 = vst [vmem:[%s240] sm:$0xff] %v253
      %s255 = scalar_lea.vmem [#allocation1], 16
      %v256 = vld [vmem:[%s255] sm:$0xff]
      %v257 = vadd.s32 %v225, 16
      %v258 = vstv %s100
      %vm259 = vcmp.gt.s32.totalorder %v257, %v258
      %v260 = vsel %vm259, %v217, 1.0
      %v261 = vrcp.pop %v260
      %v262 = vmul.f32 %v256, %v261
      %vm263 = vmand %vm259, %vm198
      %v264 = vsel %vm263, %v262, 0.0
      %265 = vadd.xlane.f32.xlu0 %v264
      %v266 = vpop.xlane.xlu0 %265
      %v267 = vmul.f32 %v266, %v222
      %v268 = vsub.f32 %v262, %v267
      %269 = vst [vmem:[%s255] sm:$0xff] %v268
      %s270 = scalar_lea.vmem [#allocation1], 24
      %v271 = vld [vmem:[%s270] sm:$0xff]
      %v272 = vadd.s32 %v225, 24
      %v273 = vstv %s100
      %vm274 = vcmp.gt.s32.totalorder %v272, %v273
      %v275 = vsel %vm274, %v217, 1.0
      %v276 = vrcp.pop %v275
      %v277 = vmul.f32 %v271, %v276
      %vm278 = vmand %vm274, %vm198
      %v279 = vsel %vm278, %v277, 0.0
      %280 = vadd.xlane.f32.xlu0 %v279
      %v281 = vpop.xlane.xlu0 %280
      %v282 = vmul.f32 %v281, %v222
      %v283 = vsub.f32 %v277, %v282
      %284 = vst [vmem:[%s270] sm:$0xff] %v283
    $region35: #{custom-call.11} parent=1 // loop_footer
      %s104 = sadd.s32 1, %s100
    $region36: #{custom-call.11} parent=1 // loop_footer_branch
      %99 = sbr.rel target = $region32
    $region37: #{custom-call.11} parent=1 // loop_exit
      _
    %v285 = vld [vmem:[#allocation7] sm:$0xff]
    %s286 = scalar_lea.vmem [#allocation7], 8
    %v287 = vld [vmem:[%s286] sm:$0xff]
    %s288 = scalar_lea.vmem [#allocation7], 16
    %v289 = vld [vmem:[%s288] sm:$0xff]
    %s290 = scalar_lea.vmem [#allocation7], 24
    %v291 = vld [vmem:[%s290] sm:$0xff]
    %s292 = scalar_lea.vmem [#allocation7], 32
    %s293 = scalar_lea.vmem [#allocation7], 40
    %s294 = scalar_lea.vmem [#allocation7], 48
    %s295 = scalar_lea.vmem [#allocation7], 56
    %s296 = scalar_lea.vmem [#allocation7], 64
    %s297 = scalar_lea.vmem [#allocation7], 72
    %s298 = scalar_lea.vmem [#allocation7], 80
    %s299 = scalar_lea.vmem [#allocation7], 88
    %s300 = scalar_lea.vmem [#allocation7], 96
    %s301 = scalar_lea.vmem [#allocation7], 104
    %s302 = scalar_lea.vmem [#allocation7], 112
    %s303 = scalar_lea.vmem [#allocation7], 120
    %304 = vxpose.xlu0.b32.start [1/16] %v285, 128
    %305 = vxpose.xlu0.b32.cont [2/16] %v287, 128
    %306 = vxpose.xlu0.b32.cont [3/16] %v289, 128
    %307 = vxpose.xlu0.b32.cont [4/16] %v291, 128
    %308 = vxpose.xlu0.b32.cont [5/16] 0, 128
    %309 = vxpose.xlu0.b32.cont [6/16] 0, 128
    %310 = vxpose.xlu0.b32.cont [7/16] 0, 128
    %311 = vxpose.xlu0.b32.cont [8/16] 0, 128
    %312 = vxpose.xlu0.b32.cont [9/16] 0, 128
    %313 = vxpose.xlu0.b32.cont [10/16] 0, 128
    %314 = vxpose.xlu0.b32.cont [11/16] 0, 128
    %315 = vxpose.xlu0.b32.cont [12/16] 0, 128
    %316 = vxpose.xlu0.b32.cont [13/16] 0, 128
    %317 = vxpose.xlu0.b32.cont [14/16] 0, 128
    %318 = vxpose.xlu0.b32.cont [15/16] 0, 128
    %319 = vxpose.xlu0.b32.end [16/16] 0, 128
    %v320 = vpop.trf.xlu0
    %v321 = vpop.trf.xlu0
    %v322 = vpop.trf.xlu0
    %v323 = vpop.trf.xlu0
    %v324 = vpop.trf.xlu0
    %v325 = vpop.trf.xlu0
    %v326 = vpop.trf.xlu0
    %v327 = vpop.trf.xlu0
    %v328 = vpop.trf.xlu0
    %v329 = vpop.trf.xlu0
    %v330 = vpop.trf.xlu0
    %v331 = vpop.trf.xlu0
    %v332 = vpop.trf.xlu0
    %v333 = vpop.trf.xlu0
    %v334 = vpop.trf.xlu0
    %v335 = vpop.trf.xlu0
    %336 = vst [vmem:[#allocation5] sm:$0x1] %v320
    %s338 = sshll.u32 1, 1
    %s339 = ssub.s32 %s338, 1
    %v341 = vld [vmem:[#allocation2] sm:%s339]
    %s342 = sshll.u32 1, 1
    %s343 = ssub.s32 %s342, 1
    %344 = vst [vmem:[#allocation3] sm:%s343] %v341
    %s346 = sshll.u32 1, 1
    %s347 = ssub.s32 %s346, 1
    %v349 = vld [vmem:[#allocation5] sm:%s347]
    %s350 = sshll.u32 1, 1
    %s351 = ssub.s32 %s350, 1
    %352 = vst [vmem:[#allocation6] sm:%s351] %v349
    %p354 = scmp.gt.s32.totalorder 32, 0
    // Predicated region
    $region38: #{custom-call.11} parent=1 // pred_check
      %p355 = pneg %p354
    $region39: #{custom-call.11} parent=1 // pred_check_branch
      %357 = sbr.rel (%p355) target = $region41
    $region40: #{custom-call.11} parent=1 // pred_region
      %s358 = sshra.s32 32, 3
      %p359 = scmp.gt.s32.totalorder %s358, 0
      // Predicated region
      $region42: #{custom-call.11} parent=40 // pred_check
        %p360 = pneg %p359
      $region43: #{custom-call.11} parent=40 // pred_check_branch
        %362 = sbr.rel (%p360) target = $region45
      $region44: #{custom-call.11} parent=40 // pred_region
        %s363 = ssub.s32 %s358, 1
        %s364 = smul.u32 %s363, 128
        %s365 = sshra.s32 %s364, 4
        %s366 = scalar_lea.vmem [#allocation1], %s365
        %v367 = vld [vmem:[#allocation1] sm:$0xff]
        // While loop
        $region46: #{custom-call.11} parent=44 // loop_pre_header
          _
        $region47: #{custom-call.11} parent=44 // loop_header
          %s368 = sphi [#allocation1], %s390
          %s369 = sphi %s1, %s391
          %v370 = vphi %v367, %v392
          %s371 = ssub.s32 %s366, 64
          %p372 = scmp.gt.s32.totalorder %s368, %s371
        $region48: #{custom-call.11} parent=44 // loop_header_branch
          %374 = sbr.rel (%p372) target = $region52
        $region49: #{custom-call.11} parent=44 // loop_body
          %375 = vst [vmem:[%s369] sm:$0xff] %v370
          %v376 = vld [vmem:[%s368 + $0x8] sm:$0xff]
          %377 = vst [vmem:[%s369 + $0x8] sm:$0xff] %v376
          %v378 = vld [vmem:[%s368 + $0x10] sm:$0xff]
          %379 = vst [vmem:[%s369 + $0x10] sm:$0xff] %v378
          %v380 = vld [vmem:[%s368 + $0x18] sm:$0xff]
          %381 = vst [vmem:[%s369 + $0x18] sm:$0xff] %v380
          %v382 = vld [vmem:[%s368 + $0x20] sm:$0xff]
          %383 = vst [vmem:[%s369 + $0x20] sm:$0xff] %v382
          %v384 = vld [vmem:[%s368 + $0x28] sm:$0xff]
          %385 = vst [vmem:[%s369 + $0x28] sm:$0xff] %v384
          %v386 = vld [vmem:[%s368 + $0x30] sm:$0xff]
          %387 = vst [vmem:[%s369 + $0x30] sm:$0xff] %v386
          %v388 = vld [vmem:[%s368 + $0x38] sm:$0xff]
          %389 = vst [vmem:[%s369 + $0x38] sm:$0xff] %v388
        $region50: #{custom-call.11} parent=44 // loop_footer
          %s390 = scalar_lea.vmem %s368, 64
          %s391 = scalar_lea.vmem %s369, 64
          %v392 = vld [vmem:[%s368 + $0x40] sm:$0xff]
        $region51: #{custom-call.11} parent=44 // loop_footer_branch
          %393 = sbr.rel target = $region47
        $region52: #{custom-call.11} parent=44 // loop_exit
          _
        // While loop
        $region53: #{custom-call.11} parent=44 // loop_pre_header
          _
        $region54: #{custom-call.11} parent=44 // loop_header
          %s394 = sphi %s368, %s402
          %s395 = sphi %s369, %s403
          %v396 = vphi %v370, %v396
          %p397 = scmp.gt.s32.totalorder %s394, %s366
        $region55: #{custom-call.11} parent=44 // loop_header_branch
          %399 = sbr.rel (%p397) target = $region59
        $region56: #{custom-call.11} parent=44 // loop_body
          %v400 = vld [vmem:[%s394] sm:$0xff]
          %401 = vst [vmem:[%s395] sm:$0xff] %v400
        $region57: #{custom-call.11} parent=44 // loop_footer
          %s402 = scalar_lea.vmem %s394, 8
          %s403 = scalar_lea.vmem %s395, 8
        $region58: #{custom-call.11} parent=44 // loop_footer_branch
          %404 = sbr.rel target = $region54
        $region59: #{custom-call.11} parent=44 // loop_exit
          _
      $region45: #{custom-call.11} parent=40 // pred_fallthru
        _
      %s405 = sand.u32 32, 7
      %s406 = sshll.u32 1, %s405
      %s407 = ssub.s32 %s406, 1
      %s408 = smul.u32 %s358, 128
      %s409 = sshra.s32 %s408, 4
      %s410 = scalar_lea.vmem %s1, %s409
      %s411 = smul.u32 %s358, 128
      %s412 = sshra.s32 %s411, 4
      %s413 = scalar_lea.vmem [#allocation1], %s412
      %v414 = vld [vmem:[%s413] sm:%s407]
      %415 = vst [vmem:[%s410] sm:%s407] %v414
    $region41: #{custom-call.11} parent=1 // pred_fallthru
      _
    // Predicated region
    $region60: #{custom-call.11} parent=1 // pred_check
      _
    $region61: #{custom-call.11} parent=1 // pred_check_branch
      %417 = sbr.rel (0) target = $region63
    $region62: #{custom-call.11} parent=1 // pred_region
      %s419 = ssub.s32 16, 16
      %420 = vsyncadd [#allocation4], %s419
      %s421 = sshll.u32 [#allocation3], 4
      %s422 = int_to_ptr.vmem [resolvable:$true] %s421
      %424 = dma.vmem_to_hbm [thread:$0]  %s422, 16, %s2, [#allocation4]
    $region63: #{custom-call.11} parent=1 // pred_fallthru
      _
    // Predicated region
    $region64: #{custom-call.11} parent=1 // pred_check
      _
    $region65: #{custom-call.11} parent=1 // pred_check_branch
      %426 = sbr.rel (0) target = $region67
    $region66: #{custom-call.11} parent=1 // pred_region
      %p428 = scmp.gt.s32.totalorder 1, 0
      // Predicated region
      $region68: #{custom-call.11} parent=66 // pred_check
        %p429 = pneg %p428
      $region69: #{custom-call.11} parent=66 // pred_check_branch
        %431 = sbr.rel (%p429) target = $region71
      $region70: #{custom-call.11} parent=66 // pred_region
        %s432 = sshra.s32 1, 3
        %p433 = scmp.gt.s32.totalorder %s432, 0
        // Predicated region
        $region72: #{custom-call.11} parent=70 // pred_check
          %p434 = pneg %p433
        $region73: #{custom-call.11} parent=70 // pred_check_branch
          %436 = sbr.rel (%p434) target = $region75
        $region74: #{custom-call.11} parent=70 // pred_region
          %s437 = ssub.s32 %s432, 1
          %s438 = smul.u32 %s437, 128
          %s439 = sshra.s32 %s438, 4
          %s440 = scalar_lea.vmem [#allocation6], %s439
          %v441 = vld [vmem:[#allocation6] sm:$0xff]
          // While loop
          $region76: #{custom-call.11} parent=74 // loop_pre_header
            _
          $region77: #{custom-call.11} parent=74 // loop_header
            %s442 = sphi [#allocation6], %s464
            %s443 = sphi %s3, %s465
            %v444 = vphi %v441, %v466
            %s445 = ssub.s32 %s440, 64
            %p446 = scmp.gt.s32.totalorder %s442, %s445
          $region78: #{custom-call.11} parent=74 // loop_header_branch
            %448 = sbr.rel (%p446) target = $region82
          $region79: #{custom-call.11} parent=74 // loop_body
            %449 = vst [vmem:[%s443] sm:$0xff] %v444
            %v450 = vld [vmem:[%s442 + $0x8] sm:$0xff]
            %451 = vst [vmem:[%s443 + $0x8] sm:$0xff] %v450
            %v452 = vld [vmem:[%s442 + $0x10] sm:$0xff]
            %453 = vst [vmem:[%s443 + $0x10] sm:$0xff] %v452
            %v454 = vld [vmem:[%s442 + $0x18] sm:$0xff]
            %455 = vst [vmem:[%s443 + $0x18] sm:$0xff] %v454
            %v456 = vld [vmem:[%s442 + $0x20] sm:$0xff]
            %457 = vst [vmem:[%s443 + $0x20] sm:$0xff] %v456
            %v458 = vld [vmem:[%s442 + $0x28] sm:$0xff]
            %459 = vst [vmem:[%s443 + $0x28] sm:$0xff] %v458
            %v460 = vld [vmem:[%s442 + $0x30] sm:$0xff]
            %461 = vst [vmem:[%s443 + $0x30] sm:$0xff] %v460
            %v462 = vld [vmem:[%s442 + $0x38] sm:$0xff]
            %463 = vst [vmem:[%s443 + $0x38] sm:$0xff] %v462
          $region80: #{custom-call.11} parent=74 // loop_footer
            %s464 = scalar_lea.vmem %s442, 64
            %s465 = scalar_lea.vmem %s443, 64
            %v466 = vld [vmem:[%s442 + $0x40] sm:$0xff]
          $region81: #{custom-call.11} parent=74 // loop_footer_branch
            %467 = sbr.rel target = $region77
          $region82: #{custom-call.11} parent=74 // loop_exit
            _
          // While loop
          $region83: #{custom-call.11} parent=74 // loop_pre_header
            _
          $region84: #{custom-call.11} parent=74 // loop_header
            %s468 = sphi %s442, %s476
            %s469 = sphi %s443, %s477
            %v470 = vphi %v444, %v470
            %p471 = scmp.gt.s32.totalorder %s468, %s440
          $region85: #{custom-call.11} parent=74 // loop_header_branch
            %473 = sbr.rel (%p471) target = $region89
          $region86: #{custom-call.11} parent=74 // loop_body
            %v474 = vld [vmem:[%s468] sm:$0xff]
            %475 = vst [vmem:[%s469] sm:$0xff] %v474
          $region87: #{custom-call.11} parent=74 // loop_footer
            %s476 = scalar_lea.vmem %s468, 8
            %s477 = scalar_lea.vmem %s469, 8
          $region88: #{custom-call.11} parent=74 // loop_footer_branch
            %478 = sbr.rel target = $region84
          $region89: #{custom-call.11} parent=74 // loop_exit
            _
        $region75: #{custom-call.11} parent=70 // pred_fallthru
          _
        %s479 = sand.u32 1, 7
        %s480 = sshll.u32 1, %s479
        %s481 = ssub.s32 %s480, 1
        %s482 = smul.u32 %s432, 128
        %s483 = sshra.s32 %s482, 4
        %s484 = scalar_lea.vmem %s3, %s483
        %s485 = smul.u32 %s432, 128
        %s486 = sshra.s32 %s485, 4
        %s487 = scalar_lea.vmem [#allocation6], %s486
        %v488 = vld [vmem:[%s487] sm:%s481]
        %489 = vst [vmem:[%s484] sm:%s481] %v488
      $region71: #{custom-call.11} parent=66 // pred_fallthru
        _
    $region67: #{custom-call.11} parent=1 // pred_fallthru
      _
    // Predicated region
    $region90: #{custom-call.11} parent=1 // pred_check
      _
    $region91: #{custom-call.11} parent=1 // pred_check_branch
      %491 = sbr.rel (0) target = $region93
    $region92: #{custom-call.11} parent=1 // pred_region
      %492 = dma.done [#allocation4], 16
    $region93: #{custom-call.11} parent=1 // pred_fallthru
      _
    // Predicated region
    $region94: #{custom-call.11} parent=1 // pred_check
      _
    $region95: #{custom-call.11} parent=1 // pred_check_branch
      %494 = sbr.rel (0) target = $region97
    $region96: #{custom-call.11} parent=1 // pred_region
      _
    $region97: #{custom-call.11} parent=1 // pred_fallthru
      _
    %495 = vsyncpa [#allocation4], 1

// kernel: custom-call.13
$region0: #{custom-call.13}
  %s0 = inlined_call_operand.vmem [shape: f32[1,32,32], index: 0, kind: input, shape index: {}]
  %s1 = inlined_call_operand.vmem [shape: f32[1,32,32], index: 1, kind: output, shape index: {}]
  $region1: #{custom-call.13} parent=0
    #allocation0 [shape = 'u8[16384]{0}', space=vmem, size = 0x4000, scoped, tag = 'operand span for operand 0']
    #allocation1 [shape = 'u8[16384]{0}', space=vmem, size = 0x4000, scoped, tag = 'operand span for operand 1']
    #allocation2 [shape = 'f32[32,32]{1,0}', space=vmem, size = 0x4000, scoped, tag = 'rescaled input a']
    // Predicated region
    $region2: #{custom-call.13} parent=1 // pred_check
      _
    $region3: #{custom-call.13} parent=1 // pred_check_branch
      %3 = sbr.rel (0) target = $region5
    $region4: #{custom-call.13} parent=1 // pred_region
      // Predicated region
      $region6: #{custom-call.13} parent=4 // pred_check
        _
      $region7: #{custom-call.13} parent=4 // pred_check_branch
        %5 = sbr.rel (0) target = $region9
      $region8: #{custom-call.13} parent=4 // pred_region
        // Predicated region
        $region21: #{custom-call.13} parent=8 // pred_check
          _
        $region22: #{custom-call.13} parent=8 // pred_check_branch
          %27 = sbr.rel (0) target = $region24
        $region23: #{custom-call.13} parent=8 // pred_region
          loop: start=0, step=1, limit=1
          $region25: #{custom-call.13} parent=23 // loop_pre_header
            _
          $region26: #{custom-call.13} parent=23 // loop_header
            %s29 = sphi 0, %s33
            %p30 = scmp.ge.s32.totalorder %s29, 1
            %s34 = sphi %s0, %s0
            %s35 = sphi [#allocation0], [#allocation0]
          $region27: #{custom-call.13} parent=23 // loop_header_branch
            %32 = sbr.rel (%p30) target = $region31
          $region28: #{custom-call.13} parent=23 // loop_body
            %v36 = vld [vmem:[%s34] sm:$0xff]
            %37 = vst [vmem:[%s35] sm:$0xff] %v36
            %v38 = vld [vmem:[%s34 + $0x8] sm:$0xff]
            %39 = vst [vmem:[%s35 + $0x8] sm:$0xff] %v38
            %v40 = vld [vmem:[%s34 + $0x10] sm:$0xff]
            %41 = vst [vmem:[%s35 + $0x10] sm:$0xff] %v40
            %v42 = vld [vmem:[%s34 + $0x18] sm:$0xff]
            %43 = vst [vmem:[%s35 + $0x18] sm:$0xff] %v42
          $region29: #{custom-call.13} parent=23 // loop_footer
            %s33 = sadd.s32 1, %s29
          $region30: #{custom-call.13} parent=23 // loop_footer_branch
            %28 = sbr.rel target = $region26
          $region31: #{custom-call.13} parent=23 // loop_exit
            _
        $region24: #{custom-call.13} parent=8 // pred_fallthru
          _
        // Predicated region
        $region32: #{custom-call.13} parent=8 // pred_check
          _
        $region33: #{custom-call.13} parent=8 // pred_check_branch
          %45 = sbr.rel target = $region35
        $region34: #{custom-call.13} parent=8 // pred_region
          _
        $region35: #{custom-call.13} parent=8 // pred_fallthru
          _
      $region9: #{custom-call.13} parent=4 // pred_fallthru
        _
      // Predicated region
      $region10: #{custom-call.13} parent=4 // pred_check
        _
      $region11: #{custom-call.13} parent=4 // pred_check_branch
        %7 = sbr.rel target = $region13
      $region12: #{custom-call.13} parent=4 // pred_region
        %s9 = ssub.s32 256, 1
        loop: start=0, step=1, limit=1
        $region14: #{custom-call.13} parent=12 // loop_pre_header
          _
        $region15: #{custom-call.13} parent=12 // loop_header
          %s11 = sphi 0, %s15
          %p12 = scmp.ge.s32.totalorder %s11, 1
          %s16 = sphi %s0, %s0
          %s17 = sphi [#allocation0], [#allocation0]
        $region16: #{custom-call.13} parent=12 // loop_header_branch
          %14 = sbr.rel (%p12) target = $region20
        $region17: #{custom-call.13} parent=12 // loop_body
          %v18 = vld [vmem:[%s16] sm:%s9]
          %19 = vst [vmem:[%s17] sm:%s9] %v18
          %v20 = vld [vmem:[%s16 + $0x8] sm:%s9]
          %21 = vst [vmem:[%s17 + $0x8] sm:%s9] %v20
          %v22 = vld [vmem:[%s16 + $0x10] sm:%s9]
          %23 = vst [vmem:[%s17 + $0x10] sm:%s9] %v22
          %v24 = vld [vmem:[%s16 + $0x18] sm:%s9]
          %25 = vst [vmem:[%s17 + $0x18] sm:%s9] %v24
        $region18: #{custom-call.13} parent=12 // loop_footer
          %s15 = sadd.s32 1, %s11
        $region19: #{custom-call.13} parent=12 // loop_footer_branch
          %10 = sbr.rel target = $region15
        $region20: #{custom-call.13} parent=12 // loop_exit
          _
      $region13: #{custom-call.13} parent=4 // pred_fallthru
        _
    $region5: #{custom-call.13} parent=1 // pred_fallthru
      _
    %46 = vnop
    %v47 = vlaneseq
    %v48 = vand.u32 %v47, 127
    %vm49 = vcmp.lt.s32.totalorder %v48, 32
    %v50 = vlaneseq
    %v51 = vshrl.u32 %v50, 7
    %vm53 = vcmp.eq.s32.totalorder %v51, %v48
    %v54 = vld [vmem:[#allocation0] sm:$0xff]
    %v55 = vsel %vm53, %v54, 0.0
    %56 = vadd.xlane.f32.xlu0 %v55
    %v57 = vpop.xlane.xlu0 %56
    %vm58 = vcmp.ge.s32.totalorder %v51, %v48
    %vm59 = vmand %vm58, %vm49
    %v60 = vsel %vm59, %v54, 0.0
    %v61 = vrcp.pop %v57
    %v62 = vmul.f32 %v60, %v61
    %63 = vst [vmem:[#allocation2] sm:$0xff] %v62
    %s64 = scalar_lea.vmem [#allocation0], 8
    %s65 = scalar_lea.vmem [#allocation2], 8
    %v66 = vlaneseq
    %v67 = vshrl.u32 %v66, 7
    %v68 = vadd.s32 %v67, 8
    %vm69 = vcmp.eq.s32.totalorder %v68, %v48
    %v70 = vld [vmem:[%s64] sm:$0xff]
    %v71 = vsel %vm69, %v70, 0.0
    %72 = vadd.xlane.f32.xlu0 %v71
    %v73 = vpop.xlane.xlu0 %72
    %vm74 = vcmp.ge.s32.totalorder %v68, %v48
    %vm75 = vmand %vm74, %vm49
    %v76 = vsel %vm75, %v70, 0.0
    %v77 = vrcp.pop %v73
    %v78 = vmul.f32 %v76, %v77
    %79 = vst [vmem:[%s65] sm:$0xff] %v78
    %s80 = scalar_lea.vmem [#allocation0], 16
    %s81 = scalar_lea.vmem [#allocation2], 16
    %v82 = vlaneseq
    %v83 = vshrl.u32 %v82, 7
    %v84 = vadd.s32 %v83, 16
    %vm85 = vcmp.eq.s32.totalorder %v84, %v48
    %v86 = vld [vmem:[%s80] sm:$0xff]
    %v87 = vsel %vm85, %v86, 0.0
    %88 = vadd.xlane.f32.xlu0 %v87
    %v89 = vpop.xlane.xlu0 %88
    %vm90 = vcmp.ge.s32.totalorder %v84, %v48
    %vm91 = vmand %vm90, %vm49
    %v92 = vsel %vm91, %v86, 0.0
    %v93 = vrcp.pop %v89
    %v94 = vmul.f32 %v92, %v93
    %95 = vst [vmem:[%s81] sm:$0xff] %v94
    %s96 = scalar_lea.vmem [#allocation0], 24
    %s97 = scalar_lea.vmem [#allocation2], 24
    %v98 = vlaneseq
    %v99 = vshrl.u32 %v98, 7
    %v100 = vadd.s32 %v99, 24
    %vm101 = vcmp.eq.s32.totalorder %v100, %v48
    %v102 = vld [vmem:[%s96] sm:$0xff]
    %v103 = vsel %vm101, %v102, 0.0
    %104 = vadd.xlane.f32.xlu0 %v103
    %v105 = vpop.xlane.xlu0 %104
    %vm106 = vcmp.ge.s32.totalorder %v100, %v48
    %vm107 = vmand %vm106, %vm49
    %v108 = vsel %vm107, %v102, 0.0
    %v109 = vrcp.pop %v105
    %v110 = vmul.f32 %v108, %v109
    %111 = vst [vmem:[%s97] sm:$0xff] %v110
    %v112 = vlaneseq
    %v113 = vand.u32 %v112, 127
    %v114 = vlaneseq
    %v115 = vshrl.u32 %v114, 7
    %vm117 = vcmp.eq.s32.totalorder %v113, %v115
    %v118 = vlaneseq
    %v119 = vand.u32 %v118, 127
    %vm120 = vcmp.eq.s32.totalorder %v119, 0
    %v121 = vsel %vm120, 1.0, -1.0
    %v122 = vsel %vm117, %v121, 0.0
    %v123 = vlaneseq
    %v124 = vand.u32 %v123, 127
    %v125 = vlaneseq
    %v126 = vshrl.u32 %v125, 7
    %v127 = vadd.s32 %v126, 8
    %vm128 = vcmp.eq.s32.totalorder %v124, %v127
    %v129 = vsel %vm128, -1.0, 0.0
    %v130 = vlaneseq
    %v131 = vand.u32 %v130, 127
    %v132 = vlaneseq
    %v133 = vshrl.u32 %v132, 7
    %v134 = vadd.s32 %v133, 16
    %vm135 = vcmp.eq.s32.totalorder %v131, %v134
    %v136 = vsel %vm135, -1.0, 0.0
    %v137 = vlaneseq
    %v138 = vand.u32 %v137, 127
    %v139 = vlaneseq
    %v140 = vshrl.u32 %v139, 7
    %v141 = vadd.s32 %v140, 24
    %vm142 = vcmp.eq.s32.totalorder %v138, %v141
    %v143 = vsel %vm142, -1.0, 0.0
    %s144 = scalar_lea.vmem [#allocation2], 1
    %v145 = vld [vmem:[%s144] ss:$0 sm:$0xff]
    %v146 = vxor.u32 %v145, 2147483648
    %v147 = vlaneseq
    %v148 = vand.u32 %v147, 127
    %vm149 = vcmp.eq.s32.totalorder %v148, 1
    %v150 = vmul.f32 %v146, %v122
    %151 = vadd.xlane.f32.xlu0 %v150
    %v152 = vpop.xlane.xlu0 %151
    %v153 = vsel %vm149, %v152, %v122
    %s154 = scalar_lea.vmem [#allocation2], 2
    %v155 = vld [vmem:[%s154] ss:$0 sm:$0xff]
    %v156 = vxor.u32 %v155, 2147483648
    %v157 = vlaneseq
    %v158 = vand.u32 %v157, 127
    %vm159 = vcmp.eq.s32.totalorder %v158, 2
    %v160 = vmul.f32 %v156, %v153
    %161 = vadd.xlane.f32.xlu0 %v160
    %v162 = vpop.xlane.xlu0 %161
    %v163 = vsel %vm159, %v162, %v153
    %s164 = scalar_lea.vmem [#allocation2], 3
    %v165 = vld [vmem:[%s164] ss:$0 sm:$0xff]
    %v166 = vxor.u32 %v165, 2147483648
    %v167 = vlaneseq
    %v168 = vand.u32 %v167, 127
    %vm169 = vcmp.eq.s32.totalorder %v168, 3
    %v170 = vmul.f32 %v166, %v163
    %171 = vadd.xlane.f32.xlu0 %v170
    %v172 = vpop.xlane.xlu0 %171
    %v173 = vsel %vm169, %v172, %v163
    %s174 = scalar_lea.vmem [#allocation2], 4
    %v175 = vld [vmem:[%s174] ss:$0 sm:$0xff]
    %v176 = vxor.u32 %v175, 2147483648
    %v177 = vlaneseq
    %v178 = vand.u32 %v177, 127
    %vm179 = vcmp.eq.s32.totalorder %v178, 4
    %v180 = vmul.f32 %v176, %v173
    %181 = vadd.xlane.f32.xlu0 %v180
    %v182 = vpop.xlane.xlu0 %181
    %v183 = vsel %vm179, %v182, %v173
    %s184 = scalar_lea.vmem [#allocation2], 5
    %v185 = vld [vmem:[%s184] ss:$0 sm:$0xff]
    %v186 = vxor.u32 %v185, 2147483648
    %v187 = vlaneseq
    %v188 = vand.u32 %v187, 127
    %vm189 = vcmp.eq.s32.totalorder %v188, 5
    %v190 = vmul.f32 %v186, %v183
    %191 = vadd.xlane.f32.xlu0 %v190
    %v192 = vpop.xlane.xlu0 %191
    %v193 = vsel %vm189, %v192, %v183
    %s194 = scalar_lea.vmem [#allocation2], 6
    %v195 = vld [vmem:[%s194] ss:$0 sm:$0xff]
    %v196 = vxor.u32 %v195, 2147483648
    %v197 = vlaneseq
    %v198 = vand.u32 %v197, 127
    %vm199 = vcmp.eq.s32.totalorder %v198, 6
    %v200 = vmul.f32 %v196, %v193
    %201 = vadd.xlane.f32.xlu0 %v200
    %v202 = vpop.xlane.xlu0 %201
    %v203 = vsel %vm199, %v202, %v193
    %s204 = scalar_lea.vmem [#allocation2], 7
    %v205 = vld [vmem:[%s204] ss:$0 sm:$0xff]
    %v206 = vxor.u32 %v205, 2147483648
    %v207 = vlaneseq
    %v208 = vand.u32 %v207, 127
    %vm209 = vcmp.eq.s32.totalorder %v208, 7
    %v210 = vmul.f32 %v206, %v203
    %211 = vadd.xlane.f32.xlu0 %v210
    %v212 = vpop.xlane.xlu0 %211
    %v213 = vsel %vm209, %v212, %v203
    %s214 = scalar_lea.vmem [#allocation2], 8
    %v215 = vld [vmem:[%s214] ss:$0 sm:$0xff]
    %v216 = vxor.u32 %v215, 2147483648
    %v217 = vlaneseq
    %v218 = vand.u32 %v217, 127
    %vm219 = vcmp.eq.s32.totalorder %v218, 8
    %v220 = vmul.f32 %v216, %v213
    %221 = vadd.xlane.f32.xlu0 %v220
    %v222 = vpop.xlane.xlu0 %221
    %v223 = vsel %vm219, %v222, %v213
    %v224 = vmul.f32 %v216, %v129
    %225 = vadd.xlane.f32.xlu0 %v224
    %v226 = vpop.xlane.xlu0 %225
    %v227 = vsel %vm219, %v226, %v129
    %s228 = scalar_lea.vmem [#allocation2], 9
    %v229 = vld [vmem:[%s228] ss:$0 sm:$0xff]
    %v230 = vxor.u32 %v229, 2147483648
    %v231 = vlaneseq
    %v232 = vand.u32 %v231, 127
    %vm233 = vcmp.eq.s32.totalorder %v232, 9
    %v234 = vmul.f32 %v230, %v223
    %235 = vadd.xlane.f32.xlu0 %v234
    %v236 = vpop.xlane.xlu0 %235
    %v237 = vsel %vm233, %v236, %v223
    %v238 = vmul.f32 %v230, %v227
    %239 = vadd.xlane.f32.xlu0 %v238
    %v240 = vpop.xlane.xlu0 %239
    %v241 = vsel %vm233, %v240, %v227
    %s242 = scalar_lea.vmem [#allocation2], 10
    %v243 = vld [vmem:[%s242] ss:$0 sm:$0xff]
    %v244 = vxor.u32 %v243, 2147483648
    %v245 = vlaneseq
    %v246 = vand.u32 %v245, 127
    %vm247 = vcmp.eq.s32.totalorder %v246, 10
    %v248 = vmul.f32 %v244, %v237
    %249 = vadd.xlane.f32.xlu0 %v248
    %v250 = vpop.xlane.xlu0 %249
    %v251 = vsel %vm247, %v250, %v237
    %v252 = vmul.f32 %v244, %v241
    %253 = vadd.xlane.f32.xlu0 %v252
    %v254 = vpop.xlane.xlu0 %253
    %v255 = vsel %vm247, %v254, %v241
    %s256 = scalar_lea.vmem [#allocation2], 11
    %v257 = vld [vmem:[%s256] ss:$0 sm:$0xff]
    %v258 = vxor.u32 %v257, 2147483648
    %v259 = vlaneseq
    %v260 = vand.u32 %v259, 127
    %vm261 = vcmp.eq.s32.totalorder %v260, 11
    %v262 = vmul.f32 %v258, %v251
    %263 = vadd.xlane.f32.xlu0 %v262
    %v264 = vpop.xlane.xlu0 %263
    %v265 = vsel %vm261, %v264, %v251
    %v266 = vmul.f32 %v258, %v255
    %267 = vadd.xlane.f32.xlu0 %v266
    %v268 = vpop.xlane.xlu0 %267
    %v269 = vsel %vm261, %v268, %v255
    %s270 = scalar_lea.vmem [#allocation2], 12
    %v271 = vld [vmem:[%s270] ss:$0 sm:$0xff]
    %v272 = vxor.u32 %v271, 2147483648
    %v273 = vlaneseq
    %v274 = vand.u32 %v273, 127
    %vm275 = vcmp.eq.s32.totalorder %v274, 12
    %v276 = vmul.f32 %v272, %v265
    %277 = vadd.xlane.f32.xlu0 %v276
    %v278 = vpop.xlane.xlu0 %277
    %v279 = vsel %vm275, %v278, %v265
    %v280 = vmul.f32 %v272, %v269
    %281 = vadd.xlane.f32.xlu0 %v280
    %v282 = vpop.xlane.xlu0 %281
    %v283 = vsel %vm275, %v282, %v269
    %s284 = scalar_lea.vmem [#allocation2], 13
    %v285 = vld [vmem:[%s284] ss:$0 sm:$0xff]
    %v286 = vxor.u32 %v285, 2147483648
    %v287 = vlaneseq
    %v288 = vand.u32 %v287, 127
    %vm289 = vcmp.eq.s32.totalorder %v288, 13
    %v290 = vmul.f32 %v286, %v279
    %291 = vadd.xlane.f32.xlu0 %v290
    %v292 = vpop.xlane.xlu0 %291
    %v293 = vsel %vm289, %v292, %v279
    %v294 = vmul.f32 %v286, %v283
    %295 = vadd.xlane.f32.xlu0 %v294
    %v296 = vpop.xlane.xlu0 %295
    %v297 = vsel %vm289, %v296, %v283
    %s298 = scalar_lea.vmem [#allocation2], 14
    %v299 = vld [vmem:[%s298] ss:$0 sm:$0xff]
    %v300 = vxor.u32 %v299, 2147483648
    %v301 = vlaneseq
    %v302 = vand.u32 %v301, 127
    %vm303 = vcmp.eq.s32.totalorder %v302, 14
    %v304 = vmul.f32 %v300, %v293
    %305 = vadd.xlane.f32.xlu0 %v304
    %v306 = vpop.xlane.xlu0 %305
    %v307 = vsel %vm303, %v306, %v293
    %v308 = vmul.f32 %v300, %v297
    %309 = vadd.xlane.f32.xlu0 %v308
    %v310 = vpop.xlane.xlu0 %309
    %v311 = vsel %vm303, %v310, %v297
    %s312 = scalar_lea.vmem [#allocation2], 15
    %v313 = vld [vmem:[%s312] ss:$0 sm:$0xff]
    %v314 = vxor.u32 %v313, 2147483648
    %v315 = vlaneseq
    %v316 = vand.u32 %v315, 127
    %vm317 = vcmp.eq.s32.totalorder %v316, 15
    %v318 = vmul.f32 %v314, %v307
    %319 = vadd.xlane.f32.xlu0 %v318
    %v320 = vpop.xlane.xlu0 %319
    %v321 = vsel %vm317, %v320, %v307
    %v322 = vmul.f32 %v314, %v311
    %323 = vadd.xlane.f32.xlu0 %v322
    %v324 = vpop.xlane.xlu0 %323
    %v325 = vsel %vm317, %v324, %v311
    %s326 = scalar_lea.vmem [#allocation2], 16
    %v327 = vld [vmem:[%s326] ss:$0 sm:$0xff]
    %v328 = vxor.u32 %v327, 2147483648
    %v329 = vlaneseq
    %v330 = vand.u32 %v329, 127
    %vm331 = vcmp.eq.s32.totalorder %v330, 16
    %v332 = vmul.f32 %v328, %v321
    %333 = vadd.xlane.f32.xlu0 %v332
    %v334 = vpop.xlane.xlu0 %333
    %v335 = vsel %vm331, %v334, %v321
    %v336 = vmul.f32 %v328, %v325
    %337 = vadd.xlane.f32.xlu0 %v336
    %v338 = vpop.xlane.xlu0 %337
    %v339 = vsel %vm331, %v338, %v325
    %v340 = vmul.f32 %v328, %v136
    %341 = vadd.xlane.f32.xlu0 %v340
    %v342 = vpop.xlane.xlu0 %341
    %v343 = vsel %vm331, %v342, %v136
    %s344 = scalar_lea.vmem [#allocation2], 17
    %v345 = vld [vmem:[%s344] ss:$0 sm:$0xff]
    %v346 = vxor.u32 %v345, 2147483648
    %v347 = vlaneseq
    %v348 = vand.u32 %v347, 127
    %vm349 = vcmp.eq.s32.totalorder %v348, 17
    %v350 = vmul.f32 %v346, %v335
    %351 = vadd.xlane.f32.xlu0 %v350
    %v352 = vpop.xlane.xlu0 %351
    %v353 = vsel %vm349, %v352, %v335
    %v354 = vmul.f32 %v346, %v339
    %355 = vadd.xlane.f32.xlu0 %v354
    %v356 = vpop.xlane.xlu0 %355
    %v357 = vsel %vm349, %v356, %v339
    %v358 = vmul.f32 %v346, %v343
    %359 = vadd.xlane.f32.xlu0 %v358
    %v360 = vpop.xlane.xlu0 %359
    %v361 = vsel %vm349, %v360, %v343
    %s362 = scalar_lea.vmem [#allocation2], 18
    %v363 = vld [vmem:[%s362] ss:$0 sm:$0xff]
    %v364 = vxor.u32 %v363, 2147483648
    %v365 = vlaneseq
    %v366 = vand.u32 %v365, 127
    %vm367 = vcmp.eq.s32.totalorder %v366, 18
    %v368 = vmul.f32 %v364, %v353
    %369 = vadd.xlane.f32.xlu0 %v368
    %v370 = vpop.xlane.xlu0 %369
    %v371 = vsel %vm367, %v370, %v353
    %v372 = vmul.f32 %v364, %v357
    %373 = vadd.xlane.f32.xlu0 %v372
    %v374 = vpop.xlane.xlu0 %373
    %v375 = vsel %vm367, %v374, %v357
    %v376 = vmul.f32 %v364, %v361
    %377 = vadd.xlane.f32.xlu0 %v376
    %v378 = vpop.xlane.xlu0 %377
    %v379 = vsel %vm367, %v378, %v361
    %s380 = scalar_lea.vmem [#allocation2], 19
    %v381 = vld [vmem:[%s380] ss:$0 sm:$0xff]
    %v382 = vxor.u32 %v381, 2147483648
    %v383 = vlaneseq
    %v384 = vand.u32 %v383, 127
    %vm385 = vcmp.eq.s32.totalorder %v384, 19
    %v386 = vmul.f32 %v382, %v371
    %387 = vadd.xlane.f32.xlu0 %v386
    %v388 = vpop.xlane.xlu0 %387
    %v389 = vsel %vm385, %v388, %v371
    %v390 = vmul.f32 %v382, %v375
    %391 = vadd.xlane.f32.xlu0 %v390
    %v392 = vpop.xlane.xlu0 %391
    %v393 = vsel %vm385, %v392, %v375
    %v394 = vmul.f32 %v382, %v379
    %395 = vadd.xlane.f32.xlu0 %v394
    %v396 = vpop.xlane.xlu0 %395
    %v397 = vsel %vm385, %v396, %v379
    %s398 = scalar_lea.vmem [#allocation2], 20
    %v399 = vld [vmem:[%s398] ss:$0 sm:$0xff]
    %v400 = vxor.u32 %v399, 2147483648
    %v401 = vlaneseq
    %v402 = vand.u32 %v401, 127
    %vm403 = vcmp.eq.s32.totalorder %v402, 20
    %v404 = vmul.f32 %v400, %v389
    %405 = vadd.xlane.f32.xlu0 %v404
    %v406 = vpop.xlane.xlu0 %405
    %v407 = vsel %vm403, %v406, %v389
    %v408 = vmul.f32 %v400, %v393
    %409 = vadd.xlane.f32.xlu0 %v408
    %v410 = vpop.xlane.xlu0 %409
    %v411 = vsel %vm403, %v410, %v393
    %v412 = vmul.f32 %v400, %v397
    %413 = vadd.xlane.f32.xlu0 %v412
    %v414 = vpop.xlane.xlu0 %413
    %v415 = vsel %vm403, %v414, %v397
    %s416 = scalar_lea.vmem [#allocation2], 21
    %v417 = vld [vmem:[%s416] ss:$0 sm:$0xff]
    %v418 = vxor.u32 %v417, 2147483648
    %v419 = vlaneseq
    %v420 = vand.u32 %v419, 127
    %vm421 = vcmp.eq.s32.totalorder %v420, 21
    %v422 = vmul.f32 %v418, %v407
    %423 = vadd.xlane.f32.xlu0 %v422
    %v424 = vpop.xlane.xlu0 %423
    %v425 = vsel %vm421, %v424, %v407
    %v426 = vmul.f32 %v418, %v411
    %427 = vadd.xlane.f32.xlu0 %v426
    %v428 = vpop.xlane.xlu0 %427
    %v429 = vsel %vm421, %v428, %v411
    %v430 = vmul.f32 %v418, %v415
    %431 = vadd.xlane.f32.xlu0 %v430
    %v432 = vpop.xlane.xlu0 %431
    %v433 = vsel %vm421, %v432, %v415
    %s434 = scalar_lea.vmem [#allocation2], 22
    %v435 = vld [vmem:[%s434] ss:$0 sm:$0xff]
    %v436 = vxor.u32 %v435, 2147483648
    %v437 = vlaneseq
    %v438 = vand.u32 %v437, 127
    %vm439 = vcmp.eq.s32.totalorder %v438, 22
    %v440 = vmul.f32 %v436, %v425
    %441 = vadd.xlane.f32.xlu0 %v440
    %v442 = vpop.xlane.xlu0 %441
    %v443 = vsel %vm439, %v442, %v425
    %v444 = vmul.f32 %v436, %v429
    %445 = vadd.xlane.f32.xlu0 %v444
    %v446 = vpop.xlane.xlu0 %445
    %v447 = vsel %vm439, %v446, %v429
    %v448 = vmul.f32 %v436, %v433
    %449 = vadd.xlane.f32.xlu0 %v448
    %v450 = vpop.xlane.xlu0 %449
    %v451 = vsel %vm439, %v450, %v433
    %s452 = scalar_lea.vmem [#allocation2], 23
    %v453 = vld [vmem:[%s452] ss:$0 sm:$0xff]
    %v454 = vxor.u32 %v453, 2147483648
    %v455 = vlaneseq
    %v456 = vand.u32 %v455, 127
    %vm457 = vcmp.eq.s32.totalorder %v456, 23
    %v458 = vmul.f32 %v454, %v443
    %459 = vadd.xlane.f32.xlu0 %v458
    %v460 = vpop.xlane.xlu0 %459
    %v461 = vsel %vm457, %v460, %v443
    %v462 = vmul.f32 %v454, %v447
    %463 = vadd.xlane.f32.xlu0 %v462
    %v464 = vpop.xlane.xlu0 %463
    %v465 = vsel %vm457, %v464, %v447
    %v466 = vmul.f32 %v454, %v451
    %467 = vadd.xlane.f32.xlu0 %v466
    %v468 = vpop.xlane.xlu0 %467
    %v469 = vsel %vm457, %v468, %v451
    %s470 = scalar_lea.vmem [#allocation2], 24
    %v471 = vld [vmem:[%s470] ss:$0 sm:$0xff]
    %v472 = vxor.u32 %v471, 2147483648
    %v473 = vlaneseq
    %v474 = vand.u32 %v473, 127
    %vm475 = vcmp.eq.s32.totalorder %v474, 24
    %v476 = vmul.f32 %v472, %v461
    %477 = vadd.xlane.f32.xlu0 %v476
    %v478 = vpop.xlane.xlu0 %477
    %v479 = vsel %vm475, %v478, %v461
    %v480 = vmul.f32 %v472, %v465
    %481 = vadd.xlane.f32.xlu0 %v480
    %v482 = vpop.xlane.xlu0 %481
    %v483 = vsel %vm475, %v482, %v465
    %v484 = vmul.f32 %v472, %v469
    %485 = vadd.xlane.f32.xlu0 %v484
    %v486 = vpop.xlane.xlu0 %485
    %v487 = vsel %vm475, %v486, %v469
    %v488 = vmul.f32 %v472, %v143
    %489 = vadd.xlane.f32.xlu0 %v488
    %v490 = vpop.xlane.xlu0 %489
    %v491 = vsel %vm475, %v490, %v143
    %s492 = scalar_lea.vmem [#allocation2], 25
    %v493 = vld [vmem:[%s492] ss:$0 sm:$0xff]
    %v494 = vxor.u32 %v493, 2147483648
    %v495 = vlaneseq
    %v496 = vand.u32 %v495, 127
    %vm497 = vcmp.eq.s32.totalorder %v496, 25
    %v498 = vmul.f32 %v494, %v479
    %499 = vadd.xlane.f32.xlu0 %v498
    %v500 = vpop.xlane.xlu0 %499
    %v501 = vsel %vm497, %v500, %v479
    %v502 = vmul.f32 %v494, %v483
    %503 = vadd.xlane.f32.xlu0 %v502
    %v504 = vpop.xlane.xlu0 %503
    %v505 = vsel %vm497, %v504, %v483
    %v506 = vmul.f32 %v494, %v487
    %507 = vadd.xlane.f32.xlu0 %v506
    %v508 = vpop.xlane.xlu0 %507
    %v509 = vsel %vm497, %v508, %v487
    %v510 = vmul.f32 %v494, %v491
    %511 = vadd.xlane.f32.xlu0 %v510
    %v512 = vpop.xlane.xlu0 %511
    %v513 = vsel %vm497, %v512, %v491
    %s514 = scalar_lea.vmem [#allocation2], 26
    %v515 = vld [vmem:[%s514] ss:$0 sm:$0xff]
    %v516 = vxor.u32 %v515, 2147483648
    %v517 = vlaneseq
    %v518 = vand.u32 %v517, 127
    %vm519 = vcmp.eq.s32.totalorder %v518, 26
    %v520 = vmul.f32 %v516, %v501
    %521 = vadd.xlane.f32.xlu0 %v520
    %v522 = vpop.xlane.xlu0 %521
    %v523 = vsel %vm519, %v522, %v501
    %v524 = vmul.f32 %v516, %v505
    %525 = vadd.xlane.f32.xlu0 %v524
    %v526 = vpop.xlane.xlu0 %525
    %v527 = vsel %vm519, %v526, %v505
    %v528 = vmul.f32 %v516, %v509
    %529 = vadd.xlane.f32.xlu0 %v528
    %v530 = vpop.xlane.xlu0 %529
    %v531 = vsel %vm519, %v530, %v509
    %v532 = vmul.f32 %v516, %v513
    %533 = vadd.xlane.f32.xlu0 %v532
    %v534 = vpop.xlane.xlu0 %533
    %v535 = vsel %vm519, %v534, %v513
    %s536 = scalar_lea.vmem [#allocation2], 27
    %v537 = vld [vmem:[%s536] ss:$0 sm:$0xff]
    %v538 = vxor.u32 %v537, 2147483648
    %v539 = vlaneseq
    %v540 = vand.u32 %v539, 127
    %vm541 = vcmp.eq.s32.totalorder %v540, 27
    %v542 = vmul.f32 %v538, %v523
    %543 = vadd.xlane.f32.xlu0 %v542
    %v544 = vpop.xlane.xlu0 %543
    %v545 = vsel %vm541, %v544, %v523
    %v546 = vmul.f32 %v538, %v527
    %547 = vadd.xlane.f32.xlu0 %v546
    %v548 = vpop.xlane.xlu0 %547
    %v549 = vsel %vm541, %v548, %v527
    %v550 = vmul.f32 %v538, %v531
    %551 = vadd.xlane.f32.xlu0 %v550
    %v552 = vpop.xlane.xlu0 %551
    %v553 = vsel %vm541, %v552, %v531
    %v554 = vmul.f32 %v538, %v535
    %555 = vadd.xlane.f32.xlu0 %v554
    %v556 = vpop.xlane.xlu0 %555
    %v557 = vsel %vm541, %v556, %v535
    %s558 = scalar_lea.vmem [#allocation2], 28
    %v559 = vld [vmem:[%s558] ss:$0 sm:$0xff]
    %v560 = vxor.u32 %v559, 2147483648
    %v561 = vlaneseq
    %v562 = vand.u32 %v561, 127
    %vm563 = vcmp.eq.s32.totalorder %v562, 28
    %v564 = vmul.f32 %v560, %v545
    %565 = vadd.xlane.f32.xlu0 %v564
    %v566 = vpop.xlane.xlu0 %565
    %v567 = vsel %vm563, %v566, %v545
    %v568 = vmul.f32 %v560, %v549
    %569 = vadd.xlane.f32.xlu0 %v568
    %v570 = vpop.xlane.xlu0 %569
    %v571 = vsel %vm563, %v570, %v549
    %v572 = vmul.f32 %v560, %v553
    %573 = vadd.xlane.f32.xlu0 %v572
    %v574 = vpop.xlane.xlu0 %573
    %v575 = vsel %vm563, %v574, %v553
    %v576 = vmul.f32 %v560, %v557
    %577 = vadd.xlane.f32.xlu0 %v576
    %v578 = vpop.xlane.xlu0 %577
    %v579 = vsel %vm563, %v578, %v557
    %s580 = scalar_lea.vmem [#allocation2], 29
    %v581 = vld [vmem:[%s580] ss:$0 sm:$0xff]
    %v582 = vxor.u32 %v581, 2147483648
    %v583 = vlaneseq
    %v584 = vand.u32 %v583, 127
    %vm585 = vcmp.eq.s32.totalorder %v584, 29
    %v586 = vmul.f32 %v582, %v567
    %587 = vadd.xlane.f32.xlu0 %v586
    %v588 = vpop.xlane.xlu0 %587
    %v589 = vsel %vm585, %v588, %v567
    %v590 = vmul.f32 %v582, %v571
    %591 = vadd.xlane.f32.xlu0 %v590
    %v592 = vpop.xlane.xlu0 %591
    %v593 = vsel %vm585, %v592, %v571
    %v594 = vmul.f32 %v582, %v575
    %595 = vadd.xlane.f32.xlu0 %v594
    %v596 = vpop.xlane.xlu0 %595
    %v597 = vsel %vm585, %v596, %v575
    %v598 = vmul.f32 %v582, %v579
    %599 = vadd.xlane.f32.xlu0 %v598
    %v600 = vpop.xlane.xlu0 %599
    %v601 = vsel %vm585, %v600, %v579
    %s602 = scalar_lea.vmem [#allocation2], 30
    %v603 = vld [vmem:[%s602] ss:$0 sm:$0xff]
    %v604 = vxor.u32 %v603, 2147483648
    %v605 = vlaneseq
    %v606 = vand.u32 %v605, 127
    %vm607 = vcmp.eq.s32.totalorder %v606, 30
    %v608 = vmul.f32 %v604, %v589
    %609 = vadd.xlane.f32.xlu0 %v608
    %v610 = vpop.xlane.xlu0 %609
    %v611 = vsel %vm607, %v610, %v589
    %v612 = vmul.f32 %v604, %v593
    %613 = vadd.xlane.f32.xlu0 %v612
    %v614 = vpop.xlane.xlu0 %613
    %v615 = vsel %vm607, %v614, %v593
    %v616 = vmul.f32 %v604, %v597
    %617 = vadd.xlane.f32.xlu0 %v616
    %v618 = vpop.xlane.xlu0 %617
    %v619 = vsel %vm607, %v618, %v597
    %v620 = vmul.f32 %v604, %v601
    %621 = vadd.xlane.f32.xlu0 %v620
    %v622 = vpop.xlane.xlu0 %621
    %v623 = vsel %vm607, %v622, %v601
    %s624 = scalar_lea.vmem [#allocation2], 31
    %v625 = vld [vmem:[%s624] ss:$0 sm:$0xff]
    %v626 = vxor.u32 %v625, 2147483648
    %v627 = vlaneseq
    %v628 = vand.u32 %v627, 127
    %vm629 = vcmp.eq.s32.totalorder %v628, 31
    %v630 = vmul.f32 %v626, %v611
    %631 = vadd.xlane.f32.xlu0 %v630
    %v632 = vpop.xlane.xlu0 %631
    %v633 = vsel %vm629, %v632, %v611
    %v634 = vmul.f32 %v626, %v615
    %635 = vadd.xlane.f32.xlu0 %v634
    %v636 = vpop.xlane.xlu0 %635
    %v637 = vsel %vm629, %v636, %v615
    %v638 = vmul.f32 %v626, %v619
    %639 = vadd.xlane.f32.xlu0 %v638
    %v640 = vpop.xlane.xlu0 %639
    %v641 = vsel %vm629, %v640, %v619
    %v642 = vmul.f32 %v626, %v623
    %643 = vadd.xlane.f32.xlu0 %v642
    %v644 = vpop.xlane.xlu0 %643
    %v645 = vsel %vm629, %v644, %v623
    %v646 = vrcp.pop %v57
    %v647 = vmul.f32 %v633, %v646
    %vm648 = vweird.f32 %v57
    %v649 = vsel %vm648, %v633, %v647
    %650 = vst [vmem:[#allocation1] sm:$0xff] %v649
    %v651 = vrcp.pop %v73
    %v652 = vmul.f32 %v637, %v651
    %vm653 = vweird.f32 %v73
    %v654 = vsel %vm653, %v637, %v652
    %s655 = scalar_lea.vmem [#allocation1], 8
    %656 = vst [vmem:[%s655] sm:$0xff] %v654
    %v657 = vrcp.pop %v89
    %v658 = vmul.f32 %v641, %v657
    %vm659 = vweird.f32 %v89
    %v660 = vsel %vm659, %v641, %v658
    %s661 = scalar_lea.vmem [#allocation1], 16
    %662 = vst [vmem:[%s661] sm:$0xff] %v660
    %v663 = vrcp.pop %v105
    %v664 = vmul.f32 %v645, %v663
    %vm665 = vweird.f32 %v105
    %v666 = vsel %vm665, %v645, %v664
    %s667 = scalar_lea.vmem [#allocation1], 24
    %668 = vst [vmem:[%s667] sm:$0xff] %v666
    // Predicated region
    $region36: #{custom-call.13} parent=1 // pred_check
      _
    $region37: #{custom-call.13} parent=1 // pred_check_branch
      %670 = sbr.rel (0) target = $region39
    $region38: #{custom-call.13} parent=1 // pred_region
      // Predicated region
      $region40: #{custom-call.13} parent=38 // pred_check
        _
      $region41: #{custom-call.13} parent=38 // pred_check_branch
        %672 = sbr.rel (0) target = $region43
      $region42: #{custom-call.13} parent=38 // pred_region
        // Predicated region
        $region55: #{custom-call.13} parent=42 // pred_check
          _
        $region56: #{custom-call.13} parent=42 // pred_check_branch
          %694 = sbr.rel (0) target = $region58
        $region57: #{custom-call.13} parent=42 // pred_region
          loop: start=0, step=1, limit=1
          $region59: #{custom-call.13} parent=57 // loop_pre_header
            _
          $region60: #{custom-call.13} parent=57 // loop_header
            %s696 = sphi 0, %s700
            %p697 = scmp.ge.s32.totalorder %s696, 1
            %s701 = sphi [#allocation1], [#allocation1]
            %s702 = sphi %s1, %s1
          $region61: #{custom-call.13} parent=57 // loop_header_branch
            %699 = sbr.rel (%p697) target = $region65
          $region62: #{custom-call.13} parent=57 // loop_body
            %v703 = vld [vmem:[%s701] sm:$0xff]
            %704 = vst [vmem:[%s702] sm:$0xff] %v703
            %v705 = vld [vmem:[%s701 + $0x8] sm:$0xff]
            %706 = vst [vmem:[%s702 + $0x8] sm:$0xff] %v705
            %v707 = vld [vmem:[%s701 + $0x10] sm:$0xff]
            %708 = vst [vmem:[%s702 + $0x10] sm:$0xff] %v707
            %v709 = vld [vmem:[%s701 + $0x18] sm:$0xff]
            %710 = vst [vmem:[%s702 + $0x18] sm:$0xff] %v709
          $region63: #{custom-call.13} parent=57 // loop_footer
            %s700 = sadd.s32 1, %s696
          $region64: #{custom-call.13} parent=57 // loop_footer_branch
            %695 = sbr.rel target = $region60
          $region65: #{custom-call.13} parent=57 // loop_exit
            _
        $region58: #{custom-call.13} parent=42 // pred_fallthru
          _
        // Predicated region
        $region66: #{custom-call.13} parent=42 // pred_check
          _
        $region67: #{custom-call.13} parent=42 // pred_check_branch
          %712 = sbr.rel target = $region69
        $region68: #{custom-call.13} parent=42 // pred_region
          _
        $region69: #{custom-call.13} parent=42 // pred_fallthru
          _
      $region43: #{custom-call.13} parent=38 // pred_fallthru
        _
      // Predicated region
      $region44: #{custom-call.13} parent=38 // pred_check
        _
      $region45: #{custom-call.13} parent=38 // pred_check_branch
        %674 = sbr.rel target = $region47
      $region46: #{custom-call.13} parent=38 // pred_region
        %s676 = ssub.s32 256, 1
        loop: start=0, step=1, limit=1
        $region48: #{custom-call.13} parent=46 // loop_pre_header
          _
        $region49: #{custom-call.13} parent=46 // loop_header
          %s678 = sphi 0, %s682
          %p679 = scmp.ge.s32.totalorder %s678, 1
          %s683 = sphi [#allocation1], [#allocation1]
          %s684 = sphi %s1, %s1
        $region50: #{custom-call.13} parent=46 // loop_header_branch
          %681 = sbr.rel (%p679) target = $region54
        $region51: #{custom-call.13} parent=46 // loop_body
          %v685 = vld [vmem:[%s683] sm:%s676]
          %686 = vst [vmem:[%s684] sm:%s676] %v685
          %v687 = vld [vmem:[%s683 + $0x8] sm:%s676]
          %688 = vst [vmem:[%s684 + $0x8] sm:%s676] %v687
          %v689 = vld [vmem:[%s683 + $0x10] sm:%s676]
          %690 = vst [vmem:[%s684 + $0x10] sm:%s676] %v689
          %v691 = vld [vmem:[%s683 + $0x18] sm:%s676]
          %692 = vst [vmem:[%s684 + $0x18] sm:%s676] %v691
        $region52: #{custom-call.13} parent=46 // loop_footer
          %s682 = sadd.s32 1, %s678
        $region53: #{custom-call.13} parent=46 // loop_footer_branch
          %677 = sbr.rel target = $region49
        $region54: #{custom-call.13} parent=46 // loop_exit
          _
      $region47: #{custom-call.13} parent=38 // pred_fallthru
        _
    $region39: #{custom-call.13} parent=1 // pred_fallthru
      _
    %713 = vnop

// kernel: custom-call.12
$region0: #{custom-call.12}
  %s0 = inlined_call_operand.vmem [shape: f32[1,32,32], index: 0, kind: input, shape index: {}]
  %s1 = inlined_call_operand.vmem [shape: f32[1,32,32], index: 1, kind: output, shape index: {}]
  $region1: #{custom-call.12} parent=0
    #allocation0 [shape = 'u8[16384]{0}', space=vmem, size = 0x4000, scoped, tag = 'operand span for operand 0']
    #allocation1 [shape = 'u8[16384]{0}', space=vmem, size = 0x4000, scoped, tag = 'operand span for operand 1']
    #allocation2 [shape = 'f32[32,32]{1,0}', space=vmem, size = 0x4000, scoped, tag = 'rescaled input a']
    // Predicated region
    $region2: #{custom-call.12} parent=1 // pred_check
      _
    $region3: #{custom-call.12} parent=1 // pred_check_branch
      %3 = sbr.rel (0) target = $region5
    $region4: #{custom-call.12} parent=1 // pred_region
      // Predicated region
      $region6: #{custom-call.12} parent=4 // pred_check
        _
      $region7: #{custom-call.12} parent=4 // pred_check_branch
        %5 = sbr.rel (0) target = $region9
      $region8: #{custom-call.12} parent=4 // pred_region
        // Predicated region
        $region21: #{custom-call.12} parent=8 // pred_check
          _
        $region22: #{custom-call.12} parent=8 // pred_check_branch
          %27 = sbr.rel (0) target = $region24
        $region23: #{custom-call.12} parent=8 // pred_region
          loop: start=0, step=1, limit=1
          $region25: #{custom-call.12} parent=23 // loop_pre_header
            _
          $region26: #{custom-call.12} parent=23 // loop_header
            %s29 = sphi 0, %s33
            %p30 = scmp.ge.s32.totalorder %s29, 1
            %s34 = sphi %s0, %s0
            %s35 = sphi [#allocation0], [#allocation0]
          $region27: #{custom-call.12} parent=23 // loop_header_branch
            %32 = sbr.rel (%p30) target = $region31
          $region28: #{custom-call.12} parent=23 // loop_body
            %v36 = vld [vmem:[%s34] sm:$0xff]
            %37 = vst [vmem:[%s35] sm:$0xff] %v36
            %v38 = vld [vmem:[%s34 + $0x8] sm:$0xff]
            %39 = vst [vmem:[%s35 + $0x8] sm:$0xff] %v38
            %v40 = vld [vmem:[%s34 + $0x10] sm:$0xff]
            %41 = vst [vmem:[%s35 + $0x10] sm:$0xff] %v40
            %v42 = vld [vmem:[%s34 + $0x18] sm:$0xff]
            %43 = vst [vmem:[%s35 + $0x18] sm:$0xff] %v42
          $region29: #{custom-call.12} parent=23 // loop_footer
            %s33 = sadd.s32 1, %s29
          $region30: #{custom-call.12} parent=23 // loop_footer_branch
            %28 = sbr.rel target = $region26
          $region31: #{custom-call.12} parent=23 // loop_exit
            _
        $region24: #{custom-call.12} parent=8 // pred_fallthru
          _
        // Predicated region
        $region32: #{custom-call.12} parent=8 // pred_check
          _
        $region33: #{custom-call.12} parent=8 // pred_check_branch
          %45 = sbr.rel target = $region35
        $region34: #{custom-call.12} parent=8 // pred_region
          _
        $region35: #{custom-call.12} parent=8 // pred_fallthru
          _
      $region9: #{custom-call.12} parent=4 // pred_fallthru
        _
      // Predicated region
      $region10: #{custom-call.12} parent=4 // pred_check
        _
      $region11: #{custom-call.12} parent=4 // pred_check_branch
        %7 = sbr.rel target = $region13
      $region12: #{custom-call.12} parent=4 // pred_region
        %s9 = ssub.s32 256, 1
        loop: start=0, step=1, limit=1
        $region14: #{custom-call.12} parent=12 // loop_pre_header
          _
        $region15: #{custom-call.12} parent=12 // loop_header
          %s11 = sphi 0, %s15
          %p12 = scmp.ge.s32.totalorder %s11, 1
          %s16 = sphi %s0, %s0
          %s17 = sphi [#allocation0], [#allocation0]
        $region16: #{custom-call.12} parent=12 // loop_header_branch
          %14 = sbr.rel (%p12) target = $region20
        $region17: #{custom-call.12} parent=12 // loop_body
          %v18 = vld [vmem:[%s16] sm:%s9]
          %19 = vst [vmem:[%s17] sm:%s9] %v18
          %v20 = vld [vmem:[%s16 + $0x8] sm:%s9]
          %21 = vst [vmem:[%s17 + $0x8] sm:%s9] %v20
          %v22 = vld [vmem:[%s16 + $0x10] sm:%s9]
          %23 = vst [vmem:[%s17 + $0x10] sm:%s9] %v22
          %v24 = vld [vmem:[%s16 + $0x18] sm:%s9]
          %25 = vst [vmem:[%s17 + $0x18] sm:%s9] %v24
        $region18: #{custom-call.12} parent=12 // loop_footer
          %s15 = sadd.s32 1, %s11
        $region19: #{custom-call.12} parent=12 // loop_footer_branch
          %10 = sbr.rel target = $region15
        $region20: #{custom-call.12} parent=12 // loop_exit
          _
      $region13: #{custom-call.12} parent=4 // pred_fallthru
        _
    $region5: #{custom-call.12} parent=1 // pred_fallthru
      _
    %46 = vnop
    %v47 = vlaneseq
    %v48 = vand.u32 %v47, 127
    %vm49 = vcmp.lt.s32.totalorder %v48, 32
    %v50 = vlaneseq
    %v51 = vshrl.u32 %v50, 7
    %vm53 = vcmp.eq.s32.totalorder %v51, %v48
    %v54 = vld [vmem:[#allocation0] sm:$0xff]
    %v55 = vsel %vm53, %v54, 0.0
    %56 = vadd.xlane.f32.xlu0 %v55
    %v57 = vpop.xlane.xlu0 %56
    %vm58 = vcmp.le.s32.totalorder %v51, %v48
    %vm59 = vmand %vm58, %vm49
    %v60 = vsel %vm59, %v54, 0.0
    %v61 = vrcp.pop %v57
    %v62 = vmul.f32 %v60, %v61
    %63 = vst [vmem:[#allocation2] sm:$0xff] %v62
    %s64 = scalar_lea.vmem [#allocation0], 8
    %s65 = scalar_lea.vmem [#allocation2], 8
    %v66 = vlaneseq
    %v67 = vshrl.u32 %v66, 7
    %v68 = vadd.s32 %v67, 8
    %vm69 = vcmp.eq.s32.totalorder %v68, %v48
    %v70 = vld [vmem:[%s64] sm:$0xff]
    %v71 = vsel %vm69, %v70, 0.0
    %72 = vadd.xlane.f32.xlu0 %v71
    %v73 = vpop.xlane.xlu0 %72
    %vm74 = vcmp.le.s32.totalorder %v68, %v48
    %vm75 = vmand %vm74, %vm49
    %v76 = vsel %vm75, %v70, 0.0
    %v77 = vrcp.pop %v73
    %v78 = vmul.f32 %v76, %v77
    %79 = vst [vmem:[%s65] sm:$0xff] %v78
    %s80 = scalar_lea.vmem [#allocation0], 16
    %s81 = scalar_lea.vmem [#allocation2], 16
    %v82 = vlaneseq
    %v83 = vshrl.u32 %v82, 7
    %v84 = vadd.s32 %v83, 16
    %vm85 = vcmp.eq.s32.totalorder %v84, %v48
    %v86 = vld [vmem:[%s80] sm:$0xff]
    %v87 = vsel %vm85, %v86, 0.0
    %88 = vadd.xlane.f32.xlu0 %v87
    %v89 = vpop.xlane.xlu0 %88
    %vm90 = vcmp.le.s32.totalorder %v84, %v48
    %vm91 = vmand %vm90, %vm49
    %v92 = vsel %vm91, %v86, 0.0
    %v93 = vrcp.pop %v89
    %v94 = vmul.f32 %v92, %v93
    %95 = vst [vmem:[%s81] sm:$0xff] %v94
    %s96 = scalar_lea.vmem [#allocation0], 24
    %s97 = scalar_lea.vmem [#allocation2], 24
    %v98 = vlaneseq
    %v99 = vshrl.u32 %v98, 7
    %v100 = vadd.s32 %v99, 24
    %vm101 = vcmp.eq.s32.totalorder %v100, %v48
    %v102 = vld [vmem:[%s96] sm:$0xff]
    %v103 = vsel %vm101, %v102, 0.0
    %104 = vadd.xlane.f32.xlu0 %v103
    %v105 = vpop.xlane.xlu0 %104
    %vm106 = vcmp.le.s32.totalorder %v100, %v48
    %vm107 = vmand %vm106, %vm49
    %v108 = vsel %vm107, %v102, 0.0
    %v109 = vrcp.pop %v105
    %v110 = vmul.f32 %v108, %v109
    %111 = vst [vmem:[%s97] sm:$0xff] %v110
    %v112 = vlaneseq
    %v113 = vand.u32 %v112, 127
    %v114 = vlaneseq
    %v115 = vshrl.u32 %v114, 7
    %vm117 = vcmp.eq.s32.totalorder %v113, %v115
    %v118 = vsel %vm117, -1.0, 0.0
    %v119 = vlaneseq
    %v120 = vand.u32 %v119, 127
    %v121 = vlaneseq
    %v122 = vshrl.u32 %v121, 7
    %v123 = vadd.s32 %v122, 8
    %vm124 = vcmp.eq.s32.totalorder %v120, %v123
    %v125 = vsel %vm124, -1.0, 0.0
    %v126 = vlaneseq
    %v127 = vand.u32 %v126, 127
    %v128 = vlaneseq
    %v129 = vshrl.u32 %v128, 7
    %v130 = vadd.s32 %v129, 16
    %vm131 = vcmp.eq.s32.totalorder %v127, %v130
    %v132 = vsel %vm131, -1.0, 0.0
    %v133 = vlaneseq
    %v134 = vand.u32 %v133, 127
    %v135 = vlaneseq
    %v136 = vshrl.u32 %v135, 7
    %v137 = vadd.s32 %v136, 24
    %vm138 = vcmp.eq.s32.totalorder %v134, %v137
    %v139 = vlaneseq
    %v140 = vand.u32 %v139, 127
    %vm141 = vcmp.eq.s32.totalorder %v140, 31
    %v142 = vsel %vm141, 1.0, -1.0
    %v143 = vsel %vm138, %v142, 0.0
    %s144 = scalar_lea.vmem [#allocation2], 30
    %v145 = vld [vmem:[%s144] ss:$0 sm:$0xff]
    %v146 = vxor.u32 %v145, 2147483648
    %v147 = vlaneseq
    %v148 = vand.u32 %v147, 127
    %vm149 = vcmp.eq.s32.totalorder %v148, 30
    %v150 = vmul.f32 %v146, %v143
    %151 = vadd.xlane.f32.xlu0 %v150
    %v152 = vpop.xlane.xlu0 %151
    %v153 = vsel %vm149, %v152, %v143
    %s154 = scalar_lea.vmem [#allocation2], 29
    %v155 = vld [vmem:[%s154] ss:$0 sm:$0xff]
    %v156 = vxor.u32 %v155, 2147483648
    %v157 = vlaneseq
    %v158 = vand.u32 %v157, 127
    %vm159 = vcmp.eq.s32.totalorder %v158, 29
    %v160 = vmul.f32 %v156, %v153
    %161 = vadd.xlane.f32.xlu0 %v160
    %v162 = vpop.xlane.xlu0 %161
    %v163 = vsel %vm159, %v162, %v153
    %s164 = scalar_lea.vmem [#allocation2], 28
    %v165 = vld [vmem:[%s164] ss:$0 sm:$0xff]
    %v166 = vxor.u32 %v165, 2147483648
    %v167 = vlaneseq
    %v168 = vand.u32 %v167, 127
    %vm169 = vcmp.eq.s32.totalorder %v168, 28
    %v170 = vmul.f32 %v166, %v163
    %171 = vadd.xlane.f32.xlu0 %v170
    %v172 = vpop.xlane.xlu0 %171
    %v173 = vsel %vm169, %v172, %v163
    %s174 = scalar_lea.vmem [#allocation2], 27
    %v175 = vld [vmem:[%s174] ss:$0 sm:$0xff]
    %v176 = vxor.u32 %v175, 2147483648
    %v177 = vlaneseq
    %v178 = vand.u32 %v177, 127
    %vm179 = vcmp.eq.s32.totalorder %v178, 27
    %v180 = vmul.f32 %v176, %v173
    %181 = vadd.xlane.f32.xlu0 %v180
    %v182 = vpop.xlane.xlu0 %181
    %v183 = vsel %vm179, %v182, %v173
    %s184 = scalar_lea.vmem [#allocation2], 26
    %v185 = vld [vmem:[%s184] ss:$0 sm:$0xff]
    %v186 = vxor.u32 %v185, 2147483648
    %v187 = vlaneseq
    %v188 = vand.u32 %v187, 127
    %vm189 = vcmp.eq.s32.totalorder %v188, 26
    %v190 = vmul.f32 %v186, %v183
    %191 = vadd.xlane.f32.xlu0 %v190
    %v192 = vpop.xlane.xlu0 %191
    %v193 = vsel %vm189, %v192, %v183
    %s194 = scalar_lea.vmem [#allocation2], 25
    %v195 = vld [vmem:[%s194] ss:$0 sm:$0xff]
    %v196 = vxor.u32 %v195, 2147483648
    %v197 = vlaneseq
    %v198 = vand.u32 %v197, 127
    %vm199 = vcmp.eq.s32.totalorder %v198, 25
    %v200 = vmul.f32 %v196, %v193
    %201 = vadd.xlane.f32.xlu0 %v200
    %v202 = vpop.xlane.xlu0 %201
    %v203 = vsel %vm199, %v202, %v193
    %s204 = scalar_lea.vmem [#allocation2], 24
    %v205 = vld [vmem:[%s204] ss:$0 sm:$0xff]
    %v206 = vxor.u32 %v205, 2147483648
    %v207 = vlaneseq
    %v208 = vand.u32 %v207, 127
    %vm209 = vcmp.eq.s32.totalorder %v208, 24
    %v210 = vmul.f32 %v206, %v203
    %211 = vadd.xlane.f32.xlu0 %v210
    %v212 = vpop.xlane.xlu0 %211
    %v213 = vsel %vm209, %v212, %v203
    %s214 = scalar_lea.vmem [#allocation2], 23
    %v215 = vld [vmem:[%s214] ss:$0 sm:$0xff]
    %v216 = vxor.u32 %v215, 2147483648
    %v217 = vlaneseq
    %v218 = vand.u32 %v217, 127
    %vm219 = vcmp.eq.s32.totalorder %v218, 23
    %v220 = vmul.f32 %v216, %v132
    %221 = vadd.xlane.f32.xlu0 %v220
    %v222 = vpop.xlane.xlu0 %221
    %v223 = vsel %vm219, %v222, %v132
    %v224 = vmul.f32 %v216, %v213
    %225 = vadd.xlane.f32.xlu0 %v224
    %v226 = vpop.xlane.xlu0 %225
    %v227 = vsel %vm219, %v226, %v213
    %s228 = scalar_lea.vmem [#allocation2], 22
    %v229 = vld [vmem:[%s228] ss:$0 sm:$0xff]
    %v230 = vxor.u32 %v229, 2147483648
    %v231 = vlaneseq
    %v232 = vand.u32 %v231, 127
    %vm233 = vcmp.eq.s32.totalorder %v232, 22
    %v234 = vmul.f32 %v230, %v223
    %235 = vadd.xlane.f32.xlu0 %v234
    %v236 = vpop.xlane.xlu0 %235
    %v237 = vsel %vm233, %v236, %v223
    %v238 = vmul.f32 %v230, %v227
    %239 = vadd.xlane.f32.xlu0 %v238
    %v240 = vpop.xlane.xlu0 %239
    %v241 = vsel %vm233, %v240, %v227
    %s242 = scalar_lea.vmem [#allocation2], 21
    %v243 = vld [vmem:[%s242] ss:$0 sm:$0xff]
    %v244 = vxor.u32 %v243, 2147483648
    %v245 = vlaneseq
    %v246 = vand.u32 %v245, 127
    %vm247 = vcmp.eq.s32.totalorder %v246, 21
    %v248 = vmul.f32 %v244, %v237
    %249 = vadd.xlane.f32.xlu0 %v248
    %v250 = vpop.xlane.xlu0 %249
    %v251 = vsel %vm247, %v250, %v237
    %v252 = vmul.f32 %v244, %v241
    %253 = vadd.xlane.f32.xlu0 %v252
    %v254 = vpop.xlane.xlu0 %253
    %v255 = vsel %vm247, %v254, %v241
    %s256 = scalar_lea.vmem [#allocation2], 20
    %v257 = vld [vmem:[%s256] ss:$0 sm:$0xff]
    %v258 = vxor.u32 %v257, 2147483648
    %v259 = vlaneseq
    %v260 = vand.u32 %v259, 127
    %vm261 = vcmp.eq.s32.totalorder %v260, 20
    %v262 = vmul.f32 %v258, %v251
    %263 = vadd.xlane.f32.xlu0 %v262
    %v264 = vpop.xlane.xlu0 %263
    %v265 = vsel %vm261, %v264, %v251
    %v266 = vmul.f32 %v258, %v255
    %267 = vadd.xlane.f32.xlu0 %v266
    %v268 = vpop.xlane.xlu0 %267
    %v269 = vsel %vm261, %v268, %v255
    %s270 = scalar_lea.vmem [#allocation2], 19
    %v271 = vld [vmem:[%s270] ss:$0 sm:$0xff]
    %v272 = vxor.u32 %v271, 2147483648
    %v273 = vlaneseq
    %v274 = vand.u32 %v273, 127
    %vm275 = vcmp.eq.s32.totalorder %v274, 19
    %v276 = vmul.f32 %v272, %v265
    %277 = vadd.xlane.f32.xlu0 %v276
    %v278 = vpop.xlane.xlu0 %277
    %v279 = vsel %vm275, %v278, %v265
    %v280 = vmul.f32 %v272, %v269
    %281 = vadd.xlane.f32.xlu0 %v280
    %v282 = vpop.xlane.xlu0 %281
    %v283 = vsel %vm275, %v282, %v269
    %s284 = scalar_lea.vmem [#allocation2], 18
    %v285 = vld [vmem:[%s284] ss:$0 sm:$0xff]
    %v286 = vxor.u32 %v285, 2147483648
    %v287 = vlaneseq
    %v288 = vand.u32 %v287, 127
    %vm289 = vcmp.eq.s32.totalorder %v288, 18
    %v290 = vmul.f32 %v286, %v279
    %291 = vadd.xlane.f32.xlu0 %v290
    %v292 = vpop.xlane.xlu0 %291
    %v293 = vsel %vm289, %v292, %v279
    %v294 = vmul.f32 %v286, %v283
    %295 = vadd.xlane.f32.xlu0 %v294
    %v296 = vpop.xlane.xlu0 %295
    %v297 = vsel %vm289, %v296, %v283
    %s298 = scalar_lea.vmem [#allocation2], 17
    %v299 = vld [vmem:[%s298] ss:$0 sm:$0xff]
    %v300 = vxor.u32 %v299, 2147483648
    %v301 = vlaneseq
    %v302 = vand.u32 %v301, 127
    %vm303 = vcmp.eq.s32.totalorder %v302, 17
    %v304 = vmul.f32 %v300, %v293
    %305 = vadd.xlane.f32.xlu0 %v304
    %v306 = vpop.xlane.xlu0 %305
    %v307 = vsel %vm303, %v306, %v293
    %v308 = vmul.f32 %v300, %v297
    %309 = vadd.xlane.f32.xlu0 %v308
    %v310 = vpop.xlane.xlu0 %309
    %v311 = vsel %vm303, %v310, %v297
    %s312 = scalar_lea.vmem [#allocation2], 16
    %v313 = vld [vmem:[%s312] ss:$0 sm:$0xff]
    %v314 = vxor.u32 %v313, 2147483648
    %v315 = vlaneseq
    %v316 = vand.u32 %v315, 127
    %vm317 = vcmp.eq.s32.totalorder %v316, 16
    %v318 = vmul.f32 %v314, %v307
    %319 = vadd.xlane.f32.xlu0 %v318
    %v320 = vpop.xlane.xlu0 %319
    %v321 = vsel %vm317, %v320, %v307
    %v322 = vmul.f32 %v314, %v311
    %323 = vadd.xlane.f32.xlu0 %v322
    %v324 = vpop.xlane.xlu0 %323
    %v325 = vsel %vm317, %v324, %v311
    %s326 = scalar_lea.vmem [#allocation2], 15
    %v327 = vld [vmem:[%s326] ss:$0 sm:$0xff]
    %v328 = vxor.u32 %v327, 2147483648
    %v329 = vlaneseq
    %v330 = vand.u32 %v329, 127
    %vm331 = vcmp.eq.s32.totalorder %v330, 15
    %v332 = vmul.f32 %v328, %v125
    %333 = vadd.xlane.f32.xlu0 %v332
    %v334 = vpop.xlane.xlu0 %333
    %v335 = vsel %vm331, %v334, %v125
    %v336 = vmul.f32 %v328, %v321
    %337 = vadd.xlane.f32.xlu0 %v336
    %v338 = vpop.xlane.xlu0 %337
    %v339 = vsel %vm331, %v338, %v321
    %v340 = vmul.f32 %v328, %v325
    %341 = vadd.xlane.f32.xlu0 %v340
    %v342 = vpop.xlane.xlu0 %341
    %v343 = vsel %vm331, %v342, %v325
    %s344 = scalar_lea.vmem [#allocation2], 14
    %v345 = vld [vmem:[%s344] ss:$0 sm:$0xff]
    %v346 = vxor.u32 %v345, 2147483648
    %v347 = vlaneseq
    %v348 = vand.u32 %v347, 127
    %vm349 = vcmp.eq.s32.totalorder %v348, 14
    %v350 = vmul.f32 %v346, %v335
    %351 = vadd.xlane.f32.xlu0 %v350
    %v352 = vpop.xlane.xlu0 %351
    %v353 = vsel %vm349, %v352, %v335
    %v354 = vmul.f32 %v346, %v339
    %355 = vadd.xlane.f32.xlu0 %v354
    %v356 = vpop.xlane.xlu0 %355
    %v357 = vsel %vm349, %v356, %v339
    %v358 = vmul.f32 %v346, %v343
    %359 = vadd.xlane.f32.xlu0 %v358
    %v360 = vpop.xlane.xlu0 %359
    %v361 = vsel %vm349, %v360, %v343
    %s362 = scalar_lea.vmem [#allocation2], 13
    %v363 = vld [vmem:[%s362] ss:$0 sm:$0xff]
    %v364 = vxor.u32 %v363, 2147483648
    %v365 = vlaneseq
    %v366 = vand.u32 %v365, 127
    %vm367 = vcmp.eq.s32.totalorder %v366, 13
    %v368 = vmul.f32 %v364, %v353
    %369 = vadd.xlane.f32.xlu0 %v368
    %v370 = vpop.xlane.xlu0 %369
    %v371 = vsel %vm367, %v370, %v353
    %v372 = vmul.f32 %v364, %v357
    %373 = vadd.xlane.f32.xlu0 %v372
    %v374 = vpop.xlane.xlu0 %373
    %v375 = vsel %vm367, %v374, %v357
    %v376 = vmul.f32 %v364, %v361
    %377 = vadd.xlane.f32.xlu0 %v376
    %v378 = vpop.xlane.xlu0 %377
    %v379 = vsel %vm367, %v378, %v361
    %s380 = scalar_lea.vmem [#allocation2], 12
    %v381 = vld [vmem:[%s380] ss:$0 sm:$0xff]
    %v382 = vxor.u32 %v381, 2147483648
    %v383 = vlaneseq
    %v384 = vand.u32 %v383, 127
    %vm385 = vcmp.eq.s32.totalorder %v384, 12
    %v386 = vmul.f32 %v382, %v371
    %387 = vadd.xlane.f32.xlu0 %v386
    %v388 = vpop.xlane.xlu0 %387
    %v389 = vsel %vm385, %v388, %v371
    %v390 = vmul.f32 %v382, %v375
    %391 = vadd.xlane.f32.xlu0 %v390
    %v392 = vpop.xlane.xlu0 %391
    %v393 = vsel %vm385, %v392, %v375
    %v394 = vmul.f32 %v382, %v379
    %395 = vadd.xlane.f32.xlu0 %v394
    %v396 = vpop.xlane.xlu0 %395
    %v397 = vsel %vm385, %v396, %v379
    %s398 = scalar_lea.vmem [#allocation2], 11
    %v399 = vld [vmem:[%s398] ss:$0 sm:$0xff]
    %v400 = vxor.u32 %v399, 2147483648
    %v401 = vlaneseq
    %v402 = vand.u32 %v401, 127
    %vm403 = vcmp.eq.s32.totalorder %v402, 11
    %v404 = vmul.f32 %v400, %v389
    %405 = vadd.xlane.f32.xlu0 %v404
    %v406 = vpop.xlane.xlu0 %405
    %v407 = vsel %vm403, %v406, %v389
    %v408 = vmul.f32 %v400, %v393
    %409 = vadd.xlane.f32.xlu0 %v408
    %v410 = vpop.xlane.xlu0 %409
    %v411 = vsel %vm403, %v410, %v393
    %v412 = vmul.f32 %v400, %v397
    %413 = vadd.xlane.f32.xlu0 %v412
    %v414 = vpop.xlane.xlu0 %413
    %v415 = vsel %vm403, %v414, %v397
    %s416 = scalar_lea.vmem [#allocation2], 10
    %v417 = vld [vmem:[%s416] ss:$0 sm:$0xff]
    %v418 = vxor.u32 %v417, 2147483648
    %v419 = vlaneseq
    %v420 = vand.u32 %v419, 127
    %vm421 = vcmp.eq.s32.totalorder %v420, 10
    %v422 = vmul.f32 %v418, %v407
    %423 = vadd.xlane.f32.xlu0 %v422
    %v424 = vpop.xlane.xlu0 %423
    %v425 = vsel %vm421, %v424, %v407
    %v426 = vmul.f32 %v418, %v411
    %427 = vadd.xlane.f32.xlu0 %v426
    %v428 = vpop.xlane.xlu0 %427
    %v429 = vsel %vm421, %v428, %v411
    %v430 = vmul.f32 %v418, %v415
    %431 = vadd.xlane.f32.xlu0 %v430
    %v432 = vpop.xlane.xlu0 %431
    %v433 = vsel %vm421, %v432, %v415
    %s434 = scalar_lea.vmem [#allocation2], 9
    %v435 = vld [vmem:[%s434] ss:$0 sm:$0xff]
    %v436 = vxor.u32 %v435, 2147483648
    %v437 = vlaneseq
    %v438 = vand.u32 %v437, 127
    %vm439 = vcmp.eq.s32.totalorder %v438, 9
    %v440 = vmul.f32 %v436, %v425
    %441 = vadd.xlane.f32.xlu0 %v440
    %v442 = vpop.xlane.xlu0 %441
    %v443 = vsel %vm439, %v442, %v425
    %v444 = vmul.f32 %v436, %v429
    %445 = vadd.xlane.f32.xlu0 %v444
    %v446 = vpop.xlane.xlu0 %445
    %v447 = vsel %vm439, %v446, %v429
    %v448 = vmul.f32 %v436, %v433
    %449 = vadd.xlane.f32.xlu0 %v448
    %v450 = vpop.xlane.xlu0 %449
    %v451 = vsel %vm439, %v450, %v433
    %s452 = scalar_lea.vmem [#allocation2], 8
    %v453 = vld [vmem:[%s452] ss:$0 sm:$0xff]
    %v454 = vxor.u32 %v453, 2147483648
    %v455 = vlaneseq
    %v456 = vand.u32 %v455, 127
    %vm457 = vcmp.eq.s32.totalorder %v456, 8
    %v458 = vmul.f32 %v454, %v443
    %459 = vadd.xlane.f32.xlu0 %v458
    %v460 = vpop.xlane.xlu0 %459
    %v461 = vsel %vm457, %v460, %v443
    %v462 = vmul.f32 %v454, %v447
    %463 = vadd.xlane.f32.xlu0 %v462
    %v464 = vpop.xlane.xlu0 %463
    %v465 = vsel %vm457, %v464, %v447
    %v466 = vmul.f32 %v454, %v451
    %467 = vadd.xlane.f32.xlu0 %v466
    %v468 = vpop.xlane.xlu0 %467
    %v469 = vsel %vm457, %v468, %v451
    %s470 = scalar_lea.vmem [#allocation2], 7
    %v471 = vld [vmem:[%s470] ss:$0 sm:$0xff]
    %v472 = vxor.u32 %v471, 2147483648
    %v473 = vlaneseq
    %v474 = vand.u32 %v473, 127
    %vm475 = vcmp.eq.s32.totalorder %v474, 7
    %v476 = vmul.f32 %v472, %v118
    %477 = vadd.xlane.f32.xlu0 %v476
    %v478 = vpop.xlane.xlu0 %477
    %v479 = vsel %vm475, %v478, %v118
    %v480 = vmul.f32 %v472, %v461
    %481 = vadd.xlane.f32.xlu0 %v480
    %v482 = vpop.xlane.xlu0 %481
    %v483 = vsel %vm475, %v482, %v461
    %v484 = vmul.f32 %v472, %v465
    %485 = vadd.xlane.f32.xlu0 %v484
    %v486 = vpop.xlane.xlu0 %485
    %v487 = vsel %vm475, %v486, %v465
    %v488 = vmul.f32 %v472, %v469
    %489 = vadd.xlane.f32.xlu0 %v488
    %v490 = vpop.xlane.xlu0 %489
    %v491 = vsel %vm475, %v490, %v469
    %s492 = scalar_lea.vmem [#allocation2], 6
    %v493 = vld [vmem:[%s492] ss:$0 sm:$0xff]
    %v494 = vxor.u32 %v493, 2147483648
    %v495 = vlaneseq
    %v496 = vand.u32 %v495, 127
    %vm497 = vcmp.eq.s32.totalorder %v496, 6
    %v498 = vmul.f32 %v494, %v479
    %499 = vadd.xlane.f32.xlu0 %v498
    %v500 = vpop.xlane.xlu0 %499
    %v501 = vsel %vm497, %v500, %v479
    %v502 = vmul.f32 %v494, %v483
    %503 = vadd.xlane.f32.xlu0 %v502
    %v504 = vpop.xlane.xlu0 %503
    %v505 = vsel %vm497, %v504, %v483
    %v506 = vmul.f32 %v494, %v487
    %507 = vadd.xlane.f32.xlu0 %v506
    %v508 = vpop.xlane.xlu0 %507
    %v509 = vsel %vm497, %v508, %v487
    %v510 = vmul.f32 %v494, %v491
    %511 = vadd.xlane.f32.xlu0 %v510
    %v512 = vpop.xlane.xlu0 %511
    %v513 = vsel %vm497, %v512, %v491
    %s514 = scalar_lea.vmem [#allocation2], 5
    %v515 = vld [vmem:[%s514] ss:$0 sm:$0xff]
    %v516 = vxor.u32 %v515, 2147483648
    %v517 = vlaneseq
    %v518 = vand.u32 %v517, 127
    %vm519 = vcmp.eq.s32.totalorder %v518, 5
    %v520 = vmul.f32 %v516, %v501
    %521 = vadd.xlane.f32.xlu0 %v520
    %v522 = vpop.xlane.xlu0 %521
    %v523 = vsel %vm519, %v522, %v501
    %v524 = vmul.f32 %v516, %v505
    %525 = vadd.xlane.f32.xlu0 %v524
    %v526 = vpop.xlane.xlu0 %525
    %v527 = vsel %vm519, %v526, %v505
    %v528 = vmul.f32 %v516, %v509
    %529 = vadd.xlane.f32.xlu0 %v528
    %v530 = vpop.xlane.xlu0 %529
    %v531 = vsel %vm519, %v530, %v509
    %v532 = vmul.f32 %v516, %v513
    %533 = vadd.xlane.f32.xlu0 %v532
    %v534 = vpop.xlane.xlu0 %533
    %v535 = vsel %vm519, %v534, %v513
    %s536 = scalar_lea.vmem [#allocation2], 4
    %v537 = vld [vmem:[%s536] ss:$0 sm:$0xff]
    %v538 = vxor.u32 %v537, 2147483648
    %v539 = vlaneseq
    %v540 = vand.u32 %v539, 127
    %vm541 = vcmp.eq.s32.totalorder %v540, 4
    %v542 = vmul.f32 %v538, %v523
    %543 = vadd.xlane.f32.xlu0 %v542
    %v544 = vpop.xlane.xlu0 %543
    %v545 = vsel %vm541, %v544, %v523
    %v546 = vmul.f32 %v538, %v527
    %547 = vadd.xlane.f32.xlu0 %v546
    %v548 = vpop.xlane.xlu0 %547
    %v549 = vsel %vm541, %v548, %v527
    %v550 = vmul.f32 %v538, %v531
    %551 = vadd.xlane.f32.xlu0 %v550
    %v552 = vpop.xlane.xlu0 %551
    %v553 = vsel %vm541, %v552, %v531
    %v554 = vmul.f32 %v538, %v535
    %555 = vadd.xlane.f32.xlu0 %v554
    %v556 = vpop.xlane.xlu0 %555
    %v557 = vsel %vm541, %v556, %v535
    %s558 = scalar_lea.vmem [#allocation2], 3
    %v559 = vld [vmem:[%s558] ss:$0 sm:$0xff]
    %v560 = vxor.u32 %v559, 2147483648
    %v561 = vlaneseq
    %v562 = vand.u32 %v561, 127
    %vm563 = vcmp.eq.s32.totalorder %v562, 3
    %v564 = vmul.f32 %v560, %v545
    %565 = vadd.xlane.f32.xlu0 %v564
    %v566 = vpop.xlane.xlu0 %565
    %v567 = vsel %vm563, %v566, %v545
    %v568 = vmul.f32 %v560, %v549
    %569 = vadd.xlane.f32.xlu0 %v568
    %v570 = vpop.xlane.xlu0 %569
    %v571 = vsel %vm563, %v570, %v549
    %v572 = vmul.f32 %v560, %v553
    %573 = vadd.xlane.f32.xlu0 %v572
    %v574 = vpop.xlane.xlu0 %573
    %v575 = vsel %vm563, %v574, %v553
    %v576 = vmul.f32 %v560, %v557
    %577 = vadd.xlane.f32.xlu0 %v576
    %v578 = vpop.xlane.xlu0 %577
    %v579 = vsel %vm563, %v578, %v557
    %s580 = scalar_lea.vmem [#allocation2], 2
    %v581 = vld [vmem:[%s580] ss:$0 sm:$0xff]
    %v582 = vxor.u32 %v581, 2147483648
    %v583 = vlaneseq
    %v584 = vand.u32 %v583, 127
    %vm585 = vcmp.eq.s32.totalorder %v584, 2
    %v586 = vmul.f32 %v582, %v567
    %587 = vadd.xlane.f32.xlu0 %v586
    %v588 = vpop.xlane.xlu0 %587
    %v589 = vsel %vm585, %v588, %v567
    %v590 = vmul.f32 %v582, %v571
    %591 = vadd.xlane.f32.xlu0 %v590
    %v592 = vpop.xlane.xlu0 %591
    %v593 = vsel %vm585, %v592, %v571
    %v594 = vmul.f32 %v582, %v575
    %595 = vadd.xlane.f32.xlu0 %v594
    %v596 = vpop.xlane.xlu0 %595
    %v597 = vsel %vm585, %v596, %v575
    %v598 = vmul.f32 %v582, %v579
    %599 = vadd.xlane.f32.xlu0 %v598
    %v600 = vpop.xlane.xlu0 %599
    %v601 = vsel %vm585, %v600, %v579
    %s602 = scalar_lea.vmem [#allocation2], 1
    %v603 = vld [vmem:[%s602] ss:$0 sm:$0xff]
    %v604 = vxor.u32 %v603, 2147483648
    %v605 = vlaneseq
    %v606 = vand.u32 %v605, 127
    %vm607 = vcmp.eq.s32.totalorder %v606, 1
    %v608 = vmul.f32 %v604, %v589
    %609 = vadd.xlane.f32.xlu0 %v608
    %v610 = vpop.xlane.xlu0 %609
    %v611 = vsel %vm607, %v610, %v589
    %v612 = vmul.f32 %v604, %v593
    %613 = vadd.xlane.f32.xlu0 %v612
    %v614 = vpop.xlane.xlu0 %613
    %v615 = vsel %vm607, %v614, %v593
    %v616 = vmul.f32 %v604, %v597
    %617 = vadd.xlane.f32.xlu0 %v616
    %v618 = vpop.xlane.xlu0 %617
    %v619 = vsel %vm607, %v618, %v597
    %v620 = vmul.f32 %v604, %v601
    %621 = vadd.xlane.f32.xlu0 %v620
    %v622 = vpop.xlane.xlu0 %621
    %v623 = vsel %vm607, %v622, %v601
    %v624 = vld [vmem:[#allocation2] ss:$0 sm:$0xff]
    %v625 = vxor.u32 %v624, 2147483648
    %v626 = vlaneseq
    %v627 = vand.u32 %v626, 127
    %vm628 = vcmp.eq.s32.totalorder %v627, 0
    %v629 = vmul.f32 %v625, %v611
    %630 = vadd.xlane.f32.xlu0 %v629
    %v631 = vpop.xlane.xlu0 %630
    %v632 = vsel %vm628, %v631, %v611
    %v633 = vmul.f32 %v625, %v615
    %634 = vadd.xlane.f32.xlu0 %v633
    %v635 = vpop.xlane.xlu0 %634
    %v636 = vsel %vm628, %v635, %v615
    %v637 = vmul.f32 %v625, %v619
    %638 = vadd.xlane.f32.xlu0 %v637
    %v639 = vpop.xlane.xlu0 %638
    %v640 = vsel %vm628, %v639, %v619
    %v641 = vmul.f32 %v625, %v623
    %642 = vadd.xlane.f32.xlu0 %v641
    %v643 = vpop.xlane.xlu0 %642
    %v644 = vsel %vm628, %v643, %v623
    %v645 = vrcp.pop %v57
    %v646 = vmul.f32 %v632, %v645
    %vm647 = vweird.f32 %v57
    %v648 = vsel %vm647, %v632, %v646
    %649 = vst [vmem:[#allocation1] sm:$0xff] %v648
    %v650 = vrcp.pop %v73
    %v651 = vmul.f32 %v636, %v650
    %vm652 = vweird.f32 %v73
    %v653 = vsel %vm652, %v636, %v651
    %s654 = scalar_lea.vmem [#allocation1], 8
    %655 = vst [vmem:[%s654] sm:$0xff] %v653
    %v656 = vrcp.pop %v89
    %v657 = vmul.f32 %v640, %v656
    %vm658 = vweird.f32 %v89
    %v659 = vsel %vm658, %v640, %v657
    %s660 = scalar_lea.vmem [#allocation1], 16
    %661 = vst [vmem:[%s660] sm:$0xff] %v659
    %v662 = vrcp.pop %v105
    %v663 = vmul.f32 %v644, %v662
    %vm664 = vweird.f32 %v105
    %v665 = vsel %vm664, %v644, %v663
    %s666 = scalar_lea.vmem [#allocation1], 24
    %667 = vst [vmem:[%s666] sm:$0xff] %v665
    // Predicated region
    $region36: #{custom-call.12} parent=1 // pred_check
      _
    $region37: #{custom-call.12} parent=1 // pred_check_branch
      %669 = sbr.rel (0) target = $region39
    $region38: #{custom-call.12} parent=1 // pred_region
      // Predicated region
      $region40: #{custom-call.12} parent=38 // pred_check
        _
      $region41: #{custom-call.12} parent=38 // pred_check_branch
        %671 = sbr.rel (0) target = $region43
      $region42: #{custom-call.12} parent=38 // pred_region
        // Predicated region
        $region55: #{custom-call.12} parent=42 // pred_check
          _
        $region56: #{custom-call.12} parent=42 // pred_check_branch
          %693 = sbr.rel (0) target = $region58
        $region57: #{custom-call.12} parent=42 // pred_region
          loop: start=0, step=1, limit=1
          $region59: #{custom-call.12} parent=57 // loop_pre_header
            _
          $region60: #{custom-call.12} parent=57 // loop_header
            %s695 = sphi 0, %s699
            %p696 = scmp.ge.s32.totalorder %s695, 1
            %s700 = sphi [#allocation1], [#allocation1]
            %s701 = sphi %s1, %s1
          $region61: #{custom-call.12} parent=57 // loop_header_branch
            %698 = sbr.rel (%p696) target = $region65
          $region62: #{custom-call.12} parent=57 // loop_body
            %v702 = vld [vmem:[%s700] sm:$0xff]
            %703 = vst [vmem:[%s701] sm:$0xff] %v702
            %v704 = vld [vmem:[%s700 + $0x8] sm:$0xff]
            %705 = vst [vmem:[%s701 + $0x8] sm:$0xff] %v704
            %v706 = vld [vmem:[%s700 + $0x10] sm:$0xff]
            %707 = vst [vmem:[%s701 + $0x10] sm:$0xff] %v706
            %v708 = vld [vmem:[%s700 + $0x18] sm:$0xff]
            %709 = vst [vmem:[%s701 + $0x18] sm:$0xff] %v708
          $region63: #{custom-call.12} parent=57 // loop_footer
            %s699 = sadd.s32 1, %s695
          $region64: #{custom-call.12} parent=57 // loop_footer_branch
            %694 = sbr.rel target = $region60
          $region65: #{custom-call.12} parent=57 // loop_exit
            _
        $region58: #{custom-call.12} parent=42 // pred_fallthru
          _
        // Predicated region
        $region66: #{custom-call.12} parent=42 // pred_check
          _
        $region67: #{custom-call.12} parent=42 // pred_check_branch
          %711 = sbr.rel target = $region69
        $region68: #{custom-call.12} parent=42 // pred_region
          _
        $region69: #{custom-call.12} parent=42 // pred_fallthru
          _
      $region43: #{custom-call.12} parent=38 // pred_fallthru
        _
      // Predicated region
      $region44: #{custom-call.12} parent=38 // pred_check
        _
      $region45: #{custom-call.12} parent=38 // pred_check_branch
        %673 = sbr.rel target = $region47
      $region46: #{custom-call.12} parent=38 // pred_region
        %s675 = ssub.s32 256, 1
        loop: start=0, step=1, limit=1
        $region48: #{custom-call.12} parent=46 // loop_pre_header
          _
        $region49: #{custom-call.12} parent=46 // loop_header
          %s677 = sphi 0, %s681
          %p678 = scmp.ge.s32.totalorder %s677, 1
          %s682 = sphi [#allocation1], [#allocation1]
          %s683 = sphi %s1, %s1
        $region50: #{custom-call.12} parent=46 // loop_header_branch
          %680 = sbr.rel (%p678) target = $region54
        $region51: #{custom-call.12} parent=46 // loop_body
          %v684 = vld [vmem:[%s682] sm:%s675]
          %685 = vst [vmem:[%s683] sm:%s675] %v684
          %v686 = vld [vmem:[%s682 + $0x8] sm:%s675]
          %687 = vst [vmem:[%s683 + $0x8] sm:%s675] %v686
          %v688 = vld [vmem:[%s682 + $0x10] sm:%s675]
          %689 = vst [vmem:[%s683 + $0x10] sm:%s675] %v688
          %v690 = vld [vmem:[%s682 + $0x18] sm:%s675]
          %691 = vst [vmem:[%s683 + $0x18] sm:%s675] %v690
        $region52: #{custom-call.12} parent=46 // loop_footer
          %s681 = sadd.s32 1, %s677
        $region53: #{custom-call.12} parent=46 // loop_footer_branch
          %676 = sbr.rel target = $region49
        $region54: #{custom-call.12} parent=46 // loop_exit
          _
      $region47: #{custom-call.12} parent=38 // pred_fallthru
        _
    $region39: #{custom-call.12} parent=1 // pred_fallthru
      _
    %712 = vnop

// kernel: kalman_vae_forward.1
$region0: #{kalman_vae_forward.1}
  #allocation0 [shape = 'u32[]', space=smem, size = 0x4, offset = 0x4, fixed_abs, tag = 'smem constant byte address 0x4 - core index']
  #allocation1 [shape = 'u32[144,128]{1,0:T(1,128)}', space=vmem, size = 0x12000, scoped, tag = 'internal scratch']
  #allocation2 [shape = 'f32[16,32]{1,0:T(8,128)}', space=vmem, size = 0x2000, scoped, tag = 'scratch operand']
  %s0 = inlined_call_operand.vmem [shape: f32[1,256,32], index: 0, kind: input, shape index: {}]
  %s1 = inlined_call_operand.vmem [shape: f32[1,256,32], index: 1, kind: input, shape index: {}]
  %s2 = inlined_call_operand.vmem [shape: bf16[32,256], index: 2, kind: input, shape index: {}]
  %s3 = inlined_call_operand.vmem [shape: f32[1,256], index: 3, kind: input, shape index: {}]
  %s4 = inlined_call_operand.vmem [shape: bf16[256,64], index: 4, kind: input, shape index: {}]
  %s5 = inlined_call_operand.vmem [shape: f32[1,64], index: 5, kind: input, shape index: {}]
  %s6 = inlined_call_operand.vmem [shape: f32[64,32], index: 6, kind: input, shape index: {}]
  %s7 = inlined_call_operand.vmem [shape: f32[512,512], index: 7, kind: input, shape index: {}]
  %s8 = inlined_call_operand.vmem [shape: f32[32,512], index: 8, kind: input, shape index: {}]
  %s9 = inlined_call_operand.vmem [shape: bf16[32,256], index: 9, kind: input, shape index: {}]
  %s10 = inlined_call_operand.vmem [shape: f32[1,256], index: 10, kind: input, shape index: {}]
  %s11 = inlined_call_operand.vmem [shape: bf16[256,32], index: 11, kind: input, shape index: {}]
  %s12 = inlined_call_operand.vmem [shape: f32[1,32], index: 12, kind: input, shape index: {}]
  %s13 = inlined_call_operand.vmem [shape: f32[1,256,128], index: 13, kind: output, shape index: {}]
  %s14 = sld [smem:[#allocation0]]
  $region66: #{kalman_vae_forward.1} parent=0
    _
  %s16 = ssub.s32 1, %s14
  %s17 = scalar_select 0, %s16, %s14
  // Predicated region
  $region2: #{kalman_vae_forward.1} parent=0 // pred_check
    _
  $region3: #{kalman_vae_forward.1} parent=0 // pred_check_branch
    %19 = sbr.rel (0) target = $region5
  $region4: #{kalman_vae_forward.1} parent=0 // pred_region
    _
  $region5: #{kalman_vae_forward.1} parent=0 // pred_fallthru
    _
  // Predicated region
  $region6: #{kalman_vae_forward.1} parent=0 // pred_check
    _
  $region7: #{kalman_vae_forward.1} parent=0 // pred_check_branch
    %21 = sbr.rel (0) target = $region9
  $region8: #{kalman_vae_forward.1} parent=0 // pred_region
    _
  $region9: #{kalman_vae_forward.1} parent=0 // pred_fallthru
    _
  // Predicated region
  $region10: #{kalman_vae_forward.1} parent=0 // pred_check
    _
  $region11: #{kalman_vae_forward.1} parent=0 // pred_check_branch
    %23 = sbr.rel (0) target = $region13
  $region12: #{kalman_vae_forward.1} parent=0 // pred_region
    _
  $region13: #{kalman_vae_forward.1} parent=0 // pred_fallthru
    _
  // Predicated region
  $region14: #{kalman_vae_forward.1} parent=0 // pred_check
    _
  $region15: #{kalman_vae_forward.1} parent=0 // pred_check_branch
    %25 = sbr.rel (0) target = $region17
  $region16: #{kalman_vae_forward.1} parent=0 // pred_region
    _
  $region17: #{kalman_vae_forward.1} parent=0 // pred_fallthru
    _
  // Predicated region
  $region18: #{kalman_vae_forward.1} parent=0 // pred_check
    _
  $region19: #{kalman_vae_forward.1} parent=0 // pred_check_branch
    %27 = sbr.rel (0) target = $region21
  $region20: #{kalman_vae_forward.1} parent=0 // pred_region
    _
  $region21: #{kalman_vae_forward.1} parent=0 // pred_fallthru
    _
  // Predicated region
  $region22: #{kalman_vae_forward.1} parent=0 // pred_check
    _
  $region23: #{kalman_vae_forward.1} parent=0 // pred_check_branch
    %29 = sbr.rel (0) target = $region25
  $region24: #{kalman_vae_forward.1} parent=0 // pred_region
    _
  $region25: #{kalman_vae_forward.1} parent=0 // pred_fallthru
    _
  // Predicated region
  $region26: #{kalman_vae_forward.1} parent=0 // pred_check
    _
  $region27: #{kalman_vae_forward.1} parent=0 // pred_check_branch
    %31 = sbr.rel (0) target = $region29
  $region28: #{kalman_vae_forward.1} parent=0 // pred_region
    _
  $region29: #{kalman_vae_forward.1} parent=0 // pred_fallthru
    _
  // Predicated region
  $region30: #{kalman_vae_forward.1} parent=0 // pred_check
    _
  $region31: #{kalman_vae_forward.1} parent=0 // pred_check_branch
    %33 = sbr.rel (0) target = $region33
  $region32: #{kalman_vae_forward.1} parent=0 // pred_region
    _
  $region33: #{kalman_vae_forward.1} parent=0 // pred_fallthru
    _
  // Predicated region
  $region34: #{kalman_vae_forward.1} parent=0 // pred_check
    _
  $region35: #{kalman_vae_forward.1} parent=0 // pred_check_branch
    %35 = sbr.rel (0) target = $region37
  $region36: #{kalman_vae_forward.1} parent=0 // pred_region
    _
  $region37: #{kalman_vae_forward.1} parent=0 // pred_fallthru
    _
  // Predicated region
  $region38: #{kalman_vae_forward.1} parent=0 // pred_check
    _
  $region39: #{kalman_vae_forward.1} parent=0 // pred_check_branch
    %37 = sbr.rel (0) target = $region41
  $region40: #{kalman_vae_forward.1} parent=0 // pred_region
    _
  $region41: #{kalman_vae_forward.1} parent=0 // pred_fallthru
    _
  // Predicated region
  $region42: #{kalman_vae_forward.1} parent=0 // pred_check
    _
  $region43: #{kalman_vae_forward.1} parent=0 // pred_check_branch
    %39 = sbr.rel (0) target = $region45
  $region44: #{kalman_vae_forward.1} parent=0 // pred_region
    _
  $region45: #{kalman_vae_forward.1} parent=0 // pred_fallthru
    _
  // Predicated region
  $region46: #{kalman_vae_forward.1} parent=0 // pred_check
    _
  $region47: #{kalman_vae_forward.1} parent=0 // pred_check_branch
    %41 = sbr.rel (0) target = $region49
  $region48: #{kalman_vae_forward.1} parent=0 // pred_region
    _
  $region49: #{kalman_vae_forward.1} parent=0 // pred_fallthru
    _
  // Predicated region
  $region50: #{kalman_vae_forward.1} parent=0 // pred_check
    _
  $region51: #{kalman_vae_forward.1} parent=0 // pred_check_branch
    %43 = sbr.rel (0) target = $region53
  $region52: #{kalman_vae_forward.1} parent=0 // pred_region
    _
  $region53: #{kalman_vae_forward.1} parent=0 // pred_fallthru
    _
  %p45 = scmp.eq.s32.totalorder 0, 0
  // Predicated region
  $region54: #{kalman_vae_forward.1} parent=0 // pred_check
    %p46 = pneg %p45
  $region55: #{kalman_vae_forward.1} parent=0 // pred_check_branch
    %48 = sbr.rel (%p46) target = $region57
  $region56: #{kalman_vae_forward.1} parent=0 // pred_region
    %vm49 = vcmask 261120
    %50 = vst.msk [vmem:[#allocation2] sm:$0xff] %vm49, 0.0
    %51 = vst.msk [vmem:[#allocation2 + $0x8] sm:$0xff] %vm49, 0.0
  $region57: #{kalman_vae_forward.1} parent=0 // pred_fallthru
    _
  %v52 = vld [vmem:[%s0] sm:$0xff]
  %v53 = vld [vmem:[%s0 + $0x8] sm:$0xff]
  %v54 = vld [vmem:[%s0 + $0x10] sm:$0xff]
  %v55 = vld [vmem:[%s0 + $0x18] sm:$0xff]
  %v56 = vld [vmem:[%s0 + $0x20] sm:$0xff]
  %v57 = vld [vmem:[%s0 + $0x28] sm:$0xff]
  %v58 = vld [vmem:[%s0 + $0x30] sm:$0xff]
  %v59 = vld [vmem:[%s0 + $0x38] sm:$0xff]
  %v60 = vld [vmem:[%s0 + $0x40] sm:$0xff]
  %v61 = vld [vmem:[%s0 + $0x48] sm:$0xff]
  %v62 = vld [vmem:[%s0 + $0x50] sm:$0xff]
  %v63 = vld [vmem:[%s0 + $0x58] sm:$0xff]
  %v64 = vld [vmem:[%s0 + $0x60] sm:$0xff]
  %v65 = vld [vmem:[%s0 + $0x68] sm:$0xff]
  %v66 = vld [vmem:[%s0 + $0x70] sm:$0xff]
  %v67 = vld [vmem:[%s0 + $0x78] sm:$0xff]
  %v68 = vld [vmem:[%s0 + $0x80] sm:$0xff]
  %v69 = vld [vmem:[%s0 + $0x88] sm:$0xff]
  %v70 = vld [vmem:[%s0 + $0x90] sm:$0xff]
  %v71 = vld [vmem:[%s0 + $0x98] sm:$0xff]
  %v72 = vld [vmem:[%s0 + $0xa0] sm:$0xff]
  %v73 = vld [vmem:[%s0 + $0xa8] sm:$0xff]
  %v74 = vld [vmem:[%s0 + $0xb0] sm:$0xff]
  %v75 = vld [vmem:[%s0 + $0xb8] sm:$0xff]
  %v76 = vld [vmem:[%s0 + $0xc0] sm:$0xff]
  %v77 = vld [vmem:[%s0 + $0xc8] sm:$0xff]
  %v78 = vld [vmem:[%s0 + $0xd0] sm:$0xff]
  %v79 = vld [vmem:[%s0 + $0xd8] sm:$0xff]
  %v80 = vld [vmem:[%s0 + $0xe0] sm:$0xff]
  %v81 = vld [vmem:[%s0 + $0xe8] sm:$0xff]
  %v82 = vld [vmem:[%s0 + $0xf0] sm:$0xff]
  %v83 = vld [vmem:[%s0 + $0xf8] sm:$0xff]
  %v84 = vld [vmem:[%s1] sm:$0xff]
  %v85 = vld [vmem:[%s1 + $0x8] sm:$0xff]
  %v86 = vld [vmem:[%s1 + $0x10] sm:$0xff]
  %v87 = vld [vmem:[%s1 + $0x18] sm:$0xff]
  %v88 = vld [vmem:[%s1 + $0x20] sm:$0xff]
  %v89 = vld [vmem:[%s1 + $0x28] sm:$0xff]
  %v90 = vld [vmem:[%s1 + $0x30] sm:$0xff]
  %v91 = vld [vmem:[%s1 + $0x38] sm:$0xff]
  %v92 = vld [vmem:[%s1 + $0x40] sm:$0xff]
  %v93 = vld [vmem:[%s1 + $0x48] sm:$0xff]
  %v94 = vld [vmem:[%s1 + $0x50] sm:$0xff]
  %v95 = vld [vmem:[%s1 + $0x58] sm:$0xff]
  %v96 = vld [vmem:[%s1 + $0x60] sm:$0xff]
  %v97 = vld [vmem:[%s1 + $0x68] sm:$0xff]
  %v98 = vld [vmem:[%s1 + $0x70] sm:$0xff]
  %v99 = vld [vmem:[%s1 + $0x78] sm:$0xff]
  %v100 = vld [vmem:[%s1 + $0x80] sm:$0xff]
  %v101 = vld [vmem:[%s1 + $0x88] sm:$0xff]
  %v102 = vld [vmem:[%s1 + $0x90] sm:$0xff]
  %v103 = vld [vmem:[%s1 + $0x98] sm:$0xff]
  %v104 = vld [vmem:[%s1 + $0xa0] sm:$0xff]
  %v105 = vld [vmem:[%s1 + $0xa8] sm:$0xff]
  %v106 = vld [vmem:[%s1 + $0xb0] sm:$0xff]
  %v107 = vld [vmem:[%s1 + $0xb8] sm:$0xff]
  %v108 = vld [vmem:[%s1 + $0xc0] sm:$0xff]
  %v109 = vld [vmem:[%s1 + $0xc8] sm:$0xff]
  %v110 = vld [vmem:[%s1 + $0xd0] sm:$0xff]
  %v111 = vld [vmem:[%s1 + $0xd8] sm:$0xff]
  %v112 = vld [vmem:[%s1 + $0xe0] sm:$0xff]
  %v113 = vld [vmem:[%s1 + $0xe8] sm:$0xff]
  %v114 = vld [vmem:[%s1 + $0xf0] sm:$0xff]
  %v115 = vld [vmem:[%s1 + $0xf8] sm:$0xff]
  %v116 = vld [vmem:[%s2] sm:$0xff]
  %v117 = vld [vmem:[%s2 + $0x8] sm:$0xff]
  %v118 = vld [vmem:[%s2 + $0x10] sm:$0xff]
  %v119 = vld [vmem:[%s2 + $0x18] sm:$0xff]
  %v120 = vpack.c.bf16 %v53, %v52
  %v121 = vpack.c.bf16 %v55, %v54
  %v122 = vpack.c.bf16 %v57, %v56
  %v123 = vpack.c.bf16 %v59, %v58
  %v124 = vpack.c.bf16 %v61, %v60
  %v125 = vpack.c.bf16 %v63, %v62
  %v126 = vpack.c.bf16 %v65, %v64
  %v127 = vpack.c.bf16 %v67, %v66
  %v128 = vpack.c.bf16 %v69, %v68
  %v129 = vpack.c.bf16 %v71, %v70
  %v130 = vpack.c.bf16 %v73, %v72
  %v131 = vpack.c.bf16 %v75, %v74
  %v132 = vpack.c.bf16 %v77, %v76
  %v133 = vpack.c.bf16 %v79, %v78
  %v134 = vpack.c.bf16 %v81, %v80
  %v135 = vpack.c.bf16 %v83, %v82
  %v136 = vld [vmem:[%s3] sm:$0x3]
  %v138 = vlaneseq
  %v139 = vshrl.u32 %v138, 7
  %v140 = vsub.s32 0, %v139
  %v141 = vrot.slane %v136, %v140
  %v142 = vlaneseq
  %v143 = vshrl.u32 %v142, 7
  %v144 = vsub.s32 1, %v143
  %v145 = vrot.slane %v136, %v144
  %v152 = vunpack.c.l.b16 %v116
  %v153 = vunpack.c.h.b16 %v116
  %v154 = vunpack.c.l.b16 %v117
  %v155 = vunpack.c.h.b16 %v117
  %v156 = vunpack.c.l.b16 %v118
  %v157 = vunpack.c.h.b16 %v118
  %v158 = vunpack.c.l.b16 %v119
  %v159 = vunpack.c.h.b16 %v119
  %v160 = vpack.c.b16 %v154, %v152
  %v161 = vpack.c.b16 %v155, %v153
  %v162 = vpack.c.b16 %v158, %v156
  %v163 = vpack.c.b16 %v159, %v157
  %vm168 = vcmask 261120
  %v170 = vsel %vm168, %v120, 0
  %v173 = vsel %vm168, %v121, 0
  %v176 = vsel %vm168, %v122, 0
  %v179 = vsel %vm168, %v123, 0
  %v182 = vsel %vm168, %v124, 0
  %v185 = vsel %vm168, %v125, 0
  %v188 = vsel %vm168, %v126, 0
  %v191 = vsel %vm168, %v127, 0
  %v194 = vsel %vm168, %v128, 0
  %v197 = vsel %vm168, %v129, 0
  %v200 = vsel %vm168, %v130, 0
  %v203 = vsel %vm168, %v131, 0
  %v206 = vsel %vm168, %v132, 0
  %v209 = vsel %vm168, %v133, 0
  %v212 = vsel %vm168, %v134, 0
  %v215 = vsel %vm168, %v135, 0
  %217 = vmatprep.subr.bf16.mxu0 0
  %218 = vmatpush1.bf16.msra.mxu0 0
  %219 = vmatprep.subr.bf16.mxu0 0
  %220 = vmatpush1.bf16.msra.mxu0 0
  %221 = vmatprep.subr.bf16.mxu0 0
  %222 = vmatpush1.bf16.msra.mxu0 0
  %223 = vmatprep.subr.bf16.mxu0 0
  %224 = vmatpush1.bf16.msra.mxu0 0
  %225 = vmatprep.subr.bf16.mxu0 0
  %226 = vmatpush1.bf16.msra.mxu0 0
  %227 = vmatprep.subr.bf16.mxu0 0
  %228 = vmatpush1.bf16.msra.mxu0 0
  %229 = vmatprep.subr.bf16.mxu0 %v163
  %230 = vmatpush1.bf16.msra.mxu0 %v162
  %231 = vmatprep.subr.bf16.mxu0 %v161
  %232 = vmatpush1.bf16.msra.mxu0 %v160
  %233 = vmatprep.subr.bf16.mxu0 0
  %234 = vmatpush2.bf16.msra.mxu0 0
  %235 = vmatprep.subr.bf16.mxu0 0
  %236 = vmatpush2.bf16.msra.mxu0 0
  %237 = vmatprep.subr.bf16.mxu0 0
  %238 = vmatpush2.bf16.msra.mxu0 0
  %239 = vmatprep.subr.bf16.mxu0 0
  %240 = vmatpush2.bf16.msra.mxu0 0
  %241 = vmatprep.subr.bf16.mxu0 0
  %242 = vmatpush2.bf16.msra.mxu0 0
  %243 = vmatprep.subr.bf16.mxu0 0
  %244 = vmatpush2.bf16.msra.mxu0 0
  %245 = vmatprep.subr.bf16.mxu0 0
  %246 = vmatpush2.bf16.msra.mxu0 0
  %247 = vmatprep.subr.bf16.mxu0 0
  %248 = vmatpush2.bf16.msra.mxu0 0
  %249 = vmatprep.mubr.bf16.mxu0 0
  %250 = vmatmul.mubr.bf16.gmra.mxu0 %v170
  %v251 = vpop.f32.mrf.mxu0
  %v252 = vadd.f32 %v141, %v251
  %v253 = vpop.f32.mrf.mxu0
  %v254 = vadd.f32 %v145, %v253
  %v255 = vpop.f32.mrf.mxu0
  %v256 = vadd.f32 %v141, %v255
  %v257 = vpop.f32.mrf.mxu0
  %v258 = vadd.f32 %v145, %v257
  %259 = vmatprep.mubr.bf16.mxu0 0
  %260 = vmatmul.mubr.bf16.gmra.mxu0 %v173
  %v261 = vpop.f32.mrf.mxu0
  %v262 = vadd.f32 %v141, %v261
  %v263 = vpop.f32.mrf.mxu0
  %v264 = vadd.f32 %v145, %v263
  %v265 = vpop.f32.mrf.mxu0
  %v266 = vadd.f32 %v141, %v265
  %v267 = vpop.f32.mrf.mxu0
  %v268 = vadd.f32 %v145, %v267
  %269 = vmatprep.mubr.bf16.mxu0 0
  %270 = vmatmul.mubr.bf16.gmra.mxu0 %v176
  %v271 = vpop.f32.mrf.mxu0
  %v272 = vadd.f32 %v141, %v271
  %v273 = vpop.f32.mrf.mxu0
  %v274 = vadd.f32 %v145, %v273
  %v275 = vpop.f32.mrf.mxu0
  %v276 = vadd.f32 %v141, %v275
  %v277 = vpop.f32.mrf.mxu0
  %v278 = vadd.f32 %v145, %v277
  %279 = vmatprep.mubr.bf16.mxu0 0
  %280 = vmatmul.mubr.bf16.gmra.mxu0 %v179
  %v281 = vpop.f32.mrf.mxu0
  %v282 = vadd.f32 %v141, %v281
  %v283 = vpop.f32.mrf.mxu0
  %v284 = vadd.f32 %v145, %v283
  %v285 = vpop.f32.mrf.mxu0
  %v286 = vadd.f32 %v141, %v285
  %v287 = vpop.f32.mrf.mxu0
  %v288 = vadd.f32 %v145, %v287
  %289 = vmatprep.mubr.bf16.mxu0 0
  %290 = vmatmul.mubr.bf16.gmra.mxu0 %v182
  %v291 = vpop.f32.mrf.mxu0
  %v292 = vadd.f32 %v141, %v291
  %v293 = vpop.f32.mrf.mxu0
  %v294 = vadd.f32 %v145, %v293
  %v295 = vpop.f32.mrf.mxu0
  %v296 = vadd.f32 %v141, %v295
  %v297 = vpop.f32.mrf.mxu0
  %v298 = vadd.f32 %v145, %v297
  %299 = vmatprep.mubr.bf16.mxu0 0
  %300 = vmatmul.mubr.bf16.gmra.mxu0 %v185
  %v301 = vpop.f32.mrf.mxu0
  %v302 = vadd.f32 %v141, %v301
  %v303 = vpop.f32.mrf.mxu0
  %v304 = vadd.f32 %v145, %v303
  %v305 = vpop.f32.mrf.mxu0
  %v306 = vadd.f32 %v141, %v305
  %v307 = vpop.f32.mrf.mxu0
  %v308 = vadd.f32 %v145, %v307
  %309 = vmatprep.mubr.bf16.mxu0 0
  %310 = vmatmul.mubr.bf16.gmra.mxu0 %v188
  %v311 = vpop.f32.mrf.mxu0
  %v312 = vadd.f32 %v141, %v311
  %v313 = vpop.f32.mrf.mxu0
  %v314 = vadd.f32 %v145, %v313
  %v315 = vpop.f32.mrf.mxu0
  %v316 = vadd.f32 %v141, %v315
  %v317 = vpop.f32.mrf.mxu0
  %v318 = vadd.f32 %v145, %v317
  %319 = vmatprep.mubr.bf16.mxu0 0
  %320 = vmatmul.mubr.bf16.gmra.mxu0 %v191
  %v321 = vpop.f32.mrf.mxu0
  %v322 = vadd.f32 %v141, %v321
  %v323 = vpop.f32.mrf.mxu0
  %v324 = vadd.f32 %v145, %v323
  %v325 = vpop.f32.mrf.mxu0
  %v326 = vadd.f32 %v141, %v325
  %v327 = vpop.f32.mrf.mxu0
  %v328 = vadd.f32 %v145, %v327
  %329 = vmatprep.mubr.bf16.mxu0 0
  %330 = vmatmul.mubr.bf16.gmra.mxu0 %v194
  %v331 = vpop.f32.mrf.mxu0
  %v332 = vadd.f32 %v141, %v331
  %v333 = vpop.f32.mrf.mxu0
  %v334 = vadd.f32 %v145, %v333
  %v335 = vpop.f32.mrf.mxu0
  %v336 = vadd.f32 %v141, %v335
  %v337 = vpop.f32.mrf.mxu0
  %v338 = vadd.f32 %v145, %v337
  %339 = vmatprep.mubr.bf16.mxu0 0
  %340 = vmatmul.mubr.bf16.gmra.mxu0 %v197
  %v341 = vpop.f32.mrf.mxu0
  %v342 = vadd.f32 %v141, %v341
  %v343 = vpop.f32.mrf.mxu0
  %v344 = vadd.f32 %v145, %v343
  %v345 = vpop.f32.mrf.mxu0
  %v346 = vadd.f32 %v141, %v345
  %v347 = vpop.f32.mrf.mxu0
  %v348 = vadd.f32 %v145, %v347
  %349 = vmatprep.mubr.bf16.mxu0 0
  %350 = vmatmul.mubr.bf16.gmra.mxu0 %v200
  %v351 = vpop.f32.mrf.mxu0
  %v352 = vadd.f32 %v141, %v351
  %v353 = vpop.f32.mrf.mxu0
  %v354 = vadd.f32 %v145, %v353
  %v355 = vpop.f32.mrf.mxu0
  %v356 = vadd.f32 %v141, %v355
  %v357 = vpop.f32.mrf.mxu0
  %v358 = vadd.f32 %v145, %v357
  %359 = vmatprep.mubr.bf16.mxu0 0
  %360 = vmatmul.mubr.bf16.gmra.mxu0 %v203
  %v361 = vpop.f32.mrf.mxu0
  %v362 = vadd.f32 %v141, %v361
  %v363 = vpop.f32.mrf.mxu0
  %v364 = vadd.f32 %v145, %v363
  %v365 = vpop.f32.mrf.mxu0
  %v366 = vadd.f32 %v141, %v365
  %v367 = vpop.f32.mrf.mxu0
  %v368 = vadd.f32 %v145, %v367
  %369 = vmatprep.mubr.bf16.mxu0 0
  %370 = vmatmul.mubr.bf16.gmra.mxu0 %v206
  %v371 = vpop.f32.mrf.mxu0
  %v372 = vadd.f32 %v141, %v371
  %v373 = vpop.f32.mrf.mxu0
  %v374 = vadd.f32 %v145, %v373
  %v375 = vpop.f32.mrf.mxu0
  %v376 = vadd.f32 %v141, %v375
  %v377 = vpop.f32.mrf.mxu0
  %v378 = vadd.f32 %v145, %v377
  %379 = vmatprep.mubr.bf16.mxu0 0
  %380 = vmatmul.mubr.bf16.gmra.mxu0 %v209
  %v381 = vpop.f32.mrf.mxu0
  %v382 = vadd.f32 %v141, %v381
  %v383 = vpop.f32.mrf.mxu0
  %v384 = vadd.f32 %v145, %v383
  %v385 = vpop.f32.mrf.mxu0
  %v386 = vadd.f32 %v141, %v385
  %v387 = vpop.f32.mrf.mxu0
  %v388 = vadd.f32 %v145, %v387
  %389 = vmatprep.mubr.bf16.mxu0 0
  %390 = vmatmul.mubr.bf16.gmra.mxu0 %v212
  %v391 = vpop.f32.mrf.mxu0
  %v392 = vadd.f32 %v141, %v391
  %v393 = vpop.f32.mrf.mxu0
  %v394 = vadd.f32 %v145, %v393
  %v395 = vpop.f32.mrf.mxu0
  %v396 = vadd.f32 %v141, %v395
  %v397 = vpop.f32.mrf.mxu0
  %v398 = vadd.f32 %v145, %v397
  %399 = vmatprep.mubr.bf16.mxu0 0
  %400 = vmatmul.mubr.bf16.gmra.mxu0 %v215
  %v401 = vpop.f32.mrf.mxu0
  %v402 = vadd.f32 %v141, %v401
  %v403 = vpop.f32.mrf.mxu0
  %v404 = vadd.f32 %v145, %v403
  %v405 = vpop.f32.mrf.mxu0
  %v406 = vadd.f32 %v141, %v405
  %v407 = vpop.f32.mrf.mxu0
  %v408 = vadd.f32 %v145, %v407
  %409 = vdwg.mxu0
  %v410 = vmax.f32 %v252, 0.0
  %v411 = vmax.f32 %v254, 0.0
  %v412 = vmax.f32 %v256, 0.0
  %v413 = vmax.f32 %v258, 0.0
  %v414 = vmax.f32 %v262, 0.0
  %v415 = vmax.f32 %v264, 0.0
  %v416 = vmax.f32 %v266, 0.0
  %v417 = vmax.f32 %v268, 0.0
  %v418 = vmax.f32 %v272, 0.0
  %v419 = vmax.f32 %v274, 0.0
  %v420 = vmax.f32 %v276, 0.0
  %v421 = vmax.f32 %v278, 0.0
  %v422 = vmax.f32 %v282, 0.0
  %v423 = vmax.f32 %v284, 0.0
  %v424 = vmax.f32 %v286, 0.0
  %v425 = vmax.f32 %v288, 0.0
  %v426 = vmax.f32 %v292, 0.0
  %v427 = vmax.f32 %v294, 0.0
  %v428 = vmax.f32 %v296, 0.0
  %v429 = vmax.f32 %v298, 0.0
  %v430 = vmax.f32 %v302, 0.0
  %v431 = vmax.f32 %v304, 0.0
  %v432 = vmax.f32 %v306, 0.0
  %v433 = vmax.f32 %v308, 0.0
  %v434 = vmax.f32 %v312, 0.0
  %v435 = vmax.f32 %v314, 0.0
  %v436 = vmax.f32 %v316, 0.0
  %v437 = vmax.f32 %v318, 0.0
  %v438 = vmax.f32 %v322, 0.0
  %v439 = vmax.f32 %v324, 0.0
  %v440 = vmax.f32 %v326, 0.0
  %v441 = vmax.f32 %v328, 0.0
  %v442 = vmax.f32 %v332, 0.0
  %v443 = vmax.f32 %v334, 0.0
  %v444 = vmax.f32 %v336, 0.0
  %v445 = vmax.f32 %v338, 0.0
  %v446 = vmax.f32 %v342, 0.0
  %v447 = vmax.f32 %v344, 0.0
  %v448 = vmax.f32 %v346, 0.0
  %v449 = vmax.f32 %v348, 0.0
  %v450 = vmax.f32 %v352, 0.0
  %v451 = vmax.f32 %v354, 0.0
  %v452 = vmax.f32 %v356, 0.0
  %v453 = vmax.f32 %v358, 0.0
  %v454 = vmax.f32 %v362, 0.0
  %v455 = vmax.f32 %v364, 0.0
  %v456 = vmax.f32 %v366, 0.0
  %v457 = vmax.f32 %v368, 0.0
  %v458 = vmax.f32 %v372, 0.0
  %v459 = vmax.f32 %v374, 0.0
  %v460 = vmax.f32 %v376, 0.0
  %v461 = vmax.f32 %v378, 0.0
  %v462 = vmax.f32 %v382, 0.0
  %v463 = vmax.f32 %v384, 0.0
  %v464 = vmax.f32 %v386, 0.0
  %v465 = vmax.f32 %v388, 0.0
  %v466 = vmax.f32 %v392, 0.0
  %v467 = vmax.f32 %v394, 0.0
  %v468 = vmax.f32 %v396, 0.0
  %v469 = vmax.f32 %v398, 0.0
  %v470 = vmax.f32 %v402, 0.0
  %v471 = vmax.f32 %v404, 0.0
  %v472 = vmax.f32 %v406, 0.0
  %v473 = vmax.f32 %v408, 0.0
  %v474 = vld [vmem:[%s4] sm:$0xf]
  %v475 = vld [vmem:[%s4 + $0x4] sm:$0xf]
  %v476 = vld [vmem:[%s4 + $0x8] sm:$0xf]
  %v477 = vld [vmem:[%s4 + $0xc] sm:$0xf]
  %v478 = vld [vmem:[%s4 + $0x10] sm:$0xf]
  %v479 = vld [vmem:[%s4 + $0x14] sm:$0xf]
  %v480 = vld [vmem:[%s4 + $0x18] sm:$0xf]
  %v481 = vld [vmem:[%s4 + $0x1c] sm:$0xf]
  %v482 = vld [vmem:[%s4 + $0x20] sm:$0xf]
  %v483 = vld [vmem:[%s4 + $0x24] sm:$0xf]
  %v484 = vld [vmem:[%s4 + $0x28] sm:$0xf]
  %v485 = vld [vmem:[%s4 + $0x2c] sm:$0xf]
  %v486 = vld [vmem:[%s4 + $0x30] sm:$0xf]
  %v487 = vld [vmem:[%s4 + $0x34] sm:$0xf]
  %v488 = vld [vmem:[%s4 + $0x38] sm:$0xf]
  %v489 = vld [vmem:[%s4 + $0x3c] sm:$0xf]
  %v490 = vld [vmem:[%s4 + $0x40] sm:$0xf]
  %v491 = vld [vmem:[%s4 + $0x44] sm:$0xf]
  %v492 = vld [vmem:[%s4 + $0x48] sm:$0xf]
  %v493 = vld [vmem:[%s4 + $0x4c] sm:$0xf]
  %v494 = vld [vmem:[%s4 + $0x50] sm:$0xf]
  %v495 = vld [vmem:[%s4 + $0x54] sm:$0xf]
  %v496 = vld [vmem:[%s4 + $0x58] sm:$0xf]
  %v497 = vld [vmem:[%s4 + $0x5c] sm:$0xf]
  %v498 = vld [vmem:[%s4 + $0x60] sm:$0xf]
  %v499 = vld [vmem:[%s4 + $0x64] sm:$0xf]
  %v500 = vld [vmem:[%s4 + $0x68] sm:$0xf]
  %v501 = vld [vmem:[%s4 + $0x6c] sm:$0xf]
  %v502 = vld [vmem:[%s4 + $0x70] sm:$0xf]
  %v503 = vld [vmem:[%s4 + $0x74] sm:$0xf]
  %v504 = vld [vmem:[%s4 + $0x78] sm:$0xf]
  %v505 = vld [vmem:[%s4 + $0x7c] sm:$0xf]
  %v506 = vpack.c.bf16 %v412, %v410
  %v507 = vpack.c.bf16 %v413, %v411
  %v508 = vpack.c.bf16 %v416, %v414
  %v509 = vpack.c.bf16 %v417, %v415
  %v510 = vpack.c.bf16 %v420, %v418
  %v511 = vpack.c.bf16 %v421, %v419
  %v512 = vpack.c.bf16 %v424, %v422
  %v513 = vpack.c.bf16 %v425, %v423
  %v514 = vpack.c.bf16 %v428, %v426
  %v515 = vpack.c.bf16 %v429, %v427
  %v516 = vpack.c.bf16 %v432, %v430
  %v517 = vpack.c.bf16 %v433, %v431
  %v518 = vpack.c.bf16 %v436, %v434
  %v519 = vpack.c.bf16 %v437, %v435
  %v520 = vpack.c.bf16 %v440, %v438
  %v521 = vpack.c.bf16 %v441, %v439
  %v522 = vpack.c.bf16 %v444, %v442
  %v523 = vpack.c.bf16 %v445, %v443
  %v524 = vpack.c.bf16 %v448, %v446
  %v525 = vpack.c.bf16 %v449, %v447
  %v526 = vpack.c.bf16 %v452, %v450
  %v527 = vpack.c.bf16 %v453, %v451
  %v528 = vpack.c.bf16 %v456, %v454
  %v529 = vpack.c.bf16 %v457, %v455
  %v530 = vpack.c.bf16 %v460, %v458
  %v531 = vpack.c.bf16 %v461, %v459
  %v532 = vpack.c.bf16 %v464, %v462
  %v533 = vpack.c.bf16 %v465, %v463
  %v534 = vpack.c.bf16 %v468, %v466
  %v535 = vpack.c.bf16 %v469, %v467
  %v536 = vpack.c.bf16 %v472, %v470
  %v537 = vpack.c.bf16 %v473, %v471
  %v538 = vld [vmem:[%s5] sm:$0x1]
  %v540 = vlaneseq
  %v541 = vshrl.u32 %v540, 7
  %v542 = vsub.s32 0, %v541
  %v543 = vrot.slane %v538, %v542
  %v577 = vunpack.c.l.b16 %v474
  %v578 = vunpack.c.l.b16 %v475
  %v579 = vunpack.c.l.b16 %v476
  %v580 = vunpack.c.l.b16 %v477
  %v581 = vunpack.c.l.b16 %v478
  %v582 = vunpack.c.l.b16 %v479
  %v583 = vunpack.c.l.b16 %v480
  %v584 = vunpack.c.l.b16 %v481
  %v585 = vunpack.c.l.b16 %v482
  %v586 = vunpack.c.l.b16 %v483
  %v587 = vunpack.c.l.b16 %v484
  %v588 = vunpack.c.l.b16 %v485
  %v589 = vunpack.c.l.b16 %v486
  %v590 = vunpack.c.l.b16 %v487
  %v591 = vunpack.c.l.b16 %v488
  %v592 = vunpack.c.l.b16 %v489
  %v593 = vunpack.c.l.b16 %v490
  %v594 = vunpack.c.l.b16 %v491
  %v595 = vunpack.c.l.b16 %v492
  %v596 = vunpack.c.l.b16 %v493
  %v597 = vunpack.c.l.b16 %v494
  %v598 = vunpack.c.l.b16 %v495
  %v599 = vunpack.c.l.b16 %v496
  %v600 = vunpack.c.l.b16 %v497
  %v601 = vunpack.c.l.b16 %v498
  %v602 = vunpack.c.l.b16 %v499
  %v603 = vunpack.c.l.b16 %v500
  %v604 = vunpack.c.l.b16 %v501
  %v605 = vunpack.c.l.b16 %v502
  %v606 = vunpack.c.l.b16 %v503
  %v607 = vunpack.c.l.b16 %v504
  %v608 = vunpack.c.l.b16 %v505
  %v609 = vpack.c.b16 %v578, %v577
  %v610 = vpack.c.b16 %v580, %v579
  %v611 = vpack.c.b16 %v582, %v581
  %v612 = vpack.c.b16 %v584, %v583
  %v613 = vpack.c.b16 %v586, %v585
  %v614 = vpack.c.b16 %v588, %v587
  %v615 = vpack.c.b16 %v590, %v589
  %v616 = vpack.c.b16 %v592, %v591
  %v617 = vpack.c.b16 %v594, %v593
  %v618 = vpack.c.b16 %v596, %v595
  %v619 = vpack.c.b16 %v598, %v597
  %v620 = vpack.c.b16 %v600, %v599
  %v621 = vpack.c.b16 %v602, %v601
  %v622 = vpack.c.b16 %v604, %v603
  %v623 = vpack.c.b16 %v606, %v605
  %v624 = vpack.c.b16 %v608, %v607
  %641 = vmatprep.subr.bf16.mxu0 0
  %642 = vmatpush1.bf16.msra.mxu0 %v616
  %643 = vmatprep.subr.bf16.mxu0 0
  %644 = vmatpush1.bf16.msra.mxu0 %v615
  %645 = vmatprep.subr.bf16.mxu0 0
  %646 = vmatpush1.bf16.msra.mxu0 %v614
  %647 = vmatprep.subr.bf16.mxu0 0
  %648 = vmatpush1.bf16.msra.mxu0 %v613
  %649 = vmatprep.subr.bf16.mxu0 0
  %650 = vmatpush1.bf16.msra.mxu0 %v612
  %651 = vmatprep.subr.bf16.mxu0 0
  %652 = vmatpush1.bf16.msra.mxu0 %v611
  %653 = vmatprep.subr.bf16.mxu0 0
  %654 = vmatpush1.bf16.msra.mxu0 %v610
  %655 = vmatprep.subr.bf16.mxu0 0
  %656 = vmatpush1.bf16.msra.mxu0 %v609
  %657 = vmatprep.subr.bf16.mxu0 0
  %658 = vmatpush2.bf16.msra.mxu0 %v624
  %659 = vmatprep.subr.bf16.mxu0 0
  %660 = vmatpush2.bf16.msra.mxu0 %v623
  %661 = vmatprep.subr.bf16.mxu0 0
  %662 = vmatpush2.bf16.msra.mxu0 %v622
  %663 = vmatprep.subr.bf16.mxu0 0
  %664 = vmatpush2.bf16.msra.mxu0 %v621
  %665 = vmatprep.subr.bf16.mxu0 0
  %666 = vmatpush2.bf16.msra.mxu0 %v620
  %667 = vmatprep.subr.bf16.mxu0 0
  %668 = vmatpush2.bf16.msra.mxu0 %v619
  %669 = vmatprep.subr.bf16.mxu0 0
  %670 = vmatpush2.bf16.msra.mxu0 %v618
  %671 = vmatprep.subr.bf16.mxu0 0
  %672 = vmatpush2.bf16.msra.mxu0 %v617
  %673 = vmatprep.mubr.bf16.mxu0 %v507
  %674 = vmatmul.mubr.bf16.gmra.mxu0 %v506
  %v675 = vpop.f32.mrf.mxu0
  %v676 = vadd.f32 %v543, %v675
  %v677 = vpop.f32.mrf.mxu0
  %v678 = vpop.f32.mrf.mxu0
  %v679 = vadd.f32 %v543, %v678
  %v680 = vpop.f32.mrf.mxu0
  %681 = vmatprep.mubr.bf16.mxu0 %v509
  %682 = vmatmul.mubr.bf16.gmra.mxu0 %v508
  %v683 = vpop.f32.mrf.mxu0
  %v684 = vadd.f32 %v543, %v683
  %v685 = vpop.f32.mrf.mxu0
  %v686 = vpop.f32.mrf.mxu0
  %v687 = vadd.f32 %v543, %v686
  %v688 = vpop.f32.mrf.mxu0
  %689 = vmatprep.mubr.bf16.mxu0 %v511
  %690 = vmatmul.mubr.bf16.gmra.mxu0 %v510
  %v691 = vpop.f32.mrf.mxu0
  %v692 = vadd.f32 %v543, %v691
  %v693 = vpop.f32.mrf.mxu0
  %v694 = vpop.f32.mrf.mxu0
  %v695 = vadd.f32 %v543, %v694
  %v696 = vpop.f32.mrf.mxu0
  %697 = vmatprep.mubr.bf16.mxu0 %v513
  %698 = vmatmul.mubr.bf16.gmra.mxu0 %v512
  %v699 = vpop.f32.mrf.mxu0
  %v700 = vadd.f32 %v543, %v699
  %v701 = vpop.f32.mrf.mxu0
  %v702 = vpop.f32.mrf.mxu0
  %v703 = vadd.f32 %v543, %v702
  %v704 = vpop.f32.mrf.mxu0
  %705 = vmatprep.mubr.bf16.mxu0 %v515
  %706 = vmatmul.mubr.bf16.gmra.mxu0 %v514
  %v707 = vpop.f32.mrf.mxu0
  %v708 = vadd.f32 %v543, %v707
  %v709 = vpop.f32.mrf.mxu0
  %v710 = vpop.f32.mrf.mxu0
  %v711 = vadd.f32 %v543, %v710
  %v712 = vpop.f32.mrf.mxu0
  %713 = vmatprep.mubr.bf16.mxu0 %v517
  %714 = vmatmul.mubr.bf16.gmra.mxu0 %v516
  %v715 = vpop.f32.mrf.mxu0
  %v716 = vadd.f32 %v543, %v715
  %v717 = vpop.f32.mrf.mxu0
  %v718 = vpop.f32.mrf.mxu0
  %v719 = vadd.f32 %v543, %v718
  %v720 = vpop.f32.mrf.mxu0
  %721 = vmatprep.mubr.bf16.mxu0 %v519
  %722 = vmatmul.mubr.bf16.gmra.mxu0 %v518
  %v723 = vpop.f32.mrf.mxu0
  %v724 = vadd.f32 %v543, %v723
  %v725 = vpop.f32.mrf.mxu0
  %v726 = vpop.f32.mrf.mxu0
  %v727 = vadd.f32 %v543, %v726
  %v728 = vpop.f32.mrf.mxu0
  %729 = vmatprep.mubr.bf16.mxu0 %v521
  %730 = vmatmul.mubr.bf16.gmra.mxu0 %v520
  %v731 = vpop.f32.mrf.mxu0
  %v732 = vadd.f32 %v543, %v731
  %v733 = vpop.f32.mrf.mxu0
  %v734 = vpop.f32.mrf.mxu0
  %v735 = vadd.f32 %v543, %v734
  %v736 = vpop.f32.mrf.mxu0
  %737 = vmatprep.mubr.bf16.mxu0 %v523
  %738 = vmatmul.mubr.bf16.gmra.mxu0 %v522
  %v739 = vpop.f32.mrf.mxu0
  %v740 = vadd.f32 %v543, %v739
  %v741 = vpop.f32.mrf.mxu0
  %v742 = vpop.f32.mrf.mxu0
  %v743 = vadd.f32 %v543, %v742
  %v744 = vpop.f32.mrf.mxu0
  %745 = vmatprep.mubr.bf16.mxu0 %v525
  %746 = vmatmul.mubr.bf16.gmra.mxu0 %v524
  %v747 = vpop.f32.mrf.mxu0
  %v748 = vadd.f32 %v543, %v747
  %v749 = vpop.f32.mrf.mxu0
  %v750 = vpop.f32.mrf.mxu0
  %v751 = vadd.f32 %v543, %v750
  %v752 = vpop.f32.mrf.mxu0
  %753 = vmatprep.mubr.bf16.mxu0 %v527
  %754 = vmatmul.mubr.bf16.gmra.mxu0 %v526
  %v755 = vpop.f32.mrf.mxu0
  %v756 = vadd.f32 %v543, %v755
  %v757 = vpop.f32.mrf.mxu0
  %v758 = vpop.f32.mrf.mxu0
  %v759 = vadd.f32 %v543, %v758
  %v760 = vpop.f32.mrf.mxu0
  %761 = vmatprep.mubr.bf16.mxu0 %v529
  %762 = vmatmul.mubr.bf16.gmra.mxu0 %v528
  %v763 = vpop.f32.mrf.mxu0
  %v764 = vadd.f32 %v543, %v763
  %v765 = vpop.f32.mrf.mxu0
  %v766 = vpop.f32.mrf.mxu0
  %v767 = vadd.f32 %v543, %v766
  %v768 = vpop.f32.mrf.mxu0
  %769 = vmatprep.mubr.bf16.mxu0 %v531
  %770 = vmatmul.mubr.bf16.gmra.mxu0 %v530
  %v771 = vpop.f32.mrf.mxu0
  %v772 = vadd.f32 %v543, %v771
  %v773 = vpop.f32.mrf.mxu0
  %v774 = vpop.f32.mrf.mxu0
  %v775 = vadd.f32 %v543, %v774
  %v776 = vpop.f32.mrf.mxu0
  %777 = vmatprep.mubr.bf16.mxu0 %v533
  %778 = vmatmul.mubr.bf16.gmra.mxu0 %v532
  %v779 = vpop.f32.mrf.mxu0
  %v780 = vadd.f32 %v543, %v779
  %v781 = vpop.f32.mrf.mxu0
  %v782 = vpop.f32.mrf.mxu0
  %v783 = vadd.f32 %v543, %v782
  %v784 = vpop.f32.mrf.mxu0
  %785 = vmatprep.mubr.bf16.mxu0 %v535
  %786 = vmatmul.mubr.bf16.gmra.mxu0 %v534
  %v787 = vpop.f32.mrf.mxu0
  %v788 = vadd.f32 %v543, %v787
  %v789 = vpop.f32.mrf.mxu0
  %v790 = vpop.f32.mrf.mxu0
  %v791 = vadd.f32 %v543, %v790
  %v792 = vpop.f32.mrf.mxu0
  %793 = vmatprep.mubr.bf16.mxu0 %v537
  %794 = vmatmul.mubr.bf16.gmra.mxu0 %v536
  %v795 = vpop.f32.mrf.mxu0
  %v796 = vadd.f32 %v543, %v795
  %v797 = vpop.f32.mrf.mxu0
  %v798 = vpop.f32.mrf.mxu0
  %v799 = vadd.f32 %v543, %v798
  %v800 = vpop.f32.mrf.mxu0
  %801 = vdwg.mxu0
  %v802 = vmul.f32 %v676, 0.5
  %v803 = vmul.f32 %v679, 0.5
  %v804 = vmul.f32 %v684, 0.5
  %v805 = vmul.f32 %v687, 0.5
  %v806 = vmul.f32 %v692, 0.5
  %v807 = vmul.f32 %v695, 0.5
  %v808 = vmul.f32 %v700, 0.5
  %v809 = vmul.f32 %v703, 0.5
  %v810 = vmul.f32 %v708, 0.5
  %v811 = vmul.f32 %v711, 0.5
  %v812 = vmul.f32 %v716, 0.5
  %v813 = vmul.f32 %v719, 0.5
  %v814 = vmul.f32 %v724, 0.5
  %v815 = vmul.f32 %v727, 0.5
  %v816 = vmul.f32 %v732, 0.5
  %v817 = vmul.f32 %v735, 0.5
  %v818 = vmul.f32 %v740, 0.5
  %v819 = vmul.f32 %v743, 0.5
  %v820 = vmul.f32 %v748, 0.5
  %v821 = vmul.f32 %v751, 0.5
  %v822 = vmul.f32 %v756, 0.5
  %v823 = vmul.f32 %v759, 0.5
  %v824 = vmul.f32 %v764, 0.5
  %v825 = vmul.f32 %v767, 0.5
  %v826 = vmul.f32 %v772, 0.5
  %v827 = vmul.f32 %v775, 0.5
  %v828 = vmul.f32 %v780, 0.5
  %v829 = vmul.f32 %v783, 0.5
  %v830 = vmul.f32 %v788, 0.5
  %v831 = vmul.f32 %v791, 0.5
  %v832 = vmul.f32 %v796, 0.5
  %v833 = vmul.f32 %v799, 0.5
  %v834 = vmul.f32 %v802, 1.442695
  %v835 = vpow.pop %v834
  %v836 = vmul.f32 %v803, 1.442695
  %v837 = vpow.pop %v836
  %v838 = vmul.f32 %v804, 1.442695
  %v839 = vpow.pop %v838
  %v840 = vmul.f32 %v805, 1.442695
  %v841 = vpow.pop %v840
  %v842 = vmul.f32 %v806, 1.442695
  %v843 = vpow.pop %v842
  %v844 = vmul.f32 %v807, 1.442695
  %v845 = vpow.pop %v844
  %v846 = vmul.f32 %v808, 1.442695
  %v847 = vpow.pop %v846
  %v848 = vmul.f32 %v809, 1.442695
  %v849 = vpow.pop %v848
  %v850 = vmul.f32 %v810, 1.442695
  %v851 = vpow.pop %v850
  %v852 = vmul.f32 %v811, 1.442695
  %v853 = vpow.pop %v852
  %v854 = vmul.f32 %v812, 1.442695
  %v855 = vpow.pop %v854
  %v856 = vmul.f32 %v813, 1.442695
  %v857 = vpow.pop %v856
  %v858 = vmul.f32 %v814, 1.442695
  %v859 = vpow.pop %v858
  %v860 = vmul.f32 %v815, 1.442695
  %v861 = vpow.pop %v860
  %v862 = vmul.f32 %v816, 1.442695
  %v863 = vpow.pop %v862
  %v864 = vmul.f32 %v817, 1.442695
  %v865 = vpow.pop %v864
  %v866 = vmul.f32 %v818, 1.442695
  %v867 = vpow.pop %v866
  %v868 = vmul.f32 %v819, 1.442695
  %v869 = vpow.pop %v868
  %v870 = vmul.f32 %v820, 1.442695
  %v871 = vpow.pop %v870
  %v872 = vmul.f32 %v821, 1.442695
  %v873 = vpow.pop %v872
  %v874 = vmul.f32 %v822, 1.442695
  %v875 = vpow.pop %v874
  %v876 = vmul.f32 %v823, 1.442695
  %v877 = vpow.pop %v876
  %v878 = vmul.f32 %v824, 1.442695
  %v879 = vpow.pop %v878
  %v880 = vmul.f32 %v825, 1.442695
  %v881 = vpow.pop %v880
  %v882 = vmul.f32 %v826, 1.442695
  %v883 = vpow.pop %v882
  %v884 = vmul.f32 %v827, 1.442695
  %v885 = vpow.pop %v884
  %v886 = vmul.f32 %v828, 1.442695
  %v887 = vpow.pop %v886
  %v888 = vmul.f32 %v829, 1.442695
  %v889 = vpow.pop %v888
  %v890 = vmul.f32 %v830, 1.442695
  %v891 = vpow.pop %v890
  %v892 = vmul.f32 %v831, 1.442695
  %v893 = vpow.pop %v892
  %v894 = vmul.f32 %v832, 1.442695
  %v895 = vpow.pop %v894
  %v896 = vmul.f32 %v833, 1.442695
  %v897 = vpow.pop %v896
  %930 = vrot.lane.b32.xlu0 %v835, 96
  %v931 = vpop.permute.xlu0 %930
  %932 = vrot.lane.b32.xlu0 %v837, 96
  %v933 = vpop.permute.xlu0 %932
  %934 = vrot.lane.b32.xlu0 %v839, 96
  %v935 = vpop.permute.xlu0 %934
  %936 = vrot.lane.b32.xlu0 %v841, 96
  %v937 = vpop.permute.xlu0 %936
  %938 = vrot.lane.b32.xlu0 %v843, 96
  %v939 = vpop.permute.xlu0 %938
  %940 = vrot.lane.b32.xlu0 %v845, 96
  %v941 = vpop.permute.xlu0 %940
  %942 = vrot.lane.b32.xlu0 %v847, 96
  %v943 = vpop.permute.xlu0 %942
  %944 = vrot.lane.b32.xlu0 %v849, 96
  %v945 = vpop.permute.xlu0 %944
  %946 = vrot.lane.b32.xlu0 %v851, 96
  %v947 = vpop.permute.xlu0 %946
  %948 = vrot.lane.b32.xlu0 %v853, 96
  %v949 = vpop.permute.xlu0 %948
  %950 = vrot.lane.b32.xlu0 %v855, 96
  %v951 = vpop.permute.xlu0 %950
  %952 = vrot.lane.b32.xlu0 %v857, 96
  %v953 = vpop.permute.xlu0 %952
  %954 = vrot.lane.b32.xlu0 %v859, 96
  %v955 = vpop.permute.xlu0 %954
  %956 = vrot.lane.b32.xlu0 %v861, 96
  %v957 = vpop.permute.xlu0 %956
  %958 = vrot.lane.b32.xlu0 %v863, 96
  %v959 = vpop.permute.xlu0 %958
  %960 = vrot.lane.b32.xlu0 %v865, 96
  %v961 = vpop.permute.xlu0 %960
  %962 = vrot.lane.b32.xlu0 %v867, 96
  %v963 = vpop.permute.xlu0 %962
  %964 = vrot.lane.b32.xlu0 %v869, 96
  %v965 = vpop.permute.xlu0 %964
  %966 = vrot.lane.b32.xlu0 %v871, 96
  %v967 = vpop.permute.xlu0 %966
  %968 = vrot.lane.b32.xlu0 %v873, 96
  %v969 = vpop.permute.xlu0 %968
  %970 = vrot.lane.b32.xlu0 %v875, 96
  %v971 = vpop.permute.xlu0 %970
  %972 = vrot.lane.b32.xlu0 %v877, 96
  %v973 = vpop.permute.xlu0 %972
  %974 = vrot.lane.b32.xlu0 %v879, 96
  %v975 = vpop.permute.xlu0 %974
  %976 = vrot.lane.b32.xlu0 %v881, 96
  %v977 = vpop.permute.xlu0 %976
  %978 = vrot.lane.b32.xlu0 %v883, 96
  %v979 = vpop.permute.xlu0 %978
  %980 = vrot.lane.b32.xlu0 %v885, 96
  %v981 = vpop.permute.xlu0 %980
  %982 = vrot.lane.b32.xlu0 %v887, 96
  %v983 = vpop.permute.xlu0 %982
  %984 = vrot.lane.b32.xlu0 %v889, 96
  %v985 = vpop.permute.xlu0 %984
  %986 = vrot.lane.b32.xlu0 %v891, 96
  %v987 = vpop.permute.xlu0 %986
  %988 = vrot.lane.b32.xlu0 %v893, 96
  %v989 = vpop.permute.xlu0 %988
  %990 = vrot.lane.b32.xlu0 %v895, 96
  %v991 = vpop.permute.xlu0 %990
  %992 = vrot.lane.b32.xlu0 %v897, 96
  %v993 = vpop.permute.xlu0 %992
  %v1026 = vmul.f32 %v84, %v931
  %v1027 = vmul.f32 %v85, %v933
  %v1028 = vmul.f32 %v86, %v935
  %v1029 = vmul.f32 %v87, %v937
  %v1030 = vmul.f32 %v88, %v939
  %v1031 = vmul.f32 %v89, %v941
  %v1032 = vmul.f32 %v90, %v943
  %v1033 = vmul.f32 %v91, %v945
  %v1034 = vmul.f32 %v92, %v947
  %v1035 = vmul.f32 %v93, %v949
  %v1036 = vmul.f32 %v94, %v951
  %v1037 = vmul.f32 %v95, %v953
  %v1038 = vmul.f32 %v96, %v955
  %v1039 = vmul.f32 %v97, %v957
  %v1040 = vmul.f32 %v98, %v959
  %v1041 = vmul.f32 %v99, %v961
  %v1042 = vmul.f32 %v100, %v963
  %v1043 = vmul.f32 %v101, %v965
  %v1044 = vmul.f32 %v102, %v967
  %v1045 = vmul.f32 %v103, %v969
  %v1046 = vmul.f32 %v104, %v971
  %v1047 = vmul.f32 %v105, %v973
  %v1048 = vmul.f32 %v106, %v975
  %v1049 = vmul.f32 %v107, %v977
  %v1050 = vmul.f32 %v108, %v979
  %v1051 = vmul.f32 %v109, %v981
  %v1052 = vmul.f32 %v110, %v983
  %v1053 = vmul.f32 %v111, %v985
  %v1054 = vmul.f32 %v112, %v987
  %v1055 = vmul.f32 %v113, %v989
  %v1056 = vmul.f32 %v114, %v991
  %v1057 = vmul.f32 %v115, %v993
  %v1058 = vadd.f32 %v676, %v1026
  %v1059 = vadd.f32 %v679, %v1027
  %v1060 = vadd.f32 %v684, %v1028
  %v1061 = vadd.f32 %v687, %v1029
  %v1062 = vadd.f32 %v692, %v1030
  %v1063 = vadd.f32 %v695, %v1031
  %v1064 = vadd.f32 %v700, %v1032
  %v1065 = vadd.f32 %v703, %v1033
  %v1066 = vadd.f32 %v708, %v1034
  %v1067 = vadd.f32 %v711, %v1035
  %v1068 = vadd.f32 %v716, %v1036
  %v1069 = vadd.f32 %v719, %v1037
  %v1070 = vadd.f32 %v724, %v1038
  %v1071 = vadd.f32 %v727, %v1039
  %v1072 = vadd.f32 %v732, %v1040
  %v1073 = vadd.f32 %v735, %v1041
  %v1074 = vadd.f32 %v740, %v1042
  %v1075 = vadd.f32 %v743, %v1043
  %v1076 = vadd.f32 %v748, %v1044
  %v1077 = vadd.f32 %v751, %v1045
  %v1078 = vadd.f32 %v756, %v1046
  %v1079 = vadd.f32 %v759, %v1047
  %v1080 = vadd.f32 %v764, %v1048
  %v1081 = vadd.f32 %v767, %v1049
  %v1082 = vadd.f32 %v772, %v1050
  %v1083 = vadd.f32 %v775, %v1051
  %v1084 = vadd.f32 %v780, %v1052
  %v1085 = vadd.f32 %v783, %v1053
  %v1086 = vadd.f32 %v788, %v1054
  %v1087 = vadd.f32 %v791, %v1055
  %v1088 = vadd.f32 %v796, %v1056
  %v1089 = vadd.f32 %v799, %v1057
  %1122 = vrot.lane.b32.xlu0 %v52, 32
  %v1123 = vpop.permute.xlu0 %1122
  %1124 = vrot.lane.b32.xlu0 %v53, 32
  %v1125 = vpop.permute.xlu0 %1124
  %1126 = vrot.lane.b32.xlu0 %v54, 32
  %v1127 = vpop.permute.xlu0 %1126
  %1128 = vrot.lane.b32.xlu0 %v55, 32
  %v1129 = vpop.permute.xlu0 %1128
  %1130 = vrot.lane.b32.xlu0 %v56, 32
  %v1131 = vpop.permute.xlu0 %1130
  %1132 = vrot.lane.b32.xlu0 %v57, 32
  %v1133 = vpop.permute.xlu0 %1132
  %1134 = vrot.lane.b32.xlu0 %v58, 32
  %v1135 = vpop.permute.xlu0 %1134
  %1136 = vrot.lane.b32.xlu0 %v59, 32
  %v1137 = vpop.permute.xlu0 %1136
  %1138 = vrot.lane.b32.xlu0 %v60, 32
  %v1139 = vpop.permute.xlu0 %1138
  %1140 = vrot.lane.b32.xlu0 %v61, 32
  %v1141 = vpop.permute.xlu0 %1140
  %1142 = vrot.lane.b32.xlu0 %v62, 32
  %v1143 = vpop.permute.xlu0 %1142
  %1144 = vrot.lane.b32.xlu0 %v63, 32
  %v1145 = vpop.permute.xlu0 %1144
  %1146 = vrot.lane.b32.xlu0 %v64, 32
  %v1147 = vpop.permute.xlu0 %1146
  %1148 = vrot.lane.b32.xlu0 %v65, 32
  %v1149 = vpop.permute.xlu0 %1148
  %1150 = vrot.lane.b32.xlu0 %v66, 32
  %v1151 = vpop.permute.xlu0 %1150
  %1152 = vrot.lane.b32.xlu0 %v67, 32
  %v1153 = vpop.permute.xlu0 %1152
  %1154 = vrot.lane.b32.xlu0 %v68, 32
  %v1155 = vpop.permute.xlu0 %1154
  %1156 = vrot.lane.b32.xlu0 %v69, 32
  %v1157 = vpop.permute.xlu0 %1156
  %1158 = vrot.lane.b32.xlu0 %v70, 32
  %v1159 = vpop.permute.xlu0 %1158
  %1160 = vrot.lane.b32.xlu0 %v71, 32
  %v1161 = vpop.permute.xlu0 %1160
  %1162 = vrot.lane.b32.xlu0 %v72, 32
  %v1163 = vpop.permute.xlu0 %1162
  %1164 = vrot.lane.b32.xlu0 %v73, 32
  %v1165 = vpop.permute.xlu0 %1164
  %1166 = vrot.lane.b32.xlu0 %v74, 32
  %v1167 = vpop.permute.xlu0 %1166
  %1168 = vrot.lane.b32.xlu0 %v75, 32
  %v1169 = vpop.permute.xlu0 %1168
  %1170 = vrot.lane.b32.xlu0 %v76, 32
  %v1171 = vpop.permute.xlu0 %1170
  %1172 = vrot.lane.b32.xlu0 %v77, 32
  %v1173 = vpop.permute.xlu0 %1172
  %1174 = vrot.lane.b32.xlu0 %v78, 32
  %v1175 = vpop.permute.xlu0 %1174
  %1176 = vrot.lane.b32.xlu0 %v79, 32
  %v1177 = vpop.permute.xlu0 %1176
  %1178 = vrot.lane.b32.xlu0 %v80, 32
  %v1179 = vpop.permute.xlu0 %1178
  %1180 = vrot.lane.b32.xlu0 %v81, 32
  %v1181 = vpop.permute.xlu0 %1180
  %1182 = vrot.lane.b32.xlu0 %v82, 32
  %v1183 = vpop.permute.xlu0 %1182
  %1184 = vrot.lane.b32.xlu0 %v83, 32
  %v1185 = vpop.permute.xlu0 %1184
  %v1218 = vsel %vm168, %v1058, %v1123
  %v1219 = vsel %vm168, %v1059, %v1125
  %v1220 = vsel %vm168, %v1060, %v1127
  %v1221 = vsel %vm168, %v1061, %v1129
  %v1222 = vsel %vm168, %v1062, %v1131
  %v1223 = vsel %vm168, %v1063, %v1133
  %v1224 = vsel %vm168, %v1064, %v1135
  %v1225 = vsel %vm168, %v1065, %v1137
  %v1226 = vsel %vm168, %v1066, %v1139
  %v1227 = vsel %vm168, %v1067, %v1141
  %v1228 = vsel %vm168, %v1068, %v1143
  %v1229 = vsel %vm168, %v1069, %v1145
  %v1230 = vsel %vm168, %v1070, %v1147
  %v1231 = vsel %vm168, %v1071, %v1149
  %v1232 = vsel %vm168, %v1072, %v1151
  %v1233 = vsel %vm168, %v1073, %v1153
  %v1234 = vsel %vm168, %v1074, %v1155
  %v1235 = vsel %vm168, %v1075, %v1157
  %v1236 = vsel %vm168, %v1076, %v1159
  %v1237 = vsel %vm168, %v1077, %v1161
  %v1238 = vsel %vm168, %v1078, %v1163
  %v1239 = vsel %vm168, %v1079, %v1165
  %v1240 = vsel %vm168, %v1080, %v1167
  %v1241 = vsel %vm168, %v1081, %v1169
  %v1242 = vsel %vm168, %v1082, %v1171
  %v1243 = vsel %vm168, %v1083, %v1173
  %v1244 = vsel %vm168, %v1084, %v1175
  %v1245 = vsel %vm168, %v1085, %v1177
  %v1246 = vsel %vm168, %v1086, %v1179
  %v1247 = vsel %vm168, %v1087, %v1181
  %v1248 = vsel %vm168, %v1088, %v1183
  %v1249 = vsel %vm168, %v1089, %v1185
  %v1250 = vld [vmem:[%s6] sm:$0xff]
  %v1251 = vld [vmem:[%s6 + $0x8] sm:$0xff]
  %v1252 = vld [vmem:[%s6 + $0x10] sm:$0xff]
  %v1253 = vld [vmem:[%s6 + $0x18] sm:$0xff]
  %v1254 = vld [vmem:[%s6 + $0x20] sm:$0xff]
  %v1255 = vld [vmem:[%s6 + $0x28] sm:$0xff]
  %v1256 = vld [vmem:[%s6 + $0x30] sm:$0xff]
  %v1257 = vld [vmem:[%s6 + $0x38] sm:$0xff]
  %vm1258 = vcmask 523264
  %v1260 = vsel %vm1258, %v1218, 0
  %v1263 = vsel %vm1258, %v1219, 0
  %v1266 = vsel %vm1258, %v1220, 0
  %v1269 = vsel %vm1258, %v1221, 0
  %v1272 = vsel %vm1258, %v1222, 0
  %v1275 = vsel %vm1258, %v1223, 0
  %v1278 = vsel %vm1258, %v1224, 0
  %v1281 = vsel %vm1258, %v1225, 0
  %v1284 = vsel %vm1258, %v1226, 0
  %v1287 = vsel %vm1258, %v1227, 0
  %v1290 = vsel %vm1258, %v1228, 0
  %v1293 = vsel %vm1258, %v1229, 0
  %v1296 = vsel %vm1258, %v1230, 0
  %v1299 = vsel %vm1258, %v1231, 0
  %v1302 = vsel %vm1258, %v1232, 0
  %v1305 = vsel %vm1258, %v1233, 0
  %v1308 = vsel %vm1258, %v1234, 0
  %v1311 = vsel %vm1258, %v1235, 0
  %v1314 = vsel %vm1258, %v1236, 0
  %v1317 = vsel %vm1258, %v1237, 0
  %v1320 = vsel %vm1258, %v1238, 0
  %v1323 = vsel %vm1258, %v1239, 0
  %v1326 = vsel %vm1258, %v1240, 0
  %v1329 = vsel %vm1258, %v1241, 0
  %v1332 = vsel %vm1258, %v1242, 0
  %v1335 = vsel %vm1258, %v1243, 0
  %v1338 = vsel %vm1258, %v1244, 0
  %v1341 = vsel %vm1258, %v1245, 0
  %v1344 = vsel %vm1258, %v1246, 0
  %v1347 = vsel %vm1258, %v1247, 0
  %v1350 = vsel %vm1258, %v1248, 0
  %v1353 = vsel %vm1258, %v1249, 0
  %1355 = vmatprep.subr.mxu0 0.0
  %1356 = vmatpush1.msra.mxu0 0.0
  %1357 = vmatprep.subr.mxu0 0.0
  %1358 = vmatpush1.msra.mxu0 0.0
  %1359 = vmatprep.subr.mxu0 0.0
  %1360 = vmatpush1.msra.mxu0 0.0
  %1361 = vmatprep.subr.mxu0 0.0
  %1362 = vmatpush1.msra.mxu0 0.0
  %1363 = vmatprep.subr.mxu0 0.0
  %1364 = vmatpush1.msra.mxu0 0.0
  %1365 = vmatprep.subr.mxu0 0.0
  %1366 = vmatpush1.msra.mxu0 0.0
  %1367 = vmatprep.subr.mxu0 0.0
  %1368 = vmatpush1.msra.mxu0 0.0
  %1369 = vmatprep.subr.mxu0 0.0
  %1370 = vmatpush1.msra.mxu0 0.0
  %1371 = vmatprep.subr.mxu0 0.0
  %1372 = vmatpush1.msra.mxu0 %v1257
  %1373 = vmatprep.subr.mxu0 0.0
  %1374 = vmatpush1.msra.mxu0 %v1256
  %1375 = vmatprep.subr.mxu0 0.0
  %1376 = vmatpush1.msra.mxu0 %v1255
  %1377 = vmatprep.subr.mxu0 0.0
  %1378 = vmatpush1.msra.mxu0 %v1254
  %1379 = vmatprep.subr.mxu0 0.0
  %1380 = vmatpush1.msra.mxu0 %v1253
  %1381 = vmatprep.subr.mxu0 0.0
  %1382 = vmatpush1.msra.mxu0 %v1252
  %1383 = vmatprep.subr.mxu0 0.0
  %1384 = vmatpush1.msra.mxu0 %v1251
  %1385 = vmatprep.subr.mxu0 0.0
  %1386 = vmatpush1.msra.mxu0 %v1250
  %1387 = vmatprep.subr.mxu0 0.0
  %1388 = vmatpush2.msra.mxu0 0.0
  %1389 = vmatprep.subr.mxu0 0.0
  %1390 = vmatpush2.msra.mxu0 0.0
  %1391 = vmatprep.subr.mxu0 0.0
  %1392 = vmatpush2.msra.mxu0 0.0
  %1393 = vmatprep.subr.mxu0 0.0
  %1394 = vmatpush2.msra.mxu0 0.0
  %1395 = vmatprep.subr.mxu0 0.0
  %1396 = vmatpush2.msra.mxu0 0.0
  %1397 = vmatprep.subr.mxu0 0.0
  %1398 = vmatpush2.msra.mxu0 0.0
  %1399 = vmatprep.subr.mxu0 0.0
  %1400 = vmatpush2.msra.mxu0 0.0
  %1401 = vmatprep.subr.mxu0 0.0
  %1402 = vmatpush2.msra.mxu0 0.0
  %1403 = vmatprep.subr.mxu0 0.0
  %1404 = vmatpush2.msra.mxu0 0.0
  %1405 = vmatprep.subr.mxu0 0.0
  %1406 = vmatpush2.msra.mxu0 0.0
  %1407 = vmatprep.subr.mxu0 0.0
  %1408 = vmatpush2.msra.mxu0 0.0
  %1409 = vmatprep.subr.mxu0 0.0
  %1410 = vmatpush2.msra.mxu0 0.0
  %1411 = vmatprep.subr.mxu0 0.0
  %1412 = vmatpush2.msra.mxu0 0.0
  %1413 = vmatprep.subr.mxu0 0.0
  %1414 = vmatpush2.msra.mxu0 0.0
  %1415 = vmatprep.subr.mxu0 0.0
  %1416 = vmatpush2.msra.mxu0 0.0
  %1417 = vmatprep.subr.mxu0 0.0
  %1418 = vmatpush2.msra.mxu0 0.0
  %1419 = vmatprep.mubr.f32.mxu0 0.0
  %1420 = vmatmul.mubr.f32.gmra.mxu0 %v1260
  %v1421 = vpop.f32.mrf.mxu0
  %v1422 = vadd.f32 0.0, %v1421
  %v1423 = vpop.f32.mrf.mxu0
  %1424 = vmatprep.mubr.f32.mxu0 0.0
  %1425 = vmatmul.mubr.f32.gmra.mxu0 %v1263
  %v1426 = vpop.f32.mrf.mxu0
  %v1427 = vadd.f32 0.0, %v1426
  %v1428 = vpop.f32.mrf.mxu0
  %1429 = vmatprep.mubr.f32.mxu0 0.0
  %1430 = vmatmul.mubr.f32.gmra.mxu0 %v1266
  %v1431 = vpop.f32.mrf.mxu0
  %v1432 = vadd.f32 0.0, %v1431
  %v1433 = vpop.f32.mrf.mxu0
  %1434 = vmatprep.mubr.f32.mxu0 0.0
  %1435 = vmatmul.mubr.f32.gmra.mxu0 %v1269
  %v1436 = vpop.f32.mrf.mxu0
  %v1437 = vadd.f32 0.0, %v1436
  %v1438 = vpop.f32.mrf.mxu0
  %1439 = vmatprep.mubr.f32.mxu0 0.0
  %1440 = vmatmul.mubr.f32.gmra.mxu0 %v1272
  %v1441 = vpop.f32.mrf.mxu0
  %v1442 = vadd.f32 0.0, %v1441
  %v1443 = vpop.f32.mrf.mxu0
  %1444 = vmatprep.mubr.f32.mxu0 0.0
  %1445 = vmatmul.mubr.f32.gmra.mxu0 %v1275
  %v1446 = vpop.f32.mrf.mxu0
  %v1447 = vadd.f32 0.0, %v1446
  %v1448 = vpop.f32.mrf.mxu0
  %1449 = vmatprep.mubr.f32.mxu0 0.0
  %1450 = vmatmul.mubr.f32.gmra.mxu0 %v1278
  %v1451 = vpop.f32.mrf.mxu0
  %v1452 = vadd.f32 0.0, %v1451
  %v1453 = vpop.f32.mrf.mxu0
  %1454 = vmatprep.mubr.f32.mxu0 0.0
  %1455 = vmatmul.mubr.f32.gmra.mxu0 %v1281
  %v1456 = vpop.f32.mrf.mxu0
  %v1457 = vadd.f32 0.0, %v1456
  %v1458 = vpop.f32.mrf.mxu0
  %1459 = vmatprep.mubr.f32.mxu0 0.0
  %1460 = vmatmul.mubr.f32.gmra.mxu0 %v1284
  %v1461 = vpop.f32.mrf.mxu0
  %v1462 = vadd.f32 0.0, %v1461
  %v1463 = vpop.f32.mrf.mxu0
  %1464 = vmatprep.mubr.f32.mxu0 0.0
  %1465 = vmatmul.mubr.f32.gmra.mxu0 %v1287
  %v1466 = vpop.f32.mrf.mxu0
  %v1467 = vadd.f32 0.0, %v1466
  %v1468 = vpop.f32.mrf.mxu0
  %1469 = vmatprep.mubr.f32.mxu0 0.0
  %1470 = vmatmul.mubr.f32.gmra.mxu0 %v1290
  %v1471 = vpop.f32.mrf.mxu0
  %v1472 = vadd.f32 0.0, %v1471
  %v1473 = vpop.f32.mrf.mxu0
  %1474 = vmatprep.mubr.f32.mxu0 0.0
  %1475 = vmatmul.mubr.f32.gmra.mxu0 %v1293
  %v1476 = vpop.f32.mrf.mxu0
  %v1477 = vadd.f32 0.0, %v1476
  %v1478 = vpop.f32.mrf.mxu0
  %1479 = vmatprep.mubr.f32.mxu0 0.0
  %1480 = vmatmul.mubr.f32.gmra.mxu0 %v1296
  %v1481 = vpop.f32.mrf.mxu0
  %v1482 = vadd.f32 0.0, %v1481
  %v1483 = vpop.f32.mrf.mxu0
  %1484 = vmatprep.mubr.f32.mxu0 0.0
  %1485 = vmatmul.mubr.f32.gmra.mxu0 %v1299
  %v1486 = vpop.f32.mrf.mxu0
  %v1487 = vadd.f32 0.0, %v1486
  %v1488 = vpop.f32.mrf.mxu0
  %1489 = vmatprep.mubr.f32.mxu0 0.0
  %1490 = vmatmul.mubr.f32.gmra.mxu0 %v1302
  %v1491 = vpop.f32.mrf.mxu0
  %v1492 = vadd.f32 0.0, %v1491
  %v1493 = vpop.f32.mrf.mxu0
  %1494 = vmatprep.mubr.f32.mxu0 0.0
  %1495 = vmatmul.mubr.f32.gmra.mxu0 %v1305
  %v1496 = vpop.f32.mrf.mxu0
  %v1497 = vadd.f32 0.0, %v1496
  %v1498 = vpop.f32.mrf.mxu0
  %1499 = vmatprep.mubr.f32.mxu0 0.0
  %1500 = vmatmul.mubr.f32.gmra.mxu0 %v1308
  %v1501 = vpop.f32.mrf.mxu0
  %v1502 = vadd.f32 0.0, %v1501
  %v1503 = vpop.f32.mrf.mxu0
  %1504 = vmatprep.mubr.f32.mxu0 0.0
  %1505 = vmatmul.mubr.f32.gmra.mxu0 %v1311
  %v1506 = vpop.f32.mrf.mxu0
  %v1507 = vadd.f32 0.0, %v1506
  %v1508 = vpop.f32.mrf.mxu0
  %1509 = vmatprep.mubr.f32.mxu0 0.0
  %1510 = vmatmul.mubr.f32.gmra.mxu0 %v1314
  %v1511 = vpop.f32.mrf.mxu0
  %v1512 = vadd.f32 0.0, %v1511
  %v1513 = vpop.f32.mrf.mxu0
  %1514 = vmatprep.mubr.f32.mxu0 0.0
  %1515 = vmatmul.mubr.f32.gmra.mxu0 %v1317
  %v1516 = vpop.f32.mrf.mxu0
  %v1517 = vadd.f32 0.0, %v1516
  %v1518 = vpop.f32.mrf.mxu0
  %1519 = vmatprep.mubr.f32.mxu0 0.0
  %1520 = vmatmul.mubr.f32.gmra.mxu0 %v1320
  %v1521 = vpop.f32.mrf.mxu0
  %v1522 = vadd.f32 0.0, %v1521
  %v1523 = vpop.f32.mrf.mxu0
  %1524 = vmatprep.mubr.f32.mxu0 0.0
  %1525 = vmatmul.mubr.f32.gmra.mxu0 %v1323
  %v1526 = vpop.f32.mrf.mxu0
  %v1527 = vadd.f32 0.0, %v1526
  %v1528 = vpop.f32.mrf.mxu0
  %1529 = vmatprep.mubr.f32.mxu0 0.0
  %1530 = vmatmul.mubr.f32.gmra.mxu0 %v1326
  %v1531 = vpop.f32.mrf.mxu0
  %v1532 = vadd.f32 0.0, %v1531
  %v1533 = vpop.f32.mrf.mxu0
  %1534 = vmatprep.mubr.f32.mxu0 0.0
  %1535 = vmatmul.mubr.f32.gmra.mxu0 %v1329
  %v1536 = vpop.f32.mrf.mxu0
  %v1537 = vadd.f32 0.0, %v1536
  %v1538 = vpop.f32.mrf.mxu0
  %1539 = vmatprep.mubr.f32.mxu0 0.0
  %1540 = vmatmul.mubr.f32.gmra.mxu0 %v1332
  %v1541 = vpop.f32.mrf.mxu0
  %v1542 = vadd.f32 0.0, %v1541
  %v1543 = vpop.f32.mrf.mxu0
  %1544 = vmatprep.mubr.f32.mxu0 0.0
  %1545 = vmatmul.mubr.f32.gmra.mxu0 %v1335
  %v1546 = vpop.f32.mrf.mxu0
  %v1547 = vadd.f32 0.0, %v1546
  %v1548 = vpop.f32.mrf.mxu0
  %1549 = vmatprep.mubr.f32.mxu0 0.0
  %1550 = vmatmul.mubr.f32.gmra.mxu0 %v1338
  %v1551 = vpop.f32.mrf.mxu0
  %v1552 = vadd.f32 0.0, %v1551
  %v1553 = vpop.f32.mrf.mxu0
  %1554 = vmatprep.mubr.f32.mxu0 0.0
  %1555 = vmatmul.mubr.f32.gmra.mxu0 %v1341
  %v1556 = vpop.f32.mrf.mxu0
  %v1557 = vadd.f32 0.0, %v1556
  %v1558 = vpop.f32.mrf.mxu0
  %1559 = vmatprep.mubr.f32.mxu0 0.0
  %1560 = vmatmul.mubr.f32.gmra.mxu0 %v1344
  %v1561 = vpop.f32.mrf.mxu0
  %v1562 = vadd.f32 0.0, %v1561
  %v1563 = vpop.f32.mrf.mxu0
  %1564 = vmatprep.mubr.f32.mxu0 0.0
  %1565 = vmatmul.mubr.f32.gmra.mxu0 %v1347
  %v1566 = vpop.f32.mrf.mxu0
  %v1567 = vadd.f32 0.0, %v1566
  %v1568 = vpop.f32.mrf.mxu0
  %1569 = vmatprep.mubr.f32.mxu0 0.0
  %1570 = vmatmul.mubr.f32.gmra.mxu0 %v1350
  %v1571 = vpop.f32.mrf.mxu0
  %v1572 = vadd.f32 0.0, %v1571
  %v1573 = vpop.f32.mrf.mxu0
  %1574 = vmatprep.mubr.f32.mxu0 0.0
  %1575 = vmatmul.mubr.f32.gmra.mxu0 %v1353
  %v1576 = vpop.f32.mrf.mxu0
  %v1577 = vadd.f32 0.0, %v1576
  %v1578 = vpop.f32.mrf.mxu0
  %1579 = vdwg.mxu0
  %1582 = vrot.lane.b32.xlu0 %v1432, 32
  %v1583 = vpop.permute.xlu0 %1582
  %1584 = vrot.lane.b32.xlu0 %v1437, 32
  %v1585 = vpop.permute.xlu0 %1584
  %1590 = vrot.lane.b32.xlu0 %v1442, 64
  %v1591 = vpop.permute.xlu0 %1590
  %1592 = vrot.lane.b32.xlu0 %v1447, 64
  %v1593 = vpop.permute.xlu0 %1592
  %1598 = vrot.lane.b32.xlu0 %v1452, 96
  %v1599 = vpop.permute.xlu0 %1598
  %1600 = vrot.lane.b32.xlu0 %v1457, 96
  %v1601 = vpop.permute.xlu0 %1600
  %1606 = vrot.lane.b32.xlu0 %v1472, 32
  %v1607 = vpop.permute.xlu0 %1606
  %1608 = vrot.lane.b32.xlu0 %v1477, 32
  %v1609 = vpop.permute.xlu0 %1608
  %1614 = vrot.lane.b32.xlu0 %v1482, 64
  %v1615 = vpop.permute.xlu0 %1614
  %1616 = vrot.lane.b32.xlu0 %v1487, 64
  %v1617 = vpop.permute.xlu0 %1616
  %1622 = vrot.lane.b32.xlu0 %v1492, 96
  %v1623 = vpop.permute.xlu0 %1622
  %1624 = vrot.lane.b32.xlu0 %v1497, 96
  %v1625 = vpop.permute.xlu0 %1624
  %1630 = vrot.lane.b32.xlu0 %v1512, 32
  %v1631 = vpop.permute.xlu0 %1630
  %1632 = vrot.lane.b32.xlu0 %v1517, 32
  %v1633 = vpop.permute.xlu0 %1632
  %1638 = vrot.lane.b32.xlu0 %v1522, 64
  %v1639 = vpop.permute.xlu0 %1638
  %1640 = vrot.lane.b32.xlu0 %v1527, 64
  %v1641 = vpop.permute.xlu0 %1640
  %1646 = vrot.lane.b32.xlu0 %v1532, 96
  %v1647 = vpop.permute.xlu0 %1646
  %1648 = vrot.lane.b32.xlu0 %v1537, 96
  %v1649 = vpop.permute.xlu0 %1648
  %1654 = vrot.lane.b32.xlu0 %v1552, 32
  %v1655 = vpop.permute.xlu0 %1654
  %1656 = vrot.lane.b32.xlu0 %v1557, 32
  %v1657 = vpop.permute.xlu0 %1656
  %1662 = vrot.lane.b32.xlu0 %v1562, 64
  %v1663 = vpop.permute.xlu0 %1662
  %1664 = vrot.lane.b32.xlu0 %v1567, 64
  %v1665 = vpop.permute.xlu0 %1664
  %1670 = vrot.lane.b32.xlu0 %v1572, 96
  %v1671 = vpop.permute.xlu0 %1670
  %1672 = vrot.lane.b32.xlu0 %v1577, 96
  %v1673 = vpop.permute.xlu0 %1672
  %v1676 = vsel %vm168, %v1422, %v1583
  %v1677 = vsel %vm168, %v1427, %v1585
  %v1678 = vsel %vm1258, %v1676, %v1591
  %v1679 = vsel %vm1258, %v1677, %v1593
  %vm1680 = vcmask 785408
  %v1681 = vsel %vm1680, %v1678, %v1599
  %v1682 = vsel %vm1680, %v1679, %v1601
  %v1683 = vsel %vm168, %v1462, %v1607
  %v1684 = vsel %vm168, %v1467, %v1609
  %v1685 = vsel %vm1258, %v1683, %v1615
  %v1686 = vsel %vm1258, %v1684, %v1617
  %v1687 = vsel %vm1680, %v1685, %v1623
  %v1688 = vsel %vm1680, %v1686, %v1625
  %v1689 = vsel %vm168, %v1502, %v1631
  %v1690 = vsel %vm168, %v1507, %v1633
  %v1691 = vsel %vm1258, %v1689, %v1639
  %v1692 = vsel %vm1258, %v1690, %v1641
  %v1693 = vsel %vm1680, %v1691, %v1647
  %v1694 = vsel %vm1680, %v1692, %v1649
  %v1695 = vsel %vm168, %v1542, %v1655
  %v1696 = vsel %vm168, %v1547, %v1657
  %v1697 = vsel %vm1258, %v1695, %v1663
  %v1698 = vsel %vm1258, %v1696, %v1665
  %v1699 = vsel %vm1680, %v1697, %v1671
  %v1700 = vsel %vm1680, %v1698, %v1673
  %v1701 = vld [vmem:[%s7] sm:$0xff]
  %v1702 = vld [vmem:[%s7 + $0x8] sm:$0xff]
  %v1703 = vld [vmem:[%s7 + $0x10] sm:$0xff]
  %v1704 = vld [vmem:[%s7 + $0x18] sm:$0xff]
  %v1705 = vld [vmem:[%s7 + $0x20] sm:$0xff]
  %v1706 = vld [vmem:[%s7 + $0x28] sm:$0xff]
  %v1707 = vld [vmem:[%s7 + $0x30] sm:$0xff]
  %v1708 = vld [vmem:[%s7 + $0x38] sm:$0xff]
  %v1709 = vld [vmem:[%s7 + $0x40] sm:$0xff]
  %v1710 = vld [vmem:[%s7 + $0x48] sm:$0xff]
  %v1711 = vld [vmem:[%s7 + $0x50] sm:$0xff]
  %v1712 = vld [vmem:[%s7 + $0x58] sm:$0xff]
  %v1713 = vld [vmem:[%s7 + $0x60] sm:$0xff]
  %v1714 = vld [vmem:[%s7 + $0x68] sm:$0xff]
  %v1715 = vld [vmem:[%s7 + $0x70] sm:$0xff]
  %v1716 = vld [vmem:[%s7 + $0x78] sm:$0xff]
  %v1717 = vld [vmem:[%s7 + $0x80] sm:$0xff]
  %v1718 = vld [vmem:[%s7 + $0x88] sm:$0xff]
  %v1719 = vld [vmem:[%s7 + $0x90] sm:$0xff]
  %v1720 = vld [vmem:[%s7 + $0x98] sm:$0xff]
  %v1721 = vld [vmem:[%s7 + $0xa0] sm:$0xff]
  %v1722 = vld [vmem:[%s7 + $0xa8] sm:$0xff]
  %v1723 = vld [vmem:[%s7 + $0xb0] sm:$0xff]
  %v1724 = vld [vmem:[%s7 + $0xb8] sm:$0xff]
  %v1725 = vld [vmem:[%s7 + $0xc0] sm:$0xff]
  %v1726 = vld [vmem:[%s7 + $0xc8] sm:$0xff]
  %v1727 = vld [vmem:[%s7 + $0xd0] sm:$0xff]
  %v1728 = vld [vmem:[%s7 + $0xd8] sm:$0xff]
  %v1729 = vld [vmem:[%s7 + $0xe0] sm:$0xff]
  %v1730 = vld [vmem:[%s7 + $0xe8] sm:$0xff]
  %v1731 = vld [vmem:[%s7 + $0xf0] sm:$0xff]
  %v1732 = vld [vmem:[%s7 + $0xf8] sm:$0xff]
  %v1733 = vld [vmem:[%s7 + $0x100] sm:$0xff]
  %v1734 = vld [vmem:[%s7 + $0x108] sm:$0xff]
  %v1735 = vld [vmem:[%s7 + $0x110] sm:$0xff]
  %v1736 = vld [vmem:[%s7 + $0x118] sm:$0xff]
  %v1737 = vld [vmem:[%s7 + $0x120] sm:$0xff]
  %v1738 = vld [vmem:[%s7 + $0x128] sm:$0xff]
  %v1739 = vld [vmem:[%s7 + $0x130] sm:$0xff]
  %v1740 = vld [vmem:[%s7 + $0x138] sm:$0xff]
  %v1741 = vld [vmem:[%s7 + $0x140] sm:$0xff]
  %v1742 = vld [vmem:[%s7 + $0x148] sm:$0xff]
  %v1743 = vld [vmem:[%s7 + $0x150] sm:$0xff]
  %v1744 = vld [vmem:[%s7 + $0x158] sm:$0xff]
  %v1745 = vld [vmem:[%s7 + $0x160] sm:$0xff]
  %v1746 = vld [vmem:[%s7 + $0x168] sm:$0xff]
  %v1747 = vld [vmem:[%s7 + $0x170] sm:$0xff]
  %v1748 = vld [vmem:[%s7 + $0x178] sm:$0xff]
  %v1749 = vld [vmem:[%s7 + $0x180] sm:$0xff]
  %v1750 = vld [vmem:[%s7 + $0x188] sm:$0xff]
  %v1751 = vld [vmem:[%s7 + $0x190] sm:$0xff]
  %v1752 = vld [vmem:[%s7 + $0x198] sm:$0xff]
  %v1753 = vld [vmem:[%s7 + $0x1a0] sm:$0xff]
  %v1754 = vld [vmem:[%s7 + $0x1a8] sm:$0xff]
  %v1755 = vld [vmem:[%s7 + $0x1b0] sm:$0xff]
  %v1756 = vld [vmem:[%s7 + $0x1b8] sm:$0xff]
  %v1757 = vld [vmem:[%s7 + $0x1c0] sm:$0xff]
  %v1758 = vld [vmem:[%s7 + $0x1c8] sm:$0xff]
  %v1759 = vld [vmem:[%s7 + $0x1d0] sm:$0xff]
  %v1760 = vld [vmem:[%s7 + $0x1d8] sm:$0xff]
  %v1761 = vld [vmem:[%s7 + $0x1e0] sm:$0xff]
  %v1762 = vld [vmem:[%s7 + $0x1e8] sm:$0xff]
  %v1763 = vld [vmem:[%s7 + $0x1f0] sm:$0xff]
  %v1764 = vld [vmem:[%s7 + $0x1f8] sm:$0xff]
  %v1765 = vld [vmem:[%s7 + $0x200] sm:$0xff]
  %v1766 = vld [vmem:[%s7 + $0x208] sm:$0xff]
  %v1767 = vld [vmem:[%s7 + $0x210] sm:$0xff]
  %v1768 = vld [vmem:[%s7 + $0x218] sm:$0xff]
  %v1769 = vld [vmem:[%s7 + $0x220] sm:$0xff]
  %v1770 = vld [vmem:[%s7 + $0x228] sm:$0xff]
  %v1771 = vld [vmem:[%s7 + $0x230] sm:$0xff]
  %v1772 = vld [vmem:[%s7 + $0x238] sm:$0xff]
  %v1773 = vld [vmem:[%s7 + $0x240] sm:$0xff]
  %v1774 = vld [vmem:[%s7 + $0x248] sm:$0xff]
  %v1775 = vld [vmem:[%s7 + $0x250] sm:$0xff]
  %v1776 = vld [vmem:[%s7 + $0x258] sm:$0xff]
  %v1777 = vld [vmem:[%s7 + $0x260] sm:$0xff]
  %v1778 = vld [vmem:[%s7 + $0x268] sm:$0xff]
  %v1779 = vld [vmem:[%s7 + $0x270] sm:$0xff]
  %v1780 = vld [vmem:[%s7 + $0x278] sm:$0xff]
  %v1781 = vld [vmem:[%s7 + $0x280] sm:$0xff]
  %v1782 = vld [vmem:[%s7 + $0x288] sm:$0xff]
  %v1783 = vld [vmem:[%s7 + $0x290] sm:$0xff]
  %v1784 = vld [vmem:[%s7 + $0x298] sm:$0xff]
  %v1785 = vld [vmem:[%s7 + $0x2a0] sm:$0xff]
  %v1786 = vld [vmem:[%s7 + $0x2a8] sm:$0xff]
  %v1787 = vld [vmem:[%s7 + $0x2b0] sm:$0xff]
  %v1788 = vld [vmem:[%s7 + $0x2b8] sm:$0xff]
  %v1789 = vld [vmem:[%s7 + $0x2c0] sm:$0xff]
  %v1790 = vld [vmem:[%s7 + $0x2c8] sm:$0xff]
  %v1791 = vld [vmem:[%s7 + $0x2d0] sm:$0xff]
  %v1792 = vld [vmem:[%s7 + $0x2d8] sm:$0xff]
  %v1793 = vld [vmem:[%s7 + $0x2e0] sm:$0xff]
  %v1794 = vld [vmem:[%s7 + $0x2e8] sm:$0xff]
  %v1795 = vld [vmem:[%s7 + $0x2f0] sm:$0xff]
  %v1796 = vld [vmem:[%s7 + $0x2f8] sm:$0xff]
  %v1797 = vld [vmem:[%s7 + $0x300] sm:$0xff]
  %v1798 = vld [vmem:[%s7 + $0x308] sm:$0xff]
  %v1799 = vld [vmem:[%s7 + $0x310] sm:$0xff]
  %v1800 = vld [vmem:[%s7 + $0x318] sm:$0xff]
  %v1801 = vld [vmem:[%s7 + $0x320] sm:$0xff]
  %v1802 = vld [vmem:[%s7 + $0x328] sm:$0xff]
  %v1803 = vld [vmem:[%s7 + $0x330] sm:$0xff]
  %v1804 = vld [vmem:[%s7 + $0x338] sm:$0xff]
  %v1805 = vld [vmem:[%s7 + $0x340] sm:$0xff]
  %v1806 = vld [vmem:[%s7 + $0x348] sm:$0xff]
  %v1807 = vld [vmem:[%s7 + $0x350] sm:$0xff]
  %v1808 = vld [vmem:[%s7 + $0x358] sm:$0xff]
  %v1809 = vld [vmem:[%s7 + $0x360] sm:$0xff]
  %v1810 = vld [vmem:[%s7 + $0x368] sm:$0xff]
  %v1811 = vld [vmem:[%s7 + $0x370] sm:$0xff]
  %v1812 = vld [vmem:[%s7 + $0x378] sm:$0xff]
  %v1813 = vld [vmem:[%s7 + $0x380] sm:$0xff]
  %v1814 = vld [vmem:[%s7 + $0x388] sm:$0xff]
  %v1815 = vld [vmem:[%s7 + $0x390] sm:$0xff]
  %v1816 = vld [vmem:[%s7 + $0x398] sm:$0xff]
  %v1817 = vld [vmem:[%s7 + $0x3a0] sm:$0xff]
  %v1818 = vld [vmem:[%s7 + $0x3a8] sm:$0xff]
  %v1819 = vld [vmem:[%s7 + $0x3b0] sm:$0xff]
  %v1820 = vld [vmem:[%s7 + $0x3b8] sm:$0xff]
  %v1821 = vld [vmem:[%s7 + $0x3c0] sm:$0xff]
  %v1822 = vld [vmem:[%s7 + $0x3c8] sm:$0xff]
  %v1823 = vld [vmem:[%s7 + $0x3d0] sm:$0xff]
  %v1824 = vld [vmem:[%s7 + $0x3d8] sm:$0xff]
  %v1825 = vld [vmem:[%s7 + $0x3e0] sm:$0xff]
  %v1826 = vld [vmem:[%s7 + $0x3e8] sm:$0xff]
  %v1827 = vld [vmem:[%s7 + $0x3f0] sm:$0xff]
  %v1828 = vld [vmem:[%s7 + $0x3f8] sm:$0xff]
  %v1829 = vld [vmem:[%s7 + $0x400] sm:$0xff]
  %v1830 = vld [vmem:[%s7 + $0x408] sm:$0xff]
  %v1831 = vld [vmem:[%s7 + $0x410] sm:$0xff]
  %v1832 = vld [vmem:[%s7 + $0x418] sm:$0xff]
  %v1833 = vld [vmem:[%s7 + $0x420] sm:$0xff]
  %v1834 = vld [vmem:[%s7 + $0x428] sm:$0xff]
  %v1835 = vld [vmem:[%s7 + $0x430] sm:$0xff]
  %v1836 = vld [vmem:[%s7 + $0x438] sm:$0xff]
  %v1837 = vld [vmem:[%s7 + $0x440] sm:$0xff]
  %v1838 = vld [vmem:[%s7 + $0x448] sm:$0xff]
  %v1839 = vld [vmem:[%s7 + $0x450] sm:$0xff]
  %v1840 = vld [vmem:[%s7 + $0x458] sm:$0xff]
  %v1841 = vld [vmem:[%s7 + $0x460] sm:$0xff]
  %v1842 = vld [vmem:[%s7 + $0x468] sm:$0xff]
  %v1843 = vld [vmem:[%s7 + $0x470] sm:$0xff]
  %v1844 = vld [vmem:[%s7 + $0x478] sm:$0xff]
  %v1845 = vld [vmem:[%s7 + $0x480] sm:$0xff]
  %v1846 = vld [vmem:[%s7 + $0x488] sm:$0xff]
  %v1847 = vld [vmem:[%s7 + $0x490] sm:$0xff]
  %v1848 = vld [vmem:[%s7 + $0x498] sm:$0xff]
  %v1849 = vld [vmem:[%s7 + $0x4a0] sm:$0xff]
  %v1850 = vld [vmem:[%s7 + $0x4a8] sm:$0xff]
  %v1851 = vld [vmem:[%s7 + $0x4b0] sm:$0xff]
  %v1852 = vld [vmem:[%s7 + $0x4b8] sm:$0xff]
  %v1853 = vld [vmem:[%s7 + $0x4c0] sm:$0xff]
  %v1854 = vld [vmem:[%s7 + $0x4c8] sm:$0xff]
  %v1855 = vld [vmem:[%s7 + $0x4d0] sm:$0xff]
  %v1856 = vld [vmem:[%s7 + $0x4d8] sm:$0xff]
  %v1857 = vld [vmem:[%s7 + $0x4e0] sm:$0xff]
  %v1858 = vld [vmem:[%s7 + $0x4e8] sm:$0xff]
  %v1859 = vld [vmem:[%s7 + $0x4f0] sm:$0xff]
  %v1860 = vld [vmem:[%s7 + $0x4f8] sm:$0xff]
  %v1861 = vld [vmem:[%s7 + $0x500] sm:$0xff]
  %v1862 = vld [vmem:[%s7 + $0x508] sm:$0xff]
  %v1863 = vld [vmem:[%s7 + $0x510] sm:$0xff]
  %v1864 = vld [vmem:[%s7 + $0x518] sm:$0xff]
  %v1865 = vld [vmem:[%s7 + $0x520] sm:$0xff]
  %v1866 = vld [vmem:[%s7 + $0x528] sm:$0xff]
  %v1867 = vld [vmem:[%s7 + $0x530] sm:$0xff]
  %v1868 = vld [vmem:[%s7 + $0x538] sm:$0xff]
  %v1869 = vld [vmem:[%s7 + $0x540] sm:$0xff]
  %v1870 = vld [vmem:[%s7 + $0x548] sm:$0xff]
  %v1871 = vld [vmem:[%s7 + $0x550] sm:$0xff]
  %v1872 = vld [vmem:[%s7 + $0x558] sm:$0xff]
  %v1873 = vld [vmem:[%s7 + $0x560] sm:$0xff]
  %v1874 = vld [vmem:[%s7 + $0x568] sm:$0xff]
  %v1875 = vld [vmem:[%s7 + $0x570] sm:$0xff]
  %v1876 = vld [vmem:[%s7 + $0x578] sm:$0xff]
  %v1877 = vld [vmem:[%s7 + $0x580] sm:$0xff]
  %v1878 = vld [vmem:[%s7 + $0x588] sm:$0xff]
  %v1879 = vld [vmem:[%s7 + $0x590] sm:$0xff]
  %v1880 = vld [vmem:[%s7 + $0x598] sm:$0xff]
  %v1881 = vld [vmem:[%s7 + $0x5a0] sm:$0xff]
  %v1882 = vld [vmem:[%s7 + $0x5a8] sm:$0xff]
  %v1883 = vld [vmem:[%s7 + $0x5b0] sm:$0xff]
  %v1884 = vld [vmem:[%s7 + $0x5b8] sm:$0xff]
  %v1885 = vld [vmem:[%s7 + $0x5c0] sm:$0xff]
  %v1886 = vld [vmem:[%s7 + $0x5c8] sm:$0xff]
  %v1887 = vld [vmem:[%s7 + $0x5d0] sm:$0xff]
  %v1888 = vld [vmem:[%s7 + $0x5d8] sm:$0xff]
  %v1889 = vld [vmem:[%s7 + $0x5e0] sm:$0xff]
  %v1890 = vld [vmem:[%s7 + $0x5e8] sm:$0xff]
  %v1891 = vld [vmem:[%s7 + $0x5f0] sm:$0xff]
  %v1892 = vld [vmem:[%s7 + $0x5f8] sm:$0xff]
  %v1893 = vld [vmem:[%s7 + $0x600] sm:$0xff]
  %v1894 = vld [vmem:[%s7 + $0x608] sm:$0xff]
  %v1895 = vld [vmem:[%s7 + $0x610] sm:$0xff]
  %v1896 = vld [vmem:[%s7 + $0x618] sm:$0xff]
  %v1897 = vld [vmem:[%s7 + $0x620] sm:$0xff]
  %v1898 = vld [vmem:[%s7 + $0x628] sm:$0xff]
  %v1899 = vld [vmem:[%s7 + $0x630] sm:$0xff]
  %v1900 = vld [vmem:[%s7 + $0x638] sm:$0xff]
  %v1901 = vld [vmem:[%s7 + $0x640] sm:$0xff]
  %v1902 = vld [vmem:[%s7 + $0x648] sm:$0xff]
  %v1903 = vld [vmem:[%s7 + $0x650] sm:$0xff]
  %v1904 = vld [vmem:[%s7 + $0x658] sm:$0xff]
  %v1905 = vld [vmem:[%s7 + $0x660] sm:$0xff]
  %v1906 = vld [vmem:[%s7 + $0x668] sm:$0xff]
  %v1907 = vld [vmem:[%s7 + $0x670] sm:$0xff]
  %v1908 = vld [vmem:[%s7 + $0x678] sm:$0xff]
  %v1909 = vld [vmem:[%s7 + $0x680] sm:$0xff]
  %v1910 = vld [vmem:[%s7 + $0x688] sm:$0xff]
  %v1911 = vld [vmem:[%s7 + $0x690] sm:$0xff]
  %v1912 = vld [vmem:[%s7 + $0x698] sm:$0xff]
  %v1913 = vld [vmem:[%s7 + $0x6a0] sm:$0xff]
  %v1914 = vld [vmem:[%s7 + $0x6a8] sm:$0xff]
  %v1915 = vld [vmem:[%s7 + $0x6b0] sm:$0xff]
  %v1916 = vld [vmem:[%s7 + $0x6b8] sm:$0xff]
  %v1917 = vld [vmem:[%s7 + $0x6c0] sm:$0xff]
  %v1918 = vld [vmem:[%s7 + $0x6c8] sm:$0xff]
  %v1919 = vld [vmem:[%s7 + $0x6d0] sm:$0xff]
  %v1920 = vld [vmem:[%s7 + $0x6d8] sm:$0xff]
  %v1921 = vld [vmem:[%s7 + $0x6e0] sm:$0xff]
  %v1922 = vld [vmem:[%s7 + $0x6e8] sm:$0xff]
  %v1923 = vld [vmem:[%s7 + $0x6f0] sm:$0xff]
  %v1924 = vld [vmem:[%s7 + $0x6f8] sm:$0xff]
  %v1925 = vld [vmem:[%s7 + $0x700] sm:$0xff]
  %v1926 = vld [vmem:[%s7 + $0x708] sm:$0xff]
  %v1927 = vld [vmem:[%s7 + $0x710] sm:$0xff]
  %v1928 = vld [vmem:[%s7 + $0x718] sm:$0xff]
  %v1929 = vld [vmem:[%s7 + $0x720] sm:$0xff]
  %v1930 = vld [vmem:[%s7 + $0x728] sm:$0xff]
  %v1931 = vld [vmem:[%s7 + $0x730] sm:$0xff]
  %v1932 = vld [vmem:[%s7 + $0x738] sm:$0xff]
  %v1933 = vld [vmem:[%s7 + $0x740] sm:$0xff]
  %v1934 = vld [vmem:[%s7 + $0x748] sm:$0xff]
  %v1935 = vld [vmem:[%s7 + $0x750] sm:$0xff]
  %v1936 = vld [vmem:[%s7 + $0x758] sm:$0xff]
  %v1937 = vld [vmem:[%s7 + $0x760] sm:$0xff]
  %v1938 = vld [vmem:[%s7 + $0x768] sm:$0xff]
  %v1939 = vld [vmem:[%s7 + $0x770] sm:$0xff]
  %v1940 = vld [vmem:[%s7 + $0x778] sm:$0xff]
  %v1941 = vld [vmem:[%s7 + $0x780] sm:$0xff]
  %v1942 = vld [vmem:[%s7 + $0x788] sm:$0xff]
  %v1943 = vld [vmem:[%s7 + $0x790] sm:$0xff]
  %v1944 = vld [vmem:[%s7 + $0x798] sm:$0xff]
  %v1945 = vld [vmem:[%s7 + $0x7a0] sm:$0xff]
  %v1946 = vld [vmem:[%s7 + $0x7a8] sm:$0xff]
  %v1947 = vld [vmem:[%s7 + $0x7b0] sm:$0xff]
  %v1948 = vld [vmem:[%s7 + $0x7b8] sm:$0xff]
  %v1949 = vld [vmem:[%s7 + $0x7c0] sm:$0xff]
  %v1950 = vld [vmem:[%s7 + $0x7c8] sm:$0xff]
  %v1951 = vld [vmem:[%s7 + $0x7d0] sm:$0xff]
  %v1952 = vld [vmem:[%s7 + $0x7d8] sm:$0xff]
  %v1953 = vld [vmem:[%s7 + $0x7e0] sm:$0xff]
  %v1954 = vld [vmem:[%s7 + $0x7e8] sm:$0xff]
  %v1955 = vld [vmem:[%s7 + $0x7f0] sm:$0xff]
  %v1956 = vld [vmem:[%s7 + $0x7f8] sm:$0xff]
  %v1957 = vld [vmem:[#allocation2] sm:$0xff]
  %v1958 = vld [vmem:[#allocation2 + $0x8] sm:$0xff]
  %v1959 = vld [vmem:[%s8] sm:$0xff]
  %v1960 = vld [vmem:[%s8 + $0x8] sm:$0xff]
  %v1961 = vld [vmem:[%s8 + $0x10] sm:$0xff]
  %v1962 = vld [vmem:[%s8 + $0x18] sm:$0xff]
  %v1963 = vld [vmem:[%s8 + $0x20] sm:$0xff]
  %v1964 = vld [vmem:[%s8 + $0x28] sm:$0xff]
  %v1965 = vld [vmem:[%s8 + $0x30] sm:$0xff]
  %v1966 = vld [vmem:[%s8 + $0x38] sm:$0xff]
  %v1967 = vld [vmem:[%s8 + $0x40] sm:$0xff]
  %v1968 = vld [vmem:[%s8 + $0x48] sm:$0xff]
  %v1969 = vld [vmem:[%s8 + $0x50] sm:$0xff]
  %v1970 = vld [vmem:[%s8 + $0x58] sm:$0xff]
  %v1971 = vld [vmem:[%s8 + $0x60] sm:$0xff]
  %v1972 = vld [vmem:[%s8 + $0x68] sm:$0xff]
  %v1973 = vld [vmem:[%s8 + $0x70] sm:$0xff]
  %v1974 = vld [vmem:[%s8 + $0x78] sm:$0xff]
  %v1976 = vsel %vm168, %v1957, 0
  %v1979 = vsel %vm168, %v1958, 0
  %1981 = vmatprep.subr.mxu0 0.0
  %1982 = vmatpush1.msra.mxu0 0.0
  %1983 = vmatprep.subr.mxu0 0.0
  %1984 = vmatpush1.msra.mxu0 0.0
  %1985 = vmatprep.subr.mxu0 0.0
  %1986 = vmatpush1.msra.mxu0 0.0
  %1987 = vmatprep.subr.mxu0 0.0
  %1988 = vmatpush1.msra.mxu0 0.0
  %1989 = vmatprep.subr.mxu0 0.0
  %1990 = vmatpush1.msra.mxu0 0.0
  %1991 = vmatprep.subr.mxu0 0.0
  %1992 = vmatpush1.msra.mxu0 0.0
  %1993 = vmatprep.subr.mxu0 0.0
  %1994 = vmatpush1.msra.mxu0 0.0
  %1995 = vmatprep.subr.mxu0 0.0
  %1996 = vmatpush1.msra.mxu0 0.0
  %1997 = vmatprep.subr.mxu0 0.0
  %1998 = vmatpush1.msra.mxu0 0.0
  %1999 = vmatprep.subr.mxu0 0.0
  %2000 = vmatpush1.msra.mxu0 0.0
  %2001 = vmatprep.subr.mxu0 0.0
  %2002 = vmatpush1.msra.mxu0 0.0
  %2003 = vmatprep.subr.mxu0 0.0
  %2004 = vmatpush1.msra.mxu0 0.0
  %2005 = vmatprep.subr.mxu0 %v1972
  %2006 = vmatpush1.msra.mxu0 %v1971
  %2007 = vmatprep.subr.mxu0 %v1968
  %2008 = vmatpush1.msra.mxu0 %v1967
  %2009 = vmatprep.subr.mxu0 %v1964
  %2010 = vmatpush1.msra.mxu0 %v1963
  %2011 = vmatprep.subr.mxu0 %v1960
  %2012 = vmatpush1.msra.mxu0 %v1959
  %2013 = vmatprep.subr.mxu0 0.0
  %2014 = vmatpush2.msra.mxu0 0.0
  %2015 = vmatprep.subr.mxu0 0.0
  %2016 = vmatpush2.msra.mxu0 0.0
  %2017 = vmatprep.subr.mxu0 0.0
  %2018 = vmatpush2.msra.mxu0 0.0
  %2019 = vmatprep.subr.mxu0 0.0
  %2020 = vmatpush2.msra.mxu0 0.0
  %2021 = vmatprep.subr.mxu0 0.0
  %2022 = vmatpush2.msra.mxu0 0.0
  %2023 = vmatprep.subr.mxu0 0.0
  %2024 = vmatpush2.msra.mxu0 0.0
  %2025 = vmatprep.subr.mxu0 0.0
  %2026 = vmatpush2.msra.mxu0 0.0
  %2027 = vmatprep.subr.mxu0 0.0
  %2028 = vmatpush2.msra.mxu0 0.0
  %2029 = vmatprep.subr.mxu0 0.0
  %2030 = vmatpush2.msra.mxu0 0.0
  %2031 = vmatprep.subr.mxu0 0.0
  %2032 = vmatpush2.msra.mxu0 0.0
  %2033 = vmatprep.subr.mxu0 0.0
  %2034 = vmatpush2.msra.mxu0 0.0
  %2035 = vmatprep.subr.mxu0 0.0
  %2036 = vmatpush2.msra.mxu0 0.0
  %2037 = vmatprep.subr.mxu0 0.0
  %2038 = vmatpush2.msra.mxu0 0.0
  %2039 = vmatprep.subr.mxu0 0.0
  %2040 = vmatpush2.msra.mxu0 0.0
  %2041 = vmatprep.subr.mxu0 0.0
  %2042 = vmatpush2.msra.mxu0 0.0
  %2043 = vmatprep.subr.mxu0 0.0
  %2044 = vmatpush2.msra.mxu0 0.0
  %2045 = vmatprep.mubr.f32.mxu0 0.0
  %2046 = vmatmul.mubr.f32.gmra.mxu0 %v1976
  %v2047 = vpop.f32.mrf.mxu0
  %v2048 = vadd.f32 0.0, %v2047
  %v2049 = vpop.f32.mrf.mxu0
  %v2050 = vadd.f32 0.0, %v2049
  %2051 = vmatprep.mubr.f32.mxu0 0.0
  %2052 = vmatmul.mubr.f32.gmra.mxu0 %v1979
  %v2053 = vpop.f32.mrf.mxu0
  %v2054 = vadd.f32 0.0, %v2053
  %v2055 = vpop.f32.mrf.mxu0
  %v2056 = vadd.f32 0.0, %v2055
  %2057 = vdwg.mxu0
  %2058 = vmatprep.subr.mxu0 0.0
  %2059 = vmatpush1.msra.mxu0 0.0
  %2060 = vmatprep.subr.mxu0 0.0
  %2061 = vmatpush1.msra.mxu0 0.0
  %2062 = vmatprep.subr.mxu0 0.0
  %2063 = vmatpush1.msra.mxu0 0.0
  %2064 = vmatprep.subr.mxu0 0.0
  %2065 = vmatpush1.msra.mxu0 0.0
  %2066 = vmatprep.subr.mxu0 0.0
  %2067 = vmatpush1.msra.mxu0 0.0
  %2068 = vmatprep.subr.mxu0 0.0
  %2069 = vmatpush1.msra.mxu0 0.0
  %2070 = vmatprep.subr.mxu0 0.0
  %2071 = vmatpush1.msra.mxu0 0.0
  %2072 = vmatprep.subr.mxu0 0.0
  %2073 = vmatpush1.msra.mxu0 0.0
  %2074 = vmatprep.subr.mxu0 0.0
  %2075 = vmatpush1.msra.mxu0 0.0
  %2076 = vmatprep.subr.mxu0 0.0
  %2077 = vmatpush1.msra.mxu0 0.0
  %2078 = vmatprep.subr.mxu0 0.0
  %2079 = vmatpush1.msra.mxu0 0.0
  %2080 = vmatprep.subr.mxu0 0.0
  %2081 = vmatpush1.msra.mxu0 0.0
  %2082 = vmatprep.subr.mxu0 %v1974
  %2083 = vmatpush1.msra.mxu0 %v1973
  %2084 = vmatprep.subr.mxu0 %v1970
  %2085 = vmatpush1.msra.mxu0 %v1969
  %2086 = vmatprep.subr.mxu0 %v1966
  %2087 = vmatpush1.msra.mxu0 %v1965
  %2088 = vmatprep.subr.mxu0 %v1962
  %2089 = vmatpush1.msra.mxu0 %v1961
  %2090 = vmatprep.subr.mxu0 0.0
  %2091 = vmatpush2.msra.mxu0 0.0
  %2092 = vmatprep.subr.mxu0 0.0
  %2093 = vmatpush2.msra.mxu0 0.0
  %2094 = vmatprep.subr.mxu0 0.0
  %2095 = vmatpush2.msra.mxu0 0.0
  %2096 = vmatprep.subr.mxu0 0.0
  %2097 = vmatpush2.msra.mxu0 0.0
  %2098 = vmatprep.subr.mxu0 0.0
  %2099 = vmatpush2.msra.mxu0 0.0
  %2100 = vmatprep.subr.mxu0 0.0
  %2101 = vmatpush2.msra.mxu0 0.0
  %2102 = vmatprep.subr.mxu0 0.0
  %2103 = vmatpush2.msra.mxu0 0.0
  %2104 = vmatprep.subr.mxu0 0.0
  %2105 = vmatpush2.msra.mxu0 0.0
  %2106 = vmatprep.subr.mxu0 0.0
  %2107 = vmatpush2.msra.mxu0 0.0
  %2108 = vmatprep.subr.mxu0 0.0
  %2109 = vmatpush2.msra.mxu0 0.0
  %2110 = vmatprep.subr.mxu0 0.0
  %2111 = vmatpush2.msra.mxu0 0.0
  %2112 = vmatprep.subr.mxu0 0.0
  %2113 = vmatpush2.msra.mxu0 0.0
  %2114 = vmatprep.subr.mxu0 0.0
  %2115 = vmatpush2.msra.mxu0 0.0
  %2116 = vmatprep.subr.mxu0 0.0
  %2117 = vmatpush2.msra.mxu0 0.0
  %2118 = vmatprep.subr.mxu0 0.0
  %2119 = vmatpush2.msra.mxu0 0.0
  %2120 = vmatprep.subr.mxu0 0.0
  %2121 = vmatpush2.msra.mxu0 0.0
  %2122 = vmatprep.mubr.f32.mxu0 0.0
  %2123 = vmatmul.mubr.f32.gmra.mxu0 %v1976
  %v2124 = vpop.f32.mrf.mxu0
  %v2125 = vadd.f32 0.0, %v2124
  %v2126 = vpop.f32.mrf.mxu0
  %v2127 = vadd.f32 0.0, %v2126
  %2128 = vmatprep.mubr.f32.mxu0 0.0
  %2129 = vmatmul.mubr.f32.gmra.mxu0 %v1979
  %v2130 = vpop.f32.mrf.mxu0
  %v2131 = vadd.f32 0.0, %v2130
  %v2132 = vpop.f32.mrf.mxu0
  %v2133 = vadd.f32 0.0, %v2132
  %2134 = vdwg.mxu0
  %2135 = vmatprep.subr.mxu0 %v1762
  %2136 = vmatpush1.msra.mxu0 %v1761
  %2137 = vmatprep.subr.mxu0 %v1758
  %2138 = vmatpush1.msra.mxu0 %v1757
  %2139 = vmatprep.subr.mxu0 %v1754
  %2140 = vmatpush1.msra.mxu0 %v1753
  %2141 = vmatprep.subr.mxu0 %v1750
  %2142 = vmatpush1.msra.mxu0 %v1749
  %2143 = vmatprep.subr.mxu0 %v1746
  %2144 = vmatpush1.msra.mxu0 %v1745
  %2145 = vmatprep.subr.mxu0 %v1742
  %2146 = vmatpush1.msra.mxu0 %v1741
  %2147 = vmatprep.subr.mxu0 %v1738
  %2148 = vmatpush1.msra.mxu0 %v1737
  %2149 = vmatprep.subr.mxu0 %v1734
  %2150 = vmatpush1.msra.mxu0 %v1733
  %2151 = vmatprep.subr.mxu0 %v1730
  %2152 = vmatpush1.msra.mxu0 %v1729
  %2153 = vmatprep.subr.mxu0 %v1726
  %2154 = vmatpush1.msra.mxu0 %v1725
  %2155 = vmatprep.subr.mxu0 %v1722
  %2156 = vmatpush1.msra.mxu0 %v1721
  %2157 = vmatprep.subr.mxu0 %v1718
  %2158 = vmatpush1.msra.mxu0 %v1717
  %2159 = vmatprep.subr.mxu0 %v1714
  %2160 = vmatpush1.msra.mxu0 %v1713
  %2161 = vmatprep.subr.mxu0 %v1710
  %2162 = vmatpush1.msra.mxu0 %v1709
  %2163 = vmatprep.subr.mxu0 %v1706
  %2164 = vmatpush1.msra.mxu0 %v1705
  %2165 = vmatprep.subr.mxu0 %v1702
  %2166 = vmatpush1.msra.mxu0 %v1701
  %2167 = vmatprep.subr.mxu0 %v1826
  %2168 = vmatpush2.msra.mxu0 %v1825
  %2169 = vmatprep.subr.mxu0 %v1822
  %2170 = vmatpush2.msra.mxu0 %v1821
  %2171 = vmatprep.subr.mxu0 %v1818
  %2172 = vmatpush2.msra.mxu0 %v1817
  %2173 = vmatprep.subr.mxu0 %v1814
  %2174 = vmatpush2.msra.mxu0 %v1813
  %2175 = vmatprep.subr.mxu0 %v1810
  %2176 = vmatpush2.msra.mxu0 %v1809
  %2177 = vmatprep.subr.mxu0 %v1806
  %2178 = vmatpush2.msra.mxu0 %v1805
  %2179 = vmatprep.subr.mxu0 %v1802
  %2180 = vmatpush2.msra.mxu0 %v1801
  %2181 = vmatprep.subr.mxu0 %v1798
  %2182 = vmatpush2.msra.mxu0 %v1797
  %2183 = vmatprep.subr.mxu0 %v1794
  %2184 = vmatpush2.msra.mxu0 %v1793
  %2185 = vmatprep.subr.mxu0 %v1790
  %2186 = vmatpush2.msra.mxu0 %v1789
  %2187 = vmatprep.subr.mxu0 %v1786
  %2188 = vmatpush2.msra.mxu0 %v1785
  %2189 = vmatprep.subr.mxu0 %v1782
  %2190 = vmatpush2.msra.mxu0 %v1781
  %2191 = vmatprep.subr.mxu0 %v1778
  %2192 = vmatpush2.msra.mxu0 %v1777
  %2193 = vmatprep.subr.mxu0 %v1774
  %2194 = vmatpush2.msra.mxu0 %v1773
  %2195 = vmatprep.subr.mxu0 %v1770
  %2196 = vmatpush2.msra.mxu0 %v1769
  %2197 = vmatprep.subr.mxu0 %v1766
  %2198 = vmatpush2.msra.mxu0 %v1765
  %2199 = vmatprep.mubr.f32.mxu0 %v1687
  %2200 = vmatmul.mubr.f32.gmra.mxu0 %v1681
  %v2201 = vpop.f32.mrf.mxu0
  %v2202 = vadd.f32 %v2048, %v2201
  %v2203 = vpop.f32.mrf.mxu0
  %v2204 = vadd.f32 %v2050, %v2203
  %2205 = vmatprep.mubr.f32.mxu0 %v1688
  %2206 = vmatmul.mubr.f32.gmra.mxu0 %v1682
  %v2207 = vpop.f32.mrf.mxu0
  %v2208 = vadd.f32 %v2054, %v2207
  %v2209 = vpop.f32.mrf.mxu0
  %v2210 = vadd.f32 %v2056, %v2209
  %2211 = vdwg.mxu0
  %2212 = vmatprep.subr.mxu0 %v1890
  %2213 = vmatpush1.msra.mxu0 %v1889
  %2214 = vmatprep.subr.mxu0 %v1886
  %2215 = vmatpush1.msra.mxu0 %v1885
  %2216 = vmatprep.subr.mxu0 %v1882
  %2217 = vmatpush1.msra.mxu0 %v1881
  %2218 = vmatprep.subr.mxu0 %v1878
  %2219 = vmatpush1.msra.mxu0 %v1877
  %2220 = vmatprep.subr.mxu0 %v1874
  %2221 = vmatpush1.msra.mxu0 %v1873
  %2222 = vmatprep.subr.mxu0 %v1870
  %2223 = vmatpush1.msra.mxu0 %v1869
  %2224 = vmatprep.subr.mxu0 %v1866
  %2225 = vmatpush1.msra.mxu0 %v1865
  %2226 = vmatprep.subr.mxu0 %v1862
  %2227 = vmatpush1.msra.mxu0 %v1861
  %2228 = vmatprep.subr.mxu0 %v1858
  %2229 = vmatpush1.msra.mxu0 %v1857
  %2230 = vmatprep.subr.mxu0 %v1854
  %2231 = vmatpush1.msra.mxu0 %v1853
  %2232 = vmatprep.subr.mxu0 %v1850
  %2233 = vmatpush1.msra.mxu0 %v1849
  %2234 = vmatprep.subr.mxu0 %v1846
  %2235 = vmatpush1.msra.mxu0 %v1845
  %2236 = vmatprep.subr.mxu0 %v1842
  %2237 = vmatpush1.msra.mxu0 %v1841
  %2238 = vmatprep.subr.mxu0 %v1838
  %2239 = vmatpush1.msra.mxu0 %v1837
  %2240 = vmatprep.subr.mxu0 %v1834
  %2241 = vmatpush1.msra.mxu0 %v1833
  %2242 = vmatprep.subr.mxu0 %v1830
  %2243 = vmatpush1.msra.mxu0 %v1829
  %2244 = vmatprep.subr.mxu0 %v1954
  %2245 = vmatpush2.msra.mxu0 %v1953
  %2246 = vmatprep.subr.mxu0 %v1950
  %2247 = vmatpush2.msra.mxu0 %v1949
  %2248 = vmatprep.subr.mxu0 %v1946
  %2249 = vmatpush2.msra.mxu0 %v1945
  %2250 = vmatprep.subr.mxu0 %v1942
  %2251 = vmatpush2.msra.mxu0 %v1941
  %2252 = vmatprep.subr.mxu0 %v1938
  %2253 = vmatpush2.msra.mxu0 %v1937
  %2254 = vmatprep.subr.mxu0 %v1934
  %2255 = vmatpush2.msra.mxu0 %v1933
  %2256 = vmatprep.subr.mxu0 %v1930
  %2257 = vmatpush2.msra.mxu0 %v1929
  %2258 = vmatprep.subr.mxu0 %v1926
  %2259 = vmatpush2.msra.mxu0 %v1925
  %2260 = vmatprep.subr.mxu0 %v1922
  %2261 = vmatpush2.msra.mxu0 %v1921
  %2262 = vmatprep.subr.mxu0 %v1918
  %2263 = vmatpush2.msra.mxu0 %v1917
  %2264 = vmatprep.subr.mxu0 %v1914
  %2265 = vmatpush2.msra.mxu0 %v1913
  %2266 = vmatprep.subr.mxu0 %v1910
  %2267 = vmatpush2.msra.mxu0 %v1909
  %2268 = vmatprep.subr.mxu0 %v1906
  %2269 = vmatpush2.msra.mxu0 %v1905
  %2270 = vmatprep.subr.mxu0 %v1902
  %2271 = vmatpush2.msra.mxu0 %v1901
  %2272 = vmatprep.subr.mxu0 %v1898
  %2273 = vmatpush2.msra.mxu0 %v1897
  %2274 = vmatprep.subr.mxu0 %v1894
  %2275 = vmatpush2.msra.mxu0 %v1893
  %2276 = vmatprep.mubr.f32.mxu0 %v1699
  %2277 = vmatmul.mubr.f32.gmra.mxu0 %v1693
  %v2278 = vpop.f32.mrf.mxu0
  %v2279 = vadd.f32 %v2202, %v2278
  %v2280 = vpop.f32.mrf.mxu0
  %v2281 = vadd.f32 %v2204, %v2280
  %2282 = vmatprep.mubr.f32.mxu0 %v1700
  %2283 = vmatmul.mubr.f32.gmra.mxu0 %v1694
  %v2284 = vpop.f32.mrf.mxu0
  %v2285 = vadd.f32 %v2208, %v2284
  %v2286 = vpop.f32.mrf.mxu0
  %v2287 = vadd.f32 %v2210, %v2286
  %2288 = vdwg.mxu0
  %2289 = vmatprep.subr.mxu0 %v1764
  %2290 = vmatpush1.msra.mxu0 %v1763
  %2291 = vmatprep.subr.mxu0 %v1760
  %2292 = vmatpush1.msra.mxu0 %v1759
  %2293 = vmatprep.subr.mxu0 %v1756
  %2294 = vmatpush1.msra.mxu0 %v1755
  %2295 = vmatprep.subr.mxu0 %v1752
  %2296 = vmatpush1.msra.mxu0 %v1751
  %2297 = vmatprep.subr.mxu0 %v1748
  %2298 = vmatpush1.msra.mxu0 %v1747
  %2299 = vmatprep.subr.mxu0 %v1744
  %2300 = vmatpush1.msra.mxu0 %v1743
  %2301 = vmatprep.subr.mxu0 %v1740
  %2302 = vmatpush1.msra.mxu0 %v1739
  %2303 = vmatprep.subr.mxu0 %v1736
  %2304 = vmatpush1.msra.mxu0 %v1735
  %2305 = vmatprep.subr.mxu0 %v1732
  %2306 = vmatpush1.msra.mxu0 %v1731
  %2307 = vmatprep.subr.mxu0 %v1728
  %2308 = vmatpush1.msra.mxu0 %v1727
  %2309 = vmatprep.subr.mxu0 %v1724
  %2310 = vmatpush1.msra.mxu0 %v1723
  %2311 = vmatprep.subr.mxu0 %v1720
  %2312 = vmatpush1.msra.mxu0 %v1719
  %2313 = vmatprep.subr.mxu0 %v1716
  %2314 = vmatpush1.msra.mxu0 %v1715
  %2315 = vmatprep.subr.mxu0 %v1712
  %2316 = vmatpush1.msra.mxu0 %v1711
  %2317 = vmatprep.subr.mxu0 %v1708
  %2318 = vmatpush1.msra.mxu0 %v1707
  %2319 = vmatprep.subr.mxu0 %v1704
  %2320 = vmatpush1.msra.mxu0 %v1703
  %2321 = vmatprep.subr.mxu0 %v1828
  %2322 = vmatpush2.msra.mxu0 %v1827
  %2323 = vmatprep.subr.mxu0 %v1824
  %2324 = vmatpush2.msra.mxu0 %v1823
  %2325 = vmatprep.subr.mxu0 %v1820
  %2326 = vmatpush2.msra.mxu0 %v1819
  %2327 = vmatprep.subr.mxu0 %v1816
  %2328 = vmatpush2.msra.mxu0 %v1815
  %2329 = vmatprep.subr.mxu0 %v1812
  %2330 = vmatpush2.msra.mxu0 %v1811
  %2331 = vmatprep.subr.mxu0 %v1808
  %2332 = vmatpush2.msra.mxu0 %v1807
  %2333 = vmatprep.subr.mxu0 %v1804
  %2334 = vmatpush2.msra.mxu0 %v1803
  %2335 = vmatprep.subr.mxu0 %v1800
  %2336 = vmatpush2.msra.mxu0 %v1799
  %2337 = vmatprep.subr.mxu0 %v1796
  %2338 = vmatpush2.msra.mxu0 %v1795
  %2339 = vmatprep.subr.mxu0 %v1792
  %2340 = vmatpush2.msra.mxu0 %v1791
  %2341 = vmatprep.subr.mxu0 %v1788
  %2342 = vmatpush2.msra.mxu0 %v1787
  %2343 = vmatprep.subr.mxu0 %v1784
  %2344 = vmatpush2.msra.mxu0 %v1783
  %2345 = vmatprep.subr.mxu0 %v1780
  %2346 = vmatpush2.msra.mxu0 %v1779
  %2347 = vmatprep.subr.mxu0 %v1776
  %2348 = vmatpush2.msra.mxu0 %v1775
  %2349 = vmatprep.subr.mxu0 %v1772
  %2350 = vmatpush2.msra.mxu0 %v1771
  %2351 = vmatprep.subr.mxu0 %v1768
  %2352 = vmatpush2.msra.mxu0 %v1767
  %2353 = vmatprep.mubr.f32.mxu0 %v1687
  %2354 = vmatmul.mubr.f32.gmra.mxu0 %v1681
  %v2355 = vpop.f32.mrf.mxu0
  %v2356 = vadd.f32 %v2125, %v2355
  %v2357 = vpop.f32.mrf.mxu0
  %v2358 = vadd.f32 %v2127, %v2357
  %2359 = vmatprep.mubr.f32.mxu0 %v1688
  %2360 = vmatmul.mubr.f32.gmra.mxu0 %v1682
  %v2361 = vpop.f32.mrf.mxu0
  %v2362 = vadd.f32 %v2131, %v2361
  %v2363 = vpop.f32.mrf.mxu0
  %v2364 = vadd.f32 %v2133, %v2363
  %2365 = vdwg.mxu0
  %2366 = vmatprep.subr.mxu0 %v1892
  %2367 = vmatpush1.msra.mxu0 %v1891
  %2368 = vmatprep.subr.mxu0 %v1888
  %2369 = vmatpush1.msra.mxu0 %v1887
  %2370 = vmatprep.subr.mxu0 %v1884
  %2371 = vmatpush1.msra.mxu0 %v1883
  %2372 = vmatprep.subr.mxu0 %v1880
  %2373 = vmatpush1.msra.mxu0 %v1879
  %2374 = vmatprep.subr.mxu0 %v1876
  %2375 = vmatpush1.msra.mxu0 %v1875
  %2376 = vmatprep.subr.mxu0 %v1872
  %2377 = vmatpush1.msra.mxu0 %v1871
  %2378 = vmatprep.subr.mxu0 %v1868
  %2379 = vmatpush1.msra.mxu0 %v1867
  %2380 = vmatprep.subr.mxu0 %v1864
  %2381 = vmatpush1.msra.mxu0 %v1863
  %2382 = vmatprep.subr.mxu0 %v1860
  %2383 = vmatpush1.msra.mxu0 %v1859
  %2384 = vmatprep.subr.mxu0 %v1856
  %2385 = vmatpush1.msra.mxu0 %v1855
  %2386 = vmatprep.subr.mxu0 %v1852
  %2387 = vmatpush1.msra.mxu0 %v1851
  %2388 = vmatprep.subr.mxu0 %v1848
  %2389 = vmatpush1.msra.mxu0 %v1847
  %2390 = vmatprep.subr.mxu0 %v1844
  %2391 = vmatpush1.msra.mxu0 %v1843
  %2392 = vmatprep.subr.mxu0 %v1840
  %2393 = vmatpush1.msra.mxu0 %v1839
  %2394 = vmatprep.subr.mxu0 %v1836
  %2395 = vmatpush1.msra.mxu0 %v1835
  %2396 = vmatprep.subr.mxu0 %v1832
  %2397 = vmatpush1.msra.mxu0 %v1831
  %2398 = vmatprep.subr.mxu0 %v1956
  %2399 = vmatpush2.msra.mxu0 %v1955
  %2400 = vmatprep.subr.mxu0 %v1952
  %2401 = vmatpush2.msra.mxu0 %v1951
  %2402 = vmatprep.subr.mxu0 %v1948
  %2403 = vmatpush2.msra.mxu0 %v1947
  %2404 = vmatprep.subr.mxu0 %v1944
  %2405 = vmatpush2.msra.mxu0 %v1943
  %2406 = vmatprep.subr.mxu0 %v1940
  %2407 = vmatpush2.msra.mxu0 %v1939
  %2408 = vmatprep.subr.mxu0 %v1936
  %2409 = vmatpush2.msra.mxu0 %v1935
  %2410 = vmatprep.subr.mxu0 %v1932
  %2411 = vmatpush2.msra.mxu0 %v1931
  %2412 = vmatprep.subr.mxu0 %v1928
  %2413 = vmatpush2.msra.mxu0 %v1927
  %2414 = vmatprep.subr.mxu0 %v1924
  %2415 = vmatpush2.msra.mxu0 %v1923
  %2416 = vmatprep.subr.mxu0 %v1920
  %2417 = vmatpush2.msra.mxu0 %v1919
  %2418 = vmatprep.subr.mxu0 %v1916
  %2419 = vmatpush2.msra.mxu0 %v1915
  %2420 = vmatprep.subr.mxu0 %v1912
  %2421 = vmatpush2.msra.mxu0 %v1911
  %2422 = vmatprep.subr.mxu0 %v1908
  %2423 = vmatpush2.msra.mxu0 %v1907
  %2424 = vmatprep.subr.mxu0 %v1904
  %2425 = vmatpush2.msra.mxu0 %v1903
  %2426 = vmatprep.subr.mxu0 %v1900
  %2427 = vmatpush2.msra.mxu0 %v1899
  %2428 = vmatprep.subr.mxu0 %v1896
  %2429 = vmatpush2.msra.mxu0 %v1895
  %2430 = vmatprep.mubr.f32.mxu0 %v1699
  %2431 = vmatmul.mubr.f32.gmra.mxu0 %v1693
  %v2432 = vpop.f32.mrf.mxu0
  %v2433 = vadd.f32 %v2356, %v2432
  %v2434 = vpop.f32.mrf.mxu0
  %v2435 = vadd.f32 %v2358, %v2434
  %2436 = vmatprep.mubr.f32.mxu0 %v1700
  %2437 = vmatmul.mubr.f32.gmra.mxu0 %v1694
  %v2438 = vpop.f32.mrf.mxu0
  %v2439 = vadd.f32 %v2362, %v2438
  %v2440 = vpop.f32.mrf.mxu0
  %v2441 = vadd.f32 %v2364, %v2440
  %2442 = vdwg.mxu0
  %2445 = vrot.lane.b32.xlu0 %v2435, 32
  %v2446 = vpop.permute.xlu0 %2445
  %2447 = vrot.lane.b32.xlu0 %v2441, 32
  %v2448 = vpop.permute.xlu0 %2447
  %2451 = vst.msk [vmem:[#allocation2] sm:$0xff] %vm168, %v2446
  %2452 = vst.msk [vmem:[#allocation2 + $0x8] sm:$0xff] %vm168, %v2448
  %2455 = vrot.lane.b32.xlu0 %v2279, 96
  %v2456 = vpop.permute.xlu0 %2455
  %2457 = vrot.lane.b32.xlu0 %v2285, 96
  %v2458 = vpop.permute.xlu0 %2457
  %2461 = vrot.lane.b32.xlu0 %v2279, 64
  %v2462 = vpop.permute.xlu0 %2461
  %2463 = vrot.lane.b32.xlu0 %v2285, 64
  %v2464 = vpop.permute.xlu0 %2463
  %2467 = vrot.lane.b32.xlu0 %v2279, 32
  %v2468 = vpop.permute.xlu0 %2467
  %2469 = vrot.lane.b32.xlu0 %v2285, 32
  %v2470 = vpop.permute.xlu0 %2469
  %2475 = vrot.lane.b32.xlu0 %v2281, 96
  %v2476 = vpop.permute.xlu0 %2475
  %2477 = vrot.lane.b32.xlu0 %v2287, 96
  %v2478 = vpop.permute.xlu0 %2477
  %2481 = vrot.lane.b32.xlu0 %v2281, 64
  %v2482 = vpop.permute.xlu0 %2481
  %2483 = vrot.lane.b32.xlu0 %v2287, 64
  %v2484 = vpop.permute.xlu0 %2483
  %2487 = vrot.lane.b32.xlu0 %v2281, 32
  %v2488 = vpop.permute.xlu0 %2487
  %2489 = vrot.lane.b32.xlu0 %v2287, 32
  %v2490 = vpop.permute.xlu0 %2489
  %2495 = vrot.lane.b32.xlu0 %v2433, 96
  %v2496 = vpop.permute.xlu0 %2495
  %2497 = vrot.lane.b32.xlu0 %v2439, 96
  %v2498 = vpop.permute.xlu0 %2497
  %2501 = vrot.lane.b32.xlu0 %v2433, 64
  %v2502 = vpop.permute.xlu0 %2501
  %2503 = vrot.lane.b32.xlu0 %v2439, 64
  %v2504 = vpop.permute.xlu0 %2503
  %2507 = vrot.lane.b32.xlu0 %v2433, 32
  %v2508 = vpop.permute.xlu0 %2507
  %2509 = vrot.lane.b32.xlu0 %v2439, 32
  %v2510 = vpop.permute.xlu0 %2509
  %2513 = vrot.lane.b32.xlu0 %v2435, 96
  %v2514 = vpop.permute.xlu0 %2513
  %2515 = vrot.lane.b32.xlu0 %v2441, 96
  %v2516 = vpop.permute.xlu0 %2515
  %2519 = vrot.lane.b32.xlu0 %v2435, 64
  %v2520 = vpop.permute.xlu0 %2519
  %2521 = vrot.lane.b32.xlu0 %v2441, 64
  %v2522 = vpop.permute.xlu0 %2521
  %v2525 = vld [vmem:[%s9] sm:$0xff]
  %v2526 = vld [vmem:[%s9 + $0x8] sm:$0xff]
  %v2527 = vld [vmem:[%s9 + $0x10] sm:$0xff]
  %v2528 = vld [vmem:[%s9 + $0x18] sm:$0xff]
  %v2529 = vpack.c.bf16 %v2285, %v2279
  %v2530 = vpack.c.bf16 %v2458, %v2456
  %v2531 = vpack.c.bf16 %v2464, %v2462
  %v2532 = vpack.c.bf16 %v2470, %v2468
  %v2533 = vpack.c.bf16 %v2287, %v2281
  %v2534 = vpack.c.bf16 %v2478, %v2476
  %v2535 = vpack.c.bf16 %v2484, %v2482
  %v2536 = vpack.c.bf16 %v2490, %v2488
  %v2537 = vpack.c.bf16 %v2439, %v2433
  %v2538 = vpack.c.bf16 %v2498, %v2496
  %v2539 = vpack.c.bf16 %v2504, %v2502
  %v2540 = vpack.c.bf16 %v2510, %v2508
  %v2541 = vpack.c.bf16 %v2441, %v2435
  %v2542 = vpack.c.bf16 %v2516, %v2514
  %v2543 = vpack.c.bf16 %v2522, %v2520
  %v2544 = vpack.c.bf16 %v2448, %v2446
  %v2545 = vld [vmem:[%s10] sm:$0x3]
  %v2547 = vlaneseq
  %v2548 = vshrl.u32 %v2547, 7
  %v2549 = vsub.s32 0, %v2548
  %v2550 = vrot.slane %v2545, %v2549
  %v2551 = vlaneseq
  %v2552 = vshrl.u32 %v2551, 7
  %v2553 = vsub.s32 1, %v2552
  %v2554 = vrot.slane %v2545, %v2553
  %v2561 = vunpack.c.l.b16 %v2525
  %v2562 = vunpack.c.h.b16 %v2525
  %v2563 = vunpack.c.l.b16 %v2526
  %v2564 = vunpack.c.h.b16 %v2526
  %v2565 = vunpack.c.l.b16 %v2527
  %v2566 = vunpack.c.h.b16 %v2527
  %v2567 = vunpack.c.l.b16 %v2528
  %v2568 = vunpack.c.h.b16 %v2528
  %v2569 = vpack.c.b16 %v2563, %v2561
  %v2570 = vpack.c.b16 %v2564, %v2562
  %v2571 = vpack.c.b16 %v2567, %v2565
  %v2572 = vpack.c.b16 %v2568, %v2566
  %v2578 = vsel %vm168, %v2529, 0
  %v2581 = vsel %vm168, %v2530, 0
  %v2584 = vsel %vm168, %v2531, 0
  %v2587 = vsel %vm168, %v2532, 0
  %v2590 = vsel %vm168, %v2533, 0
  %v2593 = vsel %vm168, %v2534, 0
  %v2596 = vsel %vm168, %v2535, 0
  %v2599 = vsel %vm168, %v2536, 0
  %v2602 = vsel %vm168, %v2537, 0
  %v2605 = vsel %vm168, %v2538, 0
  %v2608 = vsel %vm168, %v2539, 0
  %v2611 = vsel %vm168, %v2540, 0
  %v2614 = vsel %vm168, %v2541, 0
  %v2617 = vsel %vm168, %v2542, 0
  %v2620 = vsel %vm168, %v2543, 0
  %v2623 = vsel %vm168, %v2544, 0
  %2625 = vmatprep.subr.bf16.mxu0 0
  %2626 = vmatpush1.bf16.msra.mxu0 0
  %2627 = vmatprep.subr.bf16.mxu0 0
  %2628 = vmatpush1.bf16.msra.mxu0 0
  %2629 = vmatprep.subr.bf16.mxu0 0
  %2630 = vmatpush1.bf16.msra.mxu0 0
  %2631 = vmatprep.subr.bf16.mxu0 0
  %2632 = vmatpush1.bf16.msra.mxu0 0
  %2633 = vmatprep.subr.bf16.mxu0 0
  %2634 = vmatpush1.bf16.msra.mxu0 0
  %2635 = vmatprep.subr.bf16.mxu0 0
  %2636 = vmatpush1.bf16.msra.mxu0 0
  %2637 = vmatprep.subr.bf16.mxu0 %v2572
  %2638 = vmatpush1.bf16.msra.mxu0 %v2571
  %2639 = vmatprep.subr.bf16.mxu0 %v2570
  %2640 = vmatpush1.bf16.msra.mxu0 %v2569
  %2641 = vmatprep.subr.bf16.mxu0 0
  %2642 = vmatpush2.bf16.msra.mxu0 0
  %2643 = vmatprep.subr.bf16.mxu0 0
  %2644 = vmatpush2.bf16.msra.mxu0 0
  %2645 = vmatprep.subr.bf16.mxu0 0
  %2646 = vmatpush2.bf16.msra.mxu0 0
  %2647 = vmatprep.subr.bf16.mxu0 0
  %2648 = vmatpush2.bf16.msra.mxu0 0
  %2649 = vmatprep.subr.bf16.mxu0 0
  %2650 = vmatpush2.bf16.msra.mxu0 0
  %2651 = vmatprep.subr.bf16.mxu0 0
  %2652 = vmatpush2.bf16.msra.mxu0 0
  %2653 = vmatprep.subr.bf16.mxu0 0
  %2654 = vmatpush2.bf16.msra.mxu0 0
  %2655 = vmatprep.subr.bf16.mxu0 0
  %2656 = vmatpush2.bf16.msra.mxu0 0
  %2657 = vmatprep.mubr.bf16.mxu0 0
  %2658 = vmatmul.mubr.bf16.gmra.mxu0 %v2578
  %v2659 = vpop.f32.mrf.mxu0
  %v2660 = vadd.f32 %v2550, %v2659
  %v2661 = vpop.f32.mrf.mxu0
  %v2662 = vadd.f32 %v2554, %v2661
  %v2663 = vpop.f32.mrf.mxu0
  %v2664 = vadd.f32 %v2550, %v2663
  %v2665 = vpop.f32.mrf.mxu0
  %v2666 = vadd.f32 %v2554, %v2665
  %2667 = vmatprep.mubr.bf16.mxu0 0
  %2668 = vmatmul.mubr.bf16.gmra.mxu0 %v2581
  %v2669 = vpop.f32.mrf.mxu0
  %v2670 = vadd.f32 %v2550, %v2669
  %v2671 = vpop.f32.mrf.mxu0
  %v2672 = vadd.f32 %v2554, %v2671
  %v2673 = vpop.f32.mrf.mxu0
  %v2674 = vadd.f32 %v2550, %v2673
  %v2675 = vpop.f32.mrf.mxu0
  %v2676 = vadd.f32 %v2554, %v2675
  %2677 = vmatprep.mubr.bf16.mxu0 0
  %2678 = vmatmul.mubr.bf16.gmra.mxu0 %v2584
  %v2679 = vpop.f32.mrf.mxu0
  %v2680 = vadd.f32 %v2550, %v2679
  %v2681 = vpop.f32.mrf.mxu0
  %v2682 = vadd.f32 %v2554, %v2681
  %v2683 = vpop.f32.mrf.mxu0
  %v2684 = vadd.f32 %v2550, %v2683
  %v2685 = vpop.f32.mrf.mxu0
  %v2686 = vadd.f32 %v2554, %v2685
  %2687 = vmatprep.mubr.bf16.mxu0 0
  %2688 = vmatmul.mubr.bf16.gmra.mxu0 %v2587
  %v2689 = vpop.f32.mrf.mxu0
  %v2690 = vadd.f32 %v2550, %v2689
  %v2691 = vpop.f32.mrf.mxu0
  %v2692 = vadd.f32 %v2554, %v2691
  %v2693 = vpop.f32.mrf.mxu0
  %v2694 = vadd.f32 %v2550, %v2693
  %v2695 = vpop.f32.mrf.mxu0
  %v2696 = vadd.f32 %v2554, %v2695
  %2697 = vmatprep.mubr.bf16.mxu0 0
  %2698 = vmatmul.mubr.bf16.gmra.mxu0 %v2590
  %v2699 = vpop.f32.mrf.mxu0
  %v2700 = vadd.f32 %v2550, %v2699
  %v2701 = vpop.f32.mrf.mxu0
  %v2702 = vadd.f32 %v2554, %v2701
  %v2703 = vpop.f32.mrf.mxu0
  %v2704 = vadd.f32 %v2550, %v2703
  %v2705 = vpop.f32.mrf.mxu0
  %v2706 = vadd.f32 %v2554, %v2705
  %2707 = vmatprep.mubr.bf16.mxu0 0
  %2708 = vmatmul.mubr.bf16.gmra.mxu0 %v2593
  %v2709 = vpop.f32.mrf.mxu0
  %v2710 = vadd.f32 %v2550, %v2709
  %v2711 = vpop.f32.mrf.mxu0
  %v2712 = vadd.f32 %v2554, %v2711
  %v2713 = vpop.f32.mrf.mxu0
  %v2714 = vadd.f32 %v2550, %v2713
  %v2715 = vpop.f32.mrf.mxu0
  %v2716 = vadd.f32 %v2554, %v2715
  %2717 = vmatprep.mubr.bf16.mxu0 0
  %2718 = vmatmul.mubr.bf16.gmra.mxu0 %v2596
  %v2719 = vpop.f32.mrf.mxu0
  %v2720 = vadd.f32 %v2550, %v2719
  %v2721 = vpop.f32.mrf.mxu0
  %v2722 = vadd.f32 %v2554, %v2721
  %v2723 = vpop.f32.mrf.mxu0
  %v2724 = vadd.f32 %v2550, %v2723
  %v2725 = vpop.f32.mrf.mxu0
  %v2726 = vadd.f32 %v2554, %v2725
  %2727 = vmatprep.mubr.bf16.mxu0 0
  %2728 = vmatmul.mubr.bf16.gmra.mxu0 %v2599
  %v2729 = vpop.f32.mrf.mxu0
  %v2730 = vadd.f32 %v2550, %v2729
  %v2731 = vpop.f32.mrf.mxu0
  %v2732 = vadd.f32 %v2554, %v2731
  %v2733 = vpop.f32.mrf.mxu0
  %v2734 = vadd.f32 %v2550, %v2733
  %v2735 = vpop.f32.mrf.mxu0
  %v2736 = vadd.f32 %v2554, %v2735
  %2737 = vmatprep.mubr.bf16.mxu0 0
  %2738 = vmatmul.mubr.bf16.gmra.mxu0 %v2602
  %v2739 = vpop.f32.mrf.mxu0
  %v2740 = vadd.f32 %v2550, %v2739
  %v2741 = vpop.f32.mrf.mxu0
  %v2742 = vadd.f32 %v2554, %v2741
  %v2743 = vpop.f32.mrf.mxu0
  %v2744 = vadd.f32 %v2550, %v2743
  %v2745 = vpop.f32.mrf.mxu0
  %v2746 = vadd.f32 %v2554, %v2745
  %2747 = vmatprep.mubr.bf16.mxu0 0
  %2748 = vmatmul.mubr.bf16.gmra.mxu0 %v2605
  %v2749 = vpop.f32.mrf.mxu0
  %v2750 = vadd.f32 %v2550, %v2749
  %v2751 = vpop.f32.mrf.mxu0
  %v2752 = vadd.f32 %v2554, %v2751
  %v2753 = vpop.f32.mrf.mxu0
  %v2754 = vadd.f32 %v2550, %v2753
  %v2755 = vpop.f32.mrf.mxu0
  %v2756 = vadd.f32 %v2554, %v2755
  %2757 = vmatprep.mubr.bf16.mxu0 0
  %2758 = vmatmul.mubr.bf16.gmra.mxu0 %v2608
  %v2759 = vpop.f32.mrf.mxu0
  %v2760 = vadd.f32 %v2550, %v2759
  %v2761 = vpop.f32.mrf.mxu0
  %v2762 = vadd.f32 %v2554, %v2761
  %v2763 = vpop.f32.mrf.mxu0
  %v2764 = vadd.f32 %v2550, %v2763
  %v2765 = vpop.f32.mrf.mxu0
  %v2766 = vadd.f32 %v2554, %v2765
  %2767 = vmatprep.mubr.bf16.mxu0 0
  %2768 = vmatmul.mubr.bf16.gmra.mxu0 %v2611
  %v2769 = vpop.f32.mrf.mxu0
  %v2770 = vadd.f32 %v2550, %v2769
  %v2771 = vpop.f32.mrf.mxu0
  %v2772 = vadd.f32 %v2554, %v2771
  %v2773 = vpop.f32.mrf.mxu0
  %v2774 = vadd.f32 %v2550, %v2773
  %v2775 = vpop.f32.mrf.mxu0
  %v2776 = vadd.f32 %v2554, %v2775
  %2777 = vmatprep.mubr.bf16.mxu0 0
  %2778 = vmatmul.mubr.bf16.gmra.mxu0 %v2614
  %v2779 = vpop.f32.mrf.mxu0
  %v2780 = vadd.f32 %v2550, %v2779
  %v2781 = vpop.f32.mrf.mxu0
  %v2782 = vadd.f32 %v2554, %v2781
  %v2783 = vpop.f32.mrf.mxu0
  %v2784 = vadd.f32 %v2550, %v2783
  %v2785 = vpop.f32.mrf.mxu0
  %v2786 = vadd.f32 %v2554, %v2785
  %2787 = vmatprep.mubr.bf16.mxu0 0
  %2788 = vmatmul.mubr.bf16.gmra.mxu0 %v2617
  %v2789 = vpop.f32.mrf.mxu0
  %v2790 = vadd.f32 %v2550, %v2789
  %v2791 = vpop.f32.mrf.mxu0
  %v2792 = vadd.f32 %v2554, %v2791
  %v2793 = vpop.f32.mrf.mxu0
  %v2794 = vadd.f32 %v2550, %v2793
  %v2795 = vpop.f32.mrf.mxu0
  %v2796 = vadd.f32 %v2554, %v2795
  %2797 = vmatprep.mubr.bf16.mxu0 0
  %2798 = vmatmul.mubr.bf16.gmra.mxu0 %v2620
  %v2799 = vpop.f32.mrf.mxu0
  %v2800 = vadd.f32 %v2550, %v2799
  %v2801 = vpop.f32.mrf.mxu0
  %v2802 = vadd.f32 %v2554, %v2801
  %v2803 = vpop.f32.mrf.mxu0
  %v2804 = vadd.f32 %v2550, %v2803
  %v2805 = vpop.f32.mrf.mxu0
  %v2806 = vadd.f32 %v2554, %v2805
  %2807 = vmatprep.mubr.bf16.mxu0 0
  %2808 = vmatmul.mubr.bf16.gmra.mxu0 %v2623
  %v2809 = vpop.f32.mrf.mxu0
  %v2810 = vadd.f32 %v2550, %v2809
  %v2811 = vpop.f32.mrf.mxu0
  %v2812 = vadd.f32 %v2554, %v2811
  %v2813 = vpop.f32.mrf.mxu0
  %v2814 = vadd.f32 %v2550, %v2813
  %v2815 = vpop.f32.mrf.mxu0
  %v2816 = vadd.f32 %v2554, %v2815
  %2817 = vdwg.mxu0
  %v2818 = vmax.f32 %v2660, 0.0
  %v2819 = vmax.f32 %v2662, 0.0
  %v2820 = vmax.f32 %v2664, 0.0
  %v2821 = vmax.f32 %v2666, 0.0
  %v2822 = vmax.f32 %v2670, 0.0
  %v2823 = vmax.f32 %v2672, 0.0
  %v2824 = vmax.f32 %v2674, 0.0
  %v2825 = vmax.f32 %v2676, 0.0
  %v2826 = vmax.f32 %v2680, 0.0
  %v2827 = vmax.f32 %v2682, 0.0
  %v2828 = vmax.f32 %v2684, 0.0
  %v2829 = vmax.f32 %v2686, 0.0
  %v2830 = vmax.f32 %v2690, 0.0
  %v2831 = vmax.f32 %v2692, 0.0
  %v2832 = vmax.f32 %v2694, 0.0
  %v2833 = vmax.f32 %v2696, 0.0
  %v2834 = vmax.f32 %v2700, 0.0
  %v2835 = vmax.f32 %v2702, 0.0
  %v2836 = vmax.f32 %v2704, 0.0
  %v2837 = vmax.f32 %v2706, 0.0
  %v2838 = vmax.f32 %v2710, 0.0
  %v2839 = vmax.f32 %v2712, 0.0
  %v2840 = vmax.f32 %v2714, 0.0
  %v2841 = vmax.f32 %v2716, 0.0
  %v2842 = vmax.f32 %v2720, 0.0
  %v2843 = vmax.f32 %v2722, 0.0
  %v2844 = vmax.f32 %v2724, 0.0
  %v2845 = vmax.f32 %v2726, 0.0
  %v2846 = vmax.f32 %v2730, 0.0
  %v2847 = vmax.f32 %v2732, 0.0
  %v2848 = vmax.f32 %v2734, 0.0
  %v2849 = vmax.f32 %v2736, 0.0
  %v2850 = vmax.f32 %v2740, 0.0
  %v2851 = vmax.f32 %v2742, 0.0
  %v2852 = vmax.f32 %v2744, 0.0
  %v2853 = vmax.f32 %v2746, 0.0
  %v2854 = vmax.f32 %v2750, 0.0
  %v2855 = vmax.f32 %v2752, 0.0
  %v2856 = vmax.f32 %v2754, 0.0
  %v2857 = vmax.f32 %v2756, 0.0
  %v2858 = vmax.f32 %v2760, 0.0
  %v2859 = vmax.f32 %v2762, 0.0
  %v2860 = vmax.f32 %v2764, 0.0
  %v2861 = vmax.f32 %v2766, 0.0
  %v2862 = vmax.f32 %v2770, 0.0
  %v2863 = vmax.f32 %v2772, 0.0
  %v2864 = vmax.f32 %v2774, 0.0
  %v2865 = vmax.f32 %v2776, 0.0
  %v2866 = vmax.f32 %v2780, 0.0
  %v2867 = vmax.f32 %v2782, 0.0
  %v2868 = vmax.f32 %v2784, 0.0
  %v2869 = vmax.f32 %v2786, 0.0
  %v2870 = vmax.f32 %v2790, 0.0
  %v2871 = vmax.f32 %v2792, 0.0
  %v2872 = vmax.f32 %v2794, 0.0
  %v2873 = vmax.f32 %v2796, 0.0
  %v2874 = vmax.f32 %v2800, 0.0
  %v2875 = vmax.f32 %v2802, 0.0
  %v2876 = vmax.f32 %v2804, 0.0
  %v2877 = vmax.f32 %v2806, 0.0
  %v2878 = vmax.f32 %v2810, 0.0
  %v2879 = vmax.f32 %v2812, 0.0
  %v2880 = vmax.f32 %v2814, 0.0
  %v2881 = vmax.f32 %v2816, 0.0
  %v2882 = vld [vmem:[%s11] sm:$0xf]
  %v2883 = vld [vmem:[%s11 + $0x4] sm:$0xf]
  %v2884 = vld [vmem:[%s11 + $0x8] sm:$0xf]
  %v2885 = vld [vmem:[%s11 + $0xc] sm:$0xf]
  %v2886 = vld [vmem:[%s11 + $0x10] sm:$0xf]
  %v2887 = vld [vmem:[%s11 + $0x14] sm:$0xf]
  %v2888 = vld [vmem:[%s11 + $0x18] sm:$0xf]
  %v2889 = vld [vmem:[%s11 + $0x1c] sm:$0xf]
  %v2890 = vld [vmem:[%s11 + $0x20] sm:$0xf]
  %v2891 = vld [vmem:[%s11 + $0x24] sm:$0xf]
  %v2892 = vld [vmem:[%s11 + $0x28] sm:$0xf]
  %v2893 = vld [vmem:[%s11 + $0x2c] sm:$0xf]
  %v2894 = vld [vmem:[%s11 + $0x30] sm:$0xf]
  %v2895 = vld [vmem:[%s11 + $0x34] sm:$0xf]
  %v2896 = vld [vmem:[%s11 + $0x38] sm:$0xf]
  %v2897 = vld [vmem:[%s11 + $0x3c] sm:$0xf]
  %v2898 = vld [vmem:[%s11 + $0x40] sm:$0xf]
  %v2899 = vld [vmem:[%s11 + $0x44] sm:$0xf]
  %v2900 = vld [vmem:[%s11 + $0x48] sm:$0xf]
  %v2901 = vld [vmem:[%s11 + $0x4c] sm:$0xf]
  %v2902 = vld [vmem:[%s11 + $0x50] sm:$0xf]
  %v2903 = vld [vmem:[%s11 + $0x54] sm:$0xf]
  %v2904 = vld [vmem:[%s11 + $0x58] sm:$0xf]
  %v2905 = vld [vmem:[%s11 + $0x5c] sm:$0xf]
  %v2906 = vld [vmem:[%s11 + $0x60] sm:$0xf]
  %v2907 = vld [vmem:[%s11 + $0x64] sm:$0xf]
  %v2908 = vld [vmem:[%s11 + $0x68] sm:$0xf]
  %v2909 = vld [vmem:[%s11 + $0x6c] sm:$0xf]
  %v2910 = vld [vmem:[%s11 + $0x70] sm:$0xf]
  %v2911 = vld [vmem:[%s11 + $0x74] sm:$0xf]
  %v2912 = vld [vmem:[%s11 + $0x78] sm:$0xf]
  %v2913 = vld [vmem:[%s11 + $0x7c] sm:$0xf]
  %v2914 = vpack.c.bf16 %v2820, %v2818
  %v2915 = vpack.c.bf16 %v2821, %v2819
  %v2916 = vpack.c.bf16 %v2824, %v2822
  %v2917 = vpack.c.bf16 %v2825, %v2823
  %v2918 = vpack.c.bf16 %v2828, %v2826
  %v2919 = vpack.c.bf16 %v2829, %v2827
  %v2920 = vpack.c.bf16 %v2832, %v2830
  %v2921 = vpack.c.bf16 %v2833, %v2831
  %v2922 = vpack.c.bf16 %v2836, %v2834
  %v2923 = vpack.c.bf16 %v2837, %v2835
  %v2924 = vpack.c.bf16 %v2840, %v2838
  %v2925 = vpack.c.bf16 %v2841, %v2839
  %v2926 = vpack.c.bf16 %v2844, %v2842
  %v2927 = vpack.c.bf16 %v2845, %v2843
  %v2928 = vpack.c.bf16 %v2848, %v2846
  %v2929 = vpack.c.bf16 %v2849, %v2847
  %v2930 = vpack.c.bf16 %v2852, %v2850
  %v2931 = vpack.c.bf16 %v2853, %v2851
  %v2932 = vpack.c.bf16 %v2856, %v2854
  %v2933 = vpack.c.bf16 %v2857, %v2855
  %v2934 = vpack.c.bf16 %v2860, %v2858
  %v2935 = vpack.c.bf16 %v2861, %v2859
  %v2936 = vpack.c.bf16 %v2864, %v2862
  %v2937 = vpack.c.bf16 %v2865, %v2863
  %v2938 = vpack.c.bf16 %v2868, %v2866
  %v2939 = vpack.c.bf16 %v2869, %v2867
  %v2940 = vpack.c.bf16 %v2872, %v2870
  %v2941 = vpack.c.bf16 %v2873, %v2871
  %v2942 = vpack.c.bf16 %v2876, %v2874
  %v2943 = vpack.c.bf16 %v2877, %v2875
  %v2944 = vpack.c.bf16 %v2880, %v2878
  %v2945 = vpack.c.bf16 %v2881, %v2879
  %v2946 = vld [vmem:[%s12] sm:$0x1]
  %v2948 = vlaneseq
  %v2949 = vshrl.u32 %v2948, 7
  %v2950 = vsub.s32 0, %v2949
  %v2951 = vrot.slane %v2946, %v2950
  %v2985 = vunpack.c.l.b16 %v2882
  %v2986 = vunpack.c.l.b16 %v2883
  %v2987 = vunpack.c.l.b16 %v2884
  %v2988 = vunpack.c.l.b16 %v2885
  %v2989 = vunpack.c.l.b16 %v2886
  %v2990 = vunpack.c.l.b16 %v2887
  %v2991 = vunpack.c.l.b16 %v2888
  %v2992 = vunpack.c.l.b16 %v2889
  %v2993 = vunpack.c.l.b16 %v2890
  %v2994 = vunpack.c.l.b16 %v2891
  %v2995 = vunpack.c.l.b16 %v2892
  %v2996 = vunpack.c.l.b16 %v2893
  %v2997 = vunpack.c.l.b16 %v2894
  %v2998 = vunpack.c.l.b16 %v2895
  %v2999 = vunpack.c.l.b16 %v2896
  %v3000 = vunpack.c.l.b16 %v2897
  %v3001 = vunpack.c.l.b16 %v2898
  %v3002 = vunpack.c.l.b16 %v2899
  %v3003 = vunpack.c.l.b16 %v2900
  %v3004 = vunpack.c.l.b16 %v2901
  %v3005 = vunpack.c.l.b16 %v2902
  %v3006 = vunpack.c.l.b16 %v2903
  %v3007 = vunpack.c.l.b16 %v2904
  %v3008 = vunpack.c.l.b16 %v2905
  %v3009 = vunpack.c.l.b16 %v2906
  %v3010 = vunpack.c.l.b16 %v2907
  %v3011 = vunpack.c.l.b16 %v2908
  %v3012 = vunpack.c.l.b16 %v2909
  %v3013 = vunpack.c.l.b16 %v2910
  %v3014 = vunpack.c.l.b16 %v2911
  %v3015 = vunpack.c.l.b16 %v2912
  %v3016 = vunpack.c.l.b16 %v2913
  %v3017 = vpack.c.b16 %v2986, %v2985
  %v3018 = vpack.c.b16 %v2988, %v2987
  %v3019 = vpack.c.b16 %v2990, %v2989
  %v3020 = vpack.c.b16 %v2992, %v2991
  %v3021 = vpack.c.b16 %v2994, %v2993
  %v3022 = vpack.c.b16 %v2996, %v2995
  %v3023 = vpack.c.b16 %v2998, %v2997
  %v3024 = vpack.c.b16 %v3000, %v2999
  %v3025 = vpack.c.b16 %v3002, %v3001
  %v3026 = vpack.c.b16 %v3004, %v3003
  %v3027 = vpack.c.b16 %v3006, %v3005
  %v3028 = vpack.c.b16 %v3008, %v3007
  %v3029 = vpack.c.b16 %v3010, %v3009
  %v3030 = vpack.c.b16 %v3012, %v3011
  %v3031 = vpack.c.b16 %v3014, %v3013
  %v3032 = vpack.c.b16 %v3016, %v3015
  %3049 = vmatprep.subr.bf16.mxu0 0
  %3050 = vmatpush1.bf16.msra.mxu0 %v3024
  %3051 = vmatprep.subr.bf16.mxu0 0
  %3052 = vmatpush1.bf16.msra.mxu0 %v3023
  %3053 = vmatprep.subr.bf16.mxu0 0
  %3054 = vmatpush1.bf16.msra.mxu0 %v3022
  %3055 = vmatprep.subr.bf16.mxu0 0
  %3056 = vmatpush1.bf16.msra.mxu0 %v3021
  %3057 = vmatprep.subr.bf16.mxu0 0
  %3058 = vmatpush1.bf16.msra.mxu0 %v3020
  %3059 = vmatprep.subr.bf16.mxu0 0
  %3060 = vmatpush1.bf16.msra.mxu0 %v3019
  %3061 = vmatprep.subr.bf16.mxu0 0
  %3062 = vmatpush1.bf16.msra.mxu0 %v3018
  %3063 = vmatprep.subr.bf16.mxu0 0
  %3064 = vmatpush1.bf16.msra.mxu0 %v3017
  %3065 = vmatprep.subr.bf16.mxu0 0
  %3066 = vmatpush2.bf16.msra.mxu0 %v3032
  %3067 = vmatprep.subr.bf16.mxu0 0
  %3068 = vmatpush2.bf16.msra.mxu0 %v3031
  %3069 = vmatprep.subr.bf16.mxu0 0
  %3070 = vmatpush2.bf16.msra.mxu0 %v3030
  %3071 = vmatprep.subr.bf16.mxu0 0
  %3072 = vmatpush2.bf16.msra.mxu0 %v3029
  %3073 = vmatprep.subr.bf16.mxu0 0
  %3074 = vmatpush2.bf16.msra.mxu0 %v3028
  %3075 = vmatprep.subr.bf16.mxu0 0
  %3076 = vmatpush2.bf16.msra.mxu0 %v3027
  %3077 = vmatprep.subr.bf16.mxu0 0
  %3078 = vmatpush2.bf16.msra.mxu0 %v3026
  %3079 = vmatprep.subr.bf16.mxu0 0
  %3080 = vmatpush2.bf16.msra.mxu0 %v3025
  %3081 = vmatprep.mubr.bf16.mxu0 %v2915
  %3082 = vmatmul.mubr.bf16.gmra.mxu0 %v2914
  %v3083 = vpop.f32.mrf.mxu0
  %v3084 = vadd.f32 %v2951, %v3083
  %v3085 = vpop.f32.mrf.mxu0
  %v3086 = vpop.f32.mrf.mxu0
  %v3087 = vadd.f32 %v2951, %v3086
  %v3088 = vpop.f32.mrf.mxu0
  %3089 = vmatprep.mubr.bf16.mxu0 %v2917
  %3090 = vmatmul.mubr.bf16.gmra.mxu0 %v2916
  %v3091 = vpop.f32.mrf.mxu0
  %v3092 = vadd.f32 %v2951, %v3091
  %v3093 = vpop.f32.mrf.mxu0
  %v3094 = vpop.f32.mrf.mxu0
  %v3095 = vadd.f32 %v2951, %v3094
  %v3096 = vpop.f32.mrf.mxu0
  %3097 = vmatprep.mubr.bf16.mxu0 %v2919
  %3098 = vmatmul.mubr.bf16.gmra.mxu0 %v2918
  %v3099 = vpop.f32.mrf.mxu0
  %v3100 = vadd.f32 %v2951, %v3099
  %v3101 = vpop.f32.mrf.mxu0
  %v3102 = vpop.f32.mrf.mxu0
  %v3103 = vadd.f32 %v2951, %v3102
  %v3104 = vpop.f32.mrf.mxu0
  %3105 = vmatprep.mubr.bf16.mxu0 %v2921
  %3106 = vmatmul.mubr.bf16.gmra.mxu0 %v2920
  %v3107 = vpop.f32.mrf.mxu0
  %v3108 = vadd.f32 %v2951, %v3107
  %v3109 = vpop.f32.mrf.mxu0
  %v3110 = vpop.f32.mrf.mxu0
  %v3111 = vadd.f32 %v2951, %v3110
  %v3112 = vpop.f32.mrf.mxu0
  %3113 = vmatprep.mubr.bf16.mxu0 %v2923
  %3114 = vmatmul.mubr.bf16.gmra.mxu0 %v2922
  %v3115 = vpop.f32.mrf.mxu0
  %v3116 = vadd.f32 %v2951, %v3115
  %v3117 = vpop.f32.mrf.mxu0
  %v3118 = vpop.f32.mrf.mxu0
  %v3119 = vadd.f32 %v2951, %v3118
  %v3120 = vpop.f32.mrf.mxu0
  %3121 = vmatprep.mubr.bf16.mxu0 %v2925
  %3122 = vmatmul.mubr.bf16.gmra.mxu0 %v2924
  %v3123 = vpop.f32.mrf.mxu0
  %v3124 = vadd.f32 %v2951, %v3123
  %v3125 = vpop.f32.mrf.mxu0
  %v3126 = vpop.f32.mrf.mxu0
  %v3127 = vadd.f32 %v2951, %v3126
  %v3128 = vpop.f32.mrf.mxu0
  %3129 = vmatprep.mubr.bf16.mxu0 %v2927
  %3130 = vmatmul.mubr.bf16.gmra.mxu0 %v2926
  %v3131 = vpop.f32.mrf.mxu0
  %v3132 = vadd.f32 %v2951, %v3131
  %v3133 = vpop.f32.mrf.mxu0
  %v3134 = vpop.f32.mrf.mxu0
  %v3135 = vadd.f32 %v2951, %v3134
  %v3136 = vpop.f32.mrf.mxu0
  %3137 = vmatprep.mubr.bf16.mxu0 %v2929
  %3138 = vmatmul.mubr.bf16.gmra.mxu0 %v2928
  %v3139 = vpop.f32.mrf.mxu0
  %v3140 = vadd.f32 %v2951, %v3139
  %v3141 = vpop.f32.mrf.mxu0
  %v3142 = vpop.f32.mrf.mxu0
  %v3143 = vadd.f32 %v2951, %v3142
  %v3144 = vpop.f32.mrf.mxu0
  %3145 = vmatprep.mubr.bf16.mxu0 %v2931
  %3146 = vmatmul.mubr.bf16.gmra.mxu0 %v2930
  %v3147 = vpop.f32.mrf.mxu0
  %v3148 = vadd.f32 %v2951, %v3147
  %v3149 = vpop.f32.mrf.mxu0
  %v3150 = vpop.f32.mrf.mxu0
  %v3151 = vadd.f32 %v2951, %v3150
  %v3152 = vpop.f32.mrf.mxu0
  %3153 = vmatprep.mubr.bf16.mxu0 %v2933
  %3154 = vmatmul.mubr.bf16.gmra.mxu0 %v2932
  %v3155 = vpop.f32.mrf.mxu0
  %v3156 = vadd.f32 %v2951, %v3155
  %v3157 = vpop.f32.mrf.mxu0
  %v3158 = vpop.f32.mrf.mxu0
  %v3159 = vadd.f32 %v2951, %v3158
  %v3160 = vpop.f32.mrf.mxu0
  %3161 = vmatprep.mubr.bf16.mxu0 %v2935
  %3162 = vmatmul.mubr.bf16.gmra.mxu0 %v2934
  %v3163 = vpop.f32.mrf.mxu0
  %v3164 = vadd.f32 %v2951, %v3163
  %v3165 = vpop.f32.mrf.mxu0
  %v3166 = vpop.f32.mrf.mxu0
  %v3167 = vadd.f32 %v2951, %v3166
  %v3168 = vpop.f32.mrf.mxu0
  %3169 = vmatprep.mubr.bf16.mxu0 %v2937
  %3170 = vmatmul.mubr.bf16.gmra.mxu0 %v2936
  %v3171 = vpop.f32.mrf.mxu0
  %v3172 = vadd.f32 %v2951, %v3171
  %v3173 = vpop.f32.mrf.mxu0
  %v3174 = vpop.f32.mrf.mxu0
  %v3175 = vadd.f32 %v2951, %v3174
  %v3176 = vpop.f32.mrf.mxu0
  %3177 = vmatprep.mubr.bf16.mxu0 %v2939
  %3178 = vmatmul.mubr.bf16.gmra.mxu0 %v2938
  %v3179 = vpop.f32.mrf.mxu0
  %v3180 = vadd.f32 %v2951, %v3179
  %v3181 = vpop.f32.mrf.mxu0
  %v3182 = vpop.f32.mrf.mxu0
  %v3183 = vadd.f32 %v2951, %v3182
  %v3184 = vpop.f32.mrf.mxu0
  %3185 = vmatprep.mubr.bf16.mxu0 %v2941
  %3186 = vmatmul.mubr.bf16.gmra.mxu0 %v2940
  %v3187 = vpop.f32.mrf.mxu0
  %v3188 = vadd.f32 %v2951, %v3187
  %v3189 = vpop.f32.mrf.mxu0
  %v3190 = vpop.f32.mrf.mxu0
  %v3191 = vadd.f32 %v2951, %v3190
  %v3192 = vpop.f32.mrf.mxu0
  %3193 = vmatprep.mubr.bf16.mxu0 %v2943
  %3194 = vmatmul.mubr.bf16.gmra.mxu0 %v2942
  %v3195 = vpop.f32.mrf.mxu0
  %v3196 = vadd.f32 %v2951, %v3195
  %v3197 = vpop.f32.mrf.mxu0
  %v3198 = vpop.f32.mrf.mxu0
  %v3199 = vadd.f32 %v2951, %v3198
  %v3200 = vpop.f32.mrf.mxu0
  %3201 = vmatprep.mubr.bf16.mxu0 %v2945
  %3202 = vmatmul.mubr.bf16.gmra.mxu0 %v2944
  %v3203 = vpop.f32.mrf.mxu0
  %v3204 = vadd.f32 %v2951, %v3203
  %v3205 = vpop.f32.mrf.mxu0
  %v3206 = vpop.f32.mrf.mxu0
  %v3207 = vadd.f32 %v2951, %v3206
  %v3208 = vpop.f32.mrf.mxu0
  %3209 = vdwg.mxu0
  %3242 = vrot.lane.b32.xlu0 %v676, 32
  %v3243 = vpop.permute.xlu0 %3242
  %3244 = vrot.lane.b32.xlu0 %v679, 32
  %v3245 = vpop.permute.xlu0 %3244
  %3246 = vrot.lane.b32.xlu0 %v684, 32
  %v3247 = vpop.permute.xlu0 %3246
  %3248 = vrot.lane.b32.xlu0 %v687, 32
  %v3249 = vpop.permute.xlu0 %3248
  %3250 = vrot.lane.b32.xlu0 %v692, 32
  %v3251 = vpop.permute.xlu0 %3250
  %3252 = vrot.lane.b32.xlu0 %v695, 32
  %v3253 = vpop.permute.xlu0 %3252
  %3254 = vrot.lane.b32.xlu0 %v700, 32
  %v3255 = vpop.permute.xlu0 %3254
  %3256 = vrot.lane.b32.xlu0 %v703, 32
  %v3257 = vpop.permute.xlu0 %3256
  %3258 = vrot.lane.b32.xlu0 %v708, 32
  %v3259 = vpop.permute.xlu0 %3258
  %3260 = vrot.lane.b32.xlu0 %v711, 32
  %v3261 = vpop.permute.xlu0 %3260
  %3262 = vrot.lane.b32.xlu0 %v716, 32
  %v3263 = vpop.permute.xlu0 %3262
  %3264 = vrot.lane.b32.xlu0 %v719, 32
  %v3265 = vpop.permute.xlu0 %3264
  %3266 = vrot.lane.b32.xlu0 %v724, 32
  %v3267 = vpop.permute.xlu0 %3266
  %3268 = vrot.lane.b32.xlu0 %v727, 32
  %v3269 = vpop.permute.xlu0 %3268
  %3270 = vrot.lane.b32.xlu0 %v732, 32
  %v3271 = vpop.permute.xlu0 %3270
  %3272 = vrot.lane.b32.xlu0 %v735, 32
  %v3273 = vpop.permute.xlu0 %3272
  %3274 = vrot.lane.b32.xlu0 %v740, 32
  %v3275 = vpop.permute.xlu0 %3274
  %3276 = vrot.lane.b32.xlu0 %v743, 32
  %v3277 = vpop.permute.xlu0 %3276
  %3278 = vrot.lane.b32.xlu0 %v748, 32
  %v3279 = vpop.permute.xlu0 %3278
  %3280 = vrot.lane.b32.xlu0 %v751, 32
  %v3281 = vpop.permute.xlu0 %3280
  %3282 = vrot.lane.b32.xlu0 %v756, 32
  %v3283 = vpop.permute.xlu0 %3282
  %3284 = vrot.lane.b32.xlu0 %v759, 32
  %v3285 = vpop.permute.xlu0 %3284
  %3286 = vrot.lane.b32.xlu0 %v764, 32
  %v3287 = vpop.permute.xlu0 %3286
  %3288 = vrot.lane.b32.xlu0 %v767, 32
  %v3289 = vpop.permute.xlu0 %3288
  %3290 = vrot.lane.b32.xlu0 %v772, 32
  %v3291 = vpop.permute.xlu0 %3290
  %3292 = vrot.lane.b32.xlu0 %v775, 32
  %v3293 = vpop.permute.xlu0 %3292
  %3294 = vrot.lane.b32.xlu0 %v780, 32
  %v3295 = vpop.permute.xlu0 %3294
  %3296 = vrot.lane.b32.xlu0 %v783, 32
  %v3297 = vpop.permute.xlu0 %3296
  %3298 = vrot.lane.b32.xlu0 %v788, 32
  %v3299 = vpop.permute.xlu0 %3298
  %3300 = vrot.lane.b32.xlu0 %v791, 32
  %v3301 = vpop.permute.xlu0 %3300
  %3302 = vrot.lane.b32.xlu0 %v796, 32
  %v3303 = vpop.permute.xlu0 %3302
  %3304 = vrot.lane.b32.xlu0 %v799, 32
  %v3305 = vpop.permute.xlu0 %3304
  %v3338 = vsel %vm168, %v3084, %v3243
  %v3339 = vsel %vm168, %v3087, %v3245
  %v3340 = vsel %vm168, %v3092, %v3247
  %v3341 = vsel %vm168, %v3095, %v3249
  %v3342 = vsel %vm168, %v3100, %v3251
  %v3343 = vsel %vm168, %v3103, %v3253
  %v3344 = vsel %vm168, %v3108, %v3255
  %v3345 = vsel %vm168, %v3111, %v3257
  %v3346 = vsel %vm168, %v3116, %v3259
  %v3347 = vsel %vm168, %v3119, %v3261
  %v3348 = vsel %vm168, %v3124, %v3263
  %v3349 = vsel %vm168, %v3127, %v3265
  %v3350 = vsel %vm168, %v3132, %v3267
  %v3351 = vsel %vm168, %v3135, %v3269
  %v3352 = vsel %vm168, %v3140, %v3271
  %v3353 = vsel %vm168, %v3143, %v3273
  %v3354 = vsel %vm168, %v3148, %v3275
  %v3355 = vsel %vm168, %v3151, %v3277
  %v3356 = vsel %vm168, %v3156, %v3279
  %v3357 = vsel %vm168, %v3159, %v3281
  %v3358 = vsel %vm168, %v3164, %v3283
  %v3359 = vsel %vm168, %v3167, %v3285
  %v3360 = vsel %vm168, %v3172, %v3287
  %v3361 = vsel %vm168, %v3175, %v3289
  %v3362 = vsel %vm168, %v3180, %v3291
  %v3363 = vsel %vm168, %v3183, %v3293
  %v3364 = vsel %vm168, %v3188, %v3295
  %v3365 = vsel %vm168, %v3191, %v3297
  %v3366 = vsel %vm168, %v3196, %v3299
  %v3367 = vsel %vm168, %v3199, %v3301
  %v3368 = vsel %vm168, %v3204, %v3303
  %v3369 = vsel %vm168, %v3207, %v3305
  %v3370 = vsel %vm1680, %v3338, 0.0
  %v3371 = vsel %vm1680, %v3339, 0.0
  %v3372 = vsel %vm1680, %v3340, 0.0
  %v3373 = vsel %vm1680, %v3341, 0.0
  %v3374 = vsel %vm1680, %v3342, 0.0
  %v3375 = vsel %vm1680, %v3343, 0.0
  %v3376 = vsel %vm1680, %v3344, 0.0
  %v3377 = vsel %vm1680, %v3345, 0.0
  %v3378 = vsel %vm1680, %v3346, 0.0
  %v3379 = vsel %vm1680, %v3347, 0.0
  %v3380 = vsel %vm1680, %v3348, 0.0
  %v3381 = vsel %vm1680, %v3349, 0.0
  %v3382 = vsel %vm1680, %v3350, 0.0
  %v3383 = vsel %vm1680, %v3351, 0.0
  %v3384 = vsel %vm1680, %v3352, 0.0
  %v3385 = vsel %vm1680, %v3353, 0.0
  %v3386 = vsel %vm1680, %v3354, 0.0
  %v3387 = vsel %vm1680, %v3355, 0.0
  %v3388 = vsel %vm1680, %v3356, 0.0
  %v3389 = vsel %vm1680, %v3357, 0.0
  %v3390 = vsel %vm1680, %v3358, 0.0
  %v3391 = vsel %vm1680, %v3359, 0.0
  %v3392 = vsel %vm1680, %v3360, 0.0
  %v3393 = vsel %vm1680, %v3361, 0.0
  %v3394 = vsel %vm1680, %v3362, 0.0
  %v3395 = vsel %vm1680, %v3363, 0.0
  %v3396 = vsel %vm1680, %v3364, 0.0
  %v3397 = vsel %vm1680, %v3365, 0.0
  %v3398 = vsel %vm1680, %v3366, 0.0
  %v3399 = vsel %vm1680, %v3367, 0.0
  %v3400 = vsel %vm1680, %v3368, 0.0
  %v3401 = vsel %vm1680, %v3369, 0.0
  %3402 = vst [vmem:[%s13] sm:$0xff] %v3370
  %3403 = vst [vmem:[%s13 + $0x8] sm:$0xff] %v3371
  %3404 = vst [vmem:[%s13 + $0x10] sm:$0xff] %v3372
  %3405 = vst [vmem:[%s13 + $0x18] sm:$0xff] %v3373
  %3406 = vst [vmem:[%s13 + $0x20] sm:$0xff] %v3374
  %3407 = vst [vmem:[%s13 + $0x28] sm:$0xff] %v3375
  %3408 = vst [vmem:[%s13 + $0x30] sm:$0xff] %v3376
  %3409 = vst [vmem:[%s13 + $0x38] sm:$0xff] %v3377
  %3410 = vst [vmem:[%s13 + $0x40] sm:$0xff] %v3378
  %3411 = vst [vmem:[%s13 + $0x48] sm:$0xff] %v3379
  %3412 = vst [vmem:[%s13 + $0x50] sm:$0xff] %v3380
  %3413 = vst [vmem:[%s13 + $0x58] sm:$0xff] %v3381
  %3414 = vst [vmem:[%s13 + $0x60] sm:$0xff] %v3382
  %3415 = vst [vmem:[%s13 + $0x68] sm:$0xff] %v3383
  %3416 = vst [vmem:[%s13 + $0x70] sm:$0xff] %v3384
  %3417 = vst [vmem:[%s13 + $0x78] sm:$0xff] %v3385
  %3418 = vst [vmem:[%s13 + $0x80] sm:$0xff] %v3386
  %3419 = vst [vmem:[%s13 + $0x88] sm:$0xff] %v3387
  %3420 = vst [vmem:[%s13 + $0x90] sm:$0xff] %v3388
  %3421 = vst [vmem:[%s13 + $0x98] sm:$0xff] %v3389
  %3422 = vst [vmem:[%s13 + $0xa0] sm:$0xff] %v3390
  %3423 = vst [vmem:[%s13 + $0xa8] sm:$0xff] %v3391
  %3424 = vst [vmem:[%s13 + $0xb0] sm:$0xff] %v3392
  %3425 = vst [vmem:[%s13 + $0xb8] sm:$0xff] %v3393
  %3426 = vst [vmem:[%s13 + $0xc0] sm:$0xff] %v3394
  %3427 = vst [vmem:[%s13 + $0xc8] sm:$0xff] %v3395
  %3428 = vst [vmem:[%s13 + $0xd0] sm:$0xff] %v3396
  %3429 = vst [vmem:[%s13 + $0xd8] sm:$0xff] %v3397
  %3430 = vst [vmem:[%s13 + $0xe0] sm:$0xff] %v3398
  %3431 = vst [vmem:[%s13 + $0xe8] sm:$0xff] %v3399
  %3432 = vst [vmem:[%s13 + $0xf0] sm:$0xff] %v3400
  %3433 = vst [vmem:[%s13 + $0xf8] sm:$0xff] %v3401
  // Predicated region
  $region58: #{kalman_vae_forward.1} parent=0 // pred_check
    _
  $region59: #{kalman_vae_forward.1} parent=0 // pred_check_branch
    %3435 = sbr.rel (0) target = $region61
  $region60: #{kalman_vae_forward.1} parent=0 // pred_region
    _
  $region61: #{kalman_vae_forward.1} parent=0 // pred_fallthru
    _
  // Predicated region
  $region62: #{kalman_vae_forward.1} parent=0 // pred_check
    _
  $region63: #{kalman_vae_forward.1} parent=0 // pred_check_branch
    %3437 = sbr.rel (0) target = $region65
  $region64: #{kalman_vae_forward.1} parent=0 // pred_region
    _
  $region65: #{kalman_vae_forward.1} parent=0 // pred_fallthru
    _

</llo_original>
